<compile_context>
chip_gen: v5e
topology: v5e:2x2
jax: 0.10.0
libtpu: 0.0.40
codegen_flags: <defaults>
</compile_context>

<pallas_src>
import jax
import jax.numpy as jnp
from jax.experimental import pallas as pl
from jax.experimental.pallas import tpu as pltpu

EPS = 1e-5


def _round_up(n, m):
    return ((n + m - 1) // m) * m


def _center_scale(h):
    # ext.Norm(affine=False): center and scale across the feature axis.
    # Single traversal: compute sum(h) and sum(h*h) from the same read.
    d = h.shape[-1]
    s1 = jnp.sum(h, axis=-1, keepdims=True)
    s2 = jnp.sum(h * h, axis=-1, keepdims=True)
    mean = s1 * (1.0 / d)
    var = jnp.maximum(s2 * (1.0 / d) - mean * mean, 0.0)
    return (h - mean) * jax.lax.rsqrt(var + EPS)


def mlp_kernel(x_ref, w0_ref, wh_ref, wl_ref, bh_ref, bl_ref, out_ref):
    """x (block_b,in) f32; w0 (in,w) bf16; wh (nh,w,w) bf16; wl (w,out_pad) bf16;
    bh (nh+1,1,w) f32; bl (1,out_pad) f32; out (block_b,out_pad) bf16."""
    n_hidden = wh_ref.shape[0]

    # First block: Linear -> Activation(ReLU) -> Norm
    h = jnp.dot(x_ref[...].astype(jnp.bfloat16), w0_ref[...],
                preferred_element_type=jnp.float32) + bh_ref[0]
    h = jnp.maximum(h, 0.0)
    h = _center_scale(h)
    # TODO(synk): ext.Norm also wraps Dropout(dropout_prob); dropout_prob=0 -> no-op here.

    # Hidden blocks: Linear -> Norm -> Activation(ReLU)
    for l in range(n_hidden):
        h = jnp.dot(h.astype(jnp.bfloat16), wh_ref[l],
                    preferred_element_type=jnp.float32) + bh_ref[l + 1]
        h = _center_scale(h)
        h = jnp.maximum(h, 0.0)

    # Final Linear (columns zero-padded to a lane-dense width); bf16 store.
    out_ref[...] = (jnp.dot(h.astype(jnp.bfloat16), wl_ref[...],
                            preferred_element_type=jnp.float32) + bl_ref[...]
                    ).astype(out_ref.dtype)


def cen_drop_scaling_mlp(x, params, *, block_b=512):
    """x: (B, C, H, W) or (B, input_size); params: list of (W_in_out, b_1_out) in f32."""
    B = x.shape[0]
    x2 = x.reshape(B, -1).astype(jnp.float32)
    in_size = x2.shape[1]
    width = params[0][0].shape[1]
    out_size = params[-1][0].shape[1]
    n_linear = len(params)
    assert n_linear >= 3, "expects Linear(in,w), >=1 hidden Linear(w,w), Linear(w,out)"
    n_hidden = n_linear - 2

    # --- batch tiling: multiple of 8 sublanes; cap at ~half the batch so the
    # grid has >=2 steps when possible (v7x megacore sharding + pipelining) ---
    block_b = _round_up(max(int(block_b), 8), 8)
    block_b = min(block_b, max(8, _round_up(-(-B // 2), 8)))
    Bp = _round_up(B, block_b)
    if Bp != B:
        # Only pad when actually needed; keep f32 (kernel casts to bf16).
        x2 = jnp.pad(x2, ((0, Bp - B), (0, 0)))

    # --- lane-dense output: pad final layer's columns to a multiple of 128 ---
    out_pad = _round_up(out_size, 128)
    w_last, b_last = params[-1]
    if out_pad != out_size:
        w_last = jnp.pad(w_last, ((0, 0), (0, out_pad - out_size)))
        b_last = jnp.pad(b_last, ((0, 0), (0, out_pad - out_size)))

    # --- pack parameters: fewer, larger prologue DMAs ---
    w0 = params[0][0].astype(jnp.bfloat16)                                   # (in, w)
    wh = jnp.stack([params[l][0] for l in range(1, n_linear - 1)]
                   ).astype(jnp.bfloat16)                                    # (nh, w, w)
    wl = w_last.astype(jnp.bfloat16)                                         # (w, out_pad)
    bh = jnp.stack([params[l][1] for l in range(0, n_linear - 1)]
                   ).astype(jnp.float32)                                     # (nh+1, 1, w)
    bl = b_last.astype(jnp.float32)                                          # (1, out_pad)

    in_specs = [
        pl.BlockSpec((block_b, in_size), lambda i: (i, 0)),
        pl.BlockSpec((in_size, width), lambda i: (0, 0)),
        pl.BlockSpec((n_hidden, width, width), lambda i: (0, 0, 0)),
        pl.BlockSpec((width, out_pad), lambda i: (0, 0)),
        pl.BlockSpec((n_hidden + 1, 1, width), lambda i: (0, 0, 0)),
        pl.BlockSpec((1, out_pad), lambda i: (0, 0)),
    ]
    out_specs = pl.BlockSpec((block_b, out_pad), lambda i: (i, 0))

    out = pl.pallas_call(
        mlp_kernel,
        grid=(Bp // block_b,),
        in_specs=in_specs,
        out_specs=out_specs,
        out_shape=jax.ShapeDtypeStruct((Bp, out_pad), jnp.bfloat16),
        compiler_params=pltpu.CompilerParams(dimension_semantics=("parallel",)),
    )(x2, w0, wh, wl, bh, bl)

    return out[:B, :out_size].astype(jnp.float32)


def _init_linear(key, fan_in, fan_out):
    # PyTorch nn.Linear default init: U(-1/sqrt(fan_in), 1/sqrt(fan_in))
    kw, kb = jax.random.split(key)
    bound = 1.0 / jnp.sqrt(jnp.float32(fan_in))
    w = jax.random.uniform(kw, (fan_in, fan_out), jnp.float32, -bound, bound)
    b = jax.random.uniform(kb, (1, fan_out), jnp.float32, -bound, bound)
    return w, b


def _reference(x, params):
    """Pure-JAX reference using the same bf16-operand / f32-accumulate numerics."""

    def dot_bf16(a, w):
        return jnp.dot(
            a.astype(jnp.bfloat16),
            w.astype(jnp.bfloat16),
            preferred_element_type=jnp.float32,
        )

    h = x.reshape(x.shape[0], -1).astype(jnp.float32)
    w0, b0 = params[0]
    h = dot_bf16(h, w0) + b0
    h = jnp.maximum(h, 0.0)
    h = _center_scale(h)
    for l in range(1, len(params) - 1):
        w, b = params[l]
        h = dot_bf16(h, w) + b
        h = _center_scale(h)
        h = jnp.maximum(h, 0.0)
    w, b = params[-1]
    return dot_bf16(h, w) + b


if __name__ == "__main__":
    # Shapes consistent with the module: image-like input flattened to
    # input_size, depth=4 hidden linear layers of `width`, `output_size` logits.
    # B=392 -> block_b capped to 200, grid = 2 steps, exercises batch padding
    # (Bp=400) plus the lane-dense output padding (16 -> 128 cols).
    depth = 4
    width = 128
    B, C, H, W = 392, 1, 8, 8
    input_size = C * H * W          # 64
    output_size = 16

    key = jax.random.PRNGKey(0)
    kx, kp = jax.random.split(key)
    x = jax.random.normal(kx, (B, C, H, W), jnp.float32)

    # Parameter list: Linear(in,width), depth-1 x Linear(width,width), Linear(width,out)
    sizes = [(input_size, width)] + [(width, width)] * (depth - 1) + [(width, output_size)]
    keys = jax.random.split(kp, len(sizes))
    params = [_init_linear(k, fi, fo) for k, (fi, fo) in zip(keys, sizes)]

    out = cen_drop_scaling_mlp(x, params)
    out = jax.block_until_ready(out)

    ref = _reference(x, params)
    assert out.shape == (B, output_size)
    assert jnp.allclose(out, ref, atol=2e-2, rtol=2e-2), "mismatch vs pure-JAX reference"

    print("KERNEL_OK")
</pallas_src>

<mosaic_0001>
module attributes {stable_mosaic.version = 11 : i64} {
  func.func @mlp_kernel(%arg0: i32, %arg1: memref<200x64xf32, #tpu.memory_space<vmem>>, %arg2: memref<64x128xbf16, #tpu.memory_space<vmem>>, %arg3: memref<3x128x128xbf16, #tpu.memory_space<vmem>>, %arg4: memref<128x128xbf16, #tpu.memory_space<vmem>>, %arg5: memref<4x1x128xf32, #tpu.memory_space<vmem>>, %arg6: memref<1x128xf32, #tpu.memory_space<vmem>>, %arg7: memref<200x128xbf16, #tpu.memory_space<vmem>>) attributes {dimension_semantics = [#tpu.dimension_semantics<parallel>], iteration_bounds = array<i64: 2>, scalar_prefetch = 0 : i64, scratch_operands = 0 : i64, tpu.core_type = #tpu.core_type<tc>, window_params = [{transform_indices = @transform_0, window_bounds = array<i64: 200, 64>}, {pipeline_mode = #tpu.pipeline_mode<synchronous>, transform_indices = @transform_1, window_bounds = array<i64: 64, 128>}, {pipeline_mode = #tpu.pipeline_mode<synchronous>, transform_indices = @transform_2, window_bounds = array<i64: 3, 128, 128>}, {pipeline_mode = #tpu.pipeline_mode<synchronous>, transform_indices = @transform_3, window_bounds = array<i64: 128, 128>}, {pipeline_mode = #tpu.pipeline_mode<synchronous>, transform_indices = @transform_4, window_bounds = array<i64: 4, 1, 128>}, {pipeline_mode = #tpu.pipeline_mode<synchronous>, transform_indices = @transform_5, window_bounds = array<i64: 1, 128>}, {transform_indices = @transform_6, window_bounds = array<i64: 200, 128>}]} {
    %c0 = arith.constant 0 : index
    %c0_0 = arith.constant 0 : index
    %0 = vector.load %arg1[%c0, %c0_0] : memref<200x64xf32, #tpu.memory_space<vmem>>, vector<200x64xf32>
    %1 = arith.truncf %0 : vector<200x64xf32> to vector<200x64xbf16>
    %c0_1 = arith.constant 0 : index
    %c0_2 = arith.constant 0 : index
    %2 = vector.load %arg2[%c0_1, %c0_2] : memref<64x128xbf16, #tpu.memory_space<vmem>>, vector<64x128xbf16>
    %cst = arith.constant dense<0.000000e+00> : vector<200x128xf32>
    %3 = tpu.matmul %1, %2, %cst {dimension_numbers = #tpu.dot_dimension_numbers<[1], [0], [0], [1], [0, 0, 1, 1], [], []>} : vector<200x64xbf16>, vector<64x128xbf16>, vector<200x128xf32> -> vector<200x128xf32>
    %c0_3 = arith.constant 0 : index
    %c0_4 = arith.constant 0 : index
    %c0_5 = arith.constant 0 : index
    %4 = vector.load %arg5[%c0_3, %c0_4, %c0_5] : memref<4x1x128xf32, #tpu.memory_space<vmem>>, vector<1x1x128xf32>
    %5 = vector.shape_cast %4 : vector<1x1x128xf32> to vector<1x128xf32>
    %6 = vector.broadcast %5 : vector<1x128xf32> to vector<200x128xf32>
    %7 = arith.addf %3, %6 : vector<200x128xf32>
    %cst_6 = arith.constant 0.000000e+00 : f32
    %8 = vector.broadcast %cst_6 : f32 to vector<200x128xf32>
    %9 = arith.maximumf %7, %8 : vector<200x128xf32>
    %cst_7 = arith.constant dense<0.000000e+00> : vector<200xf32>
    %10 = vector.multi_reduction <add>, %9, %cst_7 [1] : vector<200x128xf32> to vector<200xf32>
    %11 = vector.shape_cast %10 : vector<200xf32> to vector<200x1xf32>
    %12 = arith.mulf %9, %9 : vector<200x128xf32>
    %cst_8 = arith.constant dense<0.000000e+00> : vector<200xf32>
    %13 = vector.multi_reduction <add>, %12, %cst_8 [1] : vector<200x128xf32> to vector<200xf32>
    %14 = vector.shape_cast %13 : vector<200xf32> to vector<200x1xf32>
    %cst_9 = arith.constant 7.812500e-03 : f32
    %15 = vector.broadcast %cst_9 : f32 to vector<200x1xf32>
    %16 = arith.mulf %11, %15 : vector<200x1xf32>
    %cst_10 = arith.constant 7.812500e-03 : f32
    %17 = vector.broadcast %cst_10 : f32 to vector<200x1xf32>
    %18 = arith.mulf %14, %17 : vector<200x1xf32>
    %19 = arith.mulf %16, %16 : vector<200x1xf32>
    %20 = arith.subf %18, %19 : vector<200x1xf32>
    %cst_11 = arith.constant 0.000000e+00 : f32
    %21 = vector.broadcast %cst_11 : f32 to vector<200x1xf32>
    %22 = arith.maximumf %20, %21 : vector<200x1xf32>
    %23 = vector.broadcast %16 : vector<200x1xf32> to vector<200x128xf32>
    %24 = arith.subf %9, %23 : vector<200x128xf32>
    %cst_12 = arith.constant 9.99999974E-6 : f32
    %25 = vector.broadcast %cst_12 : f32 to vector<200x1xf32>
    %26 = arith.addf %22, %25 : vector<200x1xf32>
    %27 = math.rsqrt %26 : vector<200x1xf32>
    %28 = vector.broadcast %27 : vector<200x1xf32> to vector<200x128xf32>
    %29 = arith.mulf %24, %28 : vector<200x128xf32>
    %30 = arith.truncf %29 : vector<200x128xf32> to vector<200x128xbf16>
    %c0_13 = arith.constant 0 : index
    %c0_14 = arith.constant 0 : index
    %c0_15 = arith.constant 0 : index
    %31 = vector.load %arg3[%c0_13, %c0_14, %c0_15] : memref<3x128x128xbf16, #tpu.memory_space<vmem>>, vector<1x128x128xbf16>
    %32 = vector.shape_cast %31 : vector<1x128x128xbf16> to vector<128x128xbf16>
    %cst_16 = arith.constant dense<0.000000e+00> : vector<200x128xf32>
    %33 = tpu.matmul %30, %32, %cst_16 {dimension_numbers = #tpu.dot_dimension_numbers<[1], [0], [0], [1], [0, 0, 1, 1], [], []>} : vector<200x128xbf16>, vector<128x128xbf16>, vector<200x128xf32> -> vector<200x128xf32>
    %c1 = arith.constant 1 : index
    %c0_17 = arith.constant 0 : index
    %c0_18 = arith.constant 0 : index
    %34 = vector.load %arg5[%c1, %c0_17, %c0_18] : memref<4x1x128xf32, #tpu.memory_space<vmem>>, vector<1x1x128xf32>
    %35 = vector.shape_cast %34 : vector<1x1x128xf32> to vector<1x128xf32>
    %36 = vector.broadcast %35 : vector<1x128xf32> to vector<200x128xf32>
    %37 = arith.addf %33, %36 : vector<200x128xf32>
    %cst_19 = arith.constant dense<0.000000e+00> : vector<200xf32>
    %38 = vector.multi_reduction <add>, %37, %cst_19 [1] : vector<200x128xf32> to vector<200xf32>
    %39 = vector.shape_cast %38 : vector<200xf32> to vector<200x1xf32>
    %40 = arith.mulf %37, %37 : vector<200x128xf32>
    %cst_20 = arith.constant dense<0.000000e+00> : vector<200xf32>
    %41 = vector.multi_reduction <add>, %40, %cst_20 [1] : vector<200x128xf32> to vector<200xf32>
    %42 = vector.shape_cast %41 : vector<200xf32> to vector<200x1xf32>
    %cst_21 = arith.constant 7.812500e-03 : f32
    %43 = vector.broadcast %cst_21 : f32 to vector<200x1xf32>
    %44 = arith.mulf %39, %43 : vector<200x1xf32>
    %cst_22 = arith.constant 7.812500e-03 : f32
    %45 = vector.broadcast %cst_22 : f32 to vector<200x1xf32>
    %46 = arith.mulf %42, %45 : vector<200x1xf32>
    %47 = arith.mulf %44, %44 : vector<200x1xf32>
    %48 = arith.subf %46, %47 : vector<200x1xf32>
    %cst_23 = arith.constant 0.000000e+00 : f32
    %49 = vector.broadcast %cst_23 : f32 to vector<200x1xf32>
    %50 = arith.maximumf %48, %49 : vector<200x1xf32>
    %51 = vector.broadcast %44 : vector<200x1xf32> to vector<200x128xf32>
    %52 = arith.subf %37, %51 : vector<200x128xf32>
    %cst_24 = arith.constant 9.99999974E-6 : f32
    %53 = vector.broadcast %cst_24 : f32 to vector<200x1xf32>
    %54 = arith.addf %50, %53 : vector<200x1xf32>
    %55 = math.rsqrt %54 : vector<200x1xf32>
    %56 = vector.broadcast %55 : vector<200x1xf32> to vector<200x128xf32>
    %57 = arith.mulf %52, %56 : vector<200x128xf32>
    %cst_25 = arith.constant 0.000000e+00 : f32
    %58 = vector.broadcast %cst_25 : f32 to vector<200x128xf32>
    %59 = arith.maximumf %57, %58 : vector<200x128xf32>
    %60 = arith.truncf %59 : vector<200x128xf32> to vector<200x128xbf16>
    %c1_26 = arith.constant 1 : index
    %c0_27 = arith.constant 0 : index
    %c0_28 = arith.constant 0 : index
    %61 = vector.load %arg3[%c1_26, %c0_27, %c0_28] : memref<3x128x128xbf16, #tpu.memory_space<vmem>>, vector<1x128x128xbf16>
    %62 = vector.shape_cast %61 : vector<1x128x128xbf16> to vector<128x128xbf16>
    %cst_29 = arith.constant dense<0.000000e+00> : vector<200x128xf32>
    %63 = tpu.matmul %60, %62, %cst_29 {dimension_numbers = #tpu.dot_dimension_numbers<[1], [0], [0], [1], [0, 0, 1, 1], [], []>} : vector<200x128xbf16>, vector<128x128xbf16>, vector<200x128xf32> -> vector<200x128xf32>
    %c2 = arith.constant 2 : index
    %c0_30 = arith.constant 0 : index
    %c0_31 = arith.constant 0 : index
    %64 = vector.load %arg5[%c2, %c0_30, %c0_31] : memref<4x1x128xf32, #tpu.memory_space<vmem>>, vector<1x1x128xf32>
    %65 = vector.shape_cast %64 : vector<1x1x128xf32> to vector<1x128xf32>
    %66 = vector.broadcast %65 : vector<1x128xf32> to vector<200x128xf32>
    %67 = arith.addf %63, %66 : vector<200x128xf32>
    %cst_32 = arith.constant dense<0.000000e+00> : vector<200xf32>
    %68 = vector.multi_reduction <add>, %67, %cst_32 [1] : vector<200x128xf32> to vector<200xf32>
    %69 = vector.shape_cast %68 : vector<200xf32> to vector<200x1xf32>
    %70 = arith.mulf %67, %67 : vector<200x128xf32>
    %cst_33 = arith.constant dense<0.000000e+00> : vector<200xf32>
    %71 = vector.multi_reduction <add>, %70, %cst_33 [1] : vector<200x128xf32> to vector<200xf32>
    %72 = vector.shape_cast %71 : vector<200xf32> to vector<200x1xf32>
    %cst_34 = arith.constant 7.812500e-03 : f32
    %73 = vector.broadcast %cst_34 : f32 to vector<200x1xf32>
    %74 = arith.mulf %69, %73 : vector<200x1xf32>
    %cst_35 = arith.constant 7.812500e-03 : f32
    %75 = vector.broadcast %cst_35 : f32 to vector<200x1xf32>
    %76 = arith.mulf %72, %75 : vector<200x1xf32>
    %77 = arith.mulf %74, %74 : vector<200x1xf32>
    %78 = arith.subf %76, %77 : vector<200x1xf32>
    %cst_36 = arith.constant 0.000000e+00 : f32
    %79 = vector.broadcast %cst_36 : f32 to vector<200x1xf32>
    %80 = arith.maximumf %78, %79 : vector<200x1xf32>
    %81 = vector.broadcast %74 : vector<200x1xf32> to vector<200x128xf32>
    %82 = arith.subf %67, %81 : vector<200x128xf32>
    %cst_37 = arith.constant 9.99999974E-6 : f32
    %83 = vector.broadcast %cst_37 : f32 to vector<200x1xf32>
    %84 = arith.addf %80, %83 : vector<200x1xf32>
    %85 = math.rsqrt %84 : vector<200x1xf32>
    %86 = vector.broadcast %85 : vector<200x1xf32> to vector<200x128xf32>
    %87 = arith.mulf %82, %86 : vector<200x128xf32>
    %cst_38 = arith.constant 0.000000e+00 : f32
    %88 = vector.broadcast %cst_38 : f32 to vector<200x128xf32>
    %89 = arith.maximumf %87, %88 : vector<200x128xf32>
    %90 = arith.truncf %89 : vector<200x128xf32> to vector<200x128xbf16>
    %c2_39 = arith.constant 2 : index
    %c0_40 = arith.constant 0 : index
    %c0_41 = arith.constant 0 : index
    %91 = vector.load %arg3[%c2_39, %c0_40, %c0_41] : memref<3x128x128xbf16, #tpu.memory_space<vmem>>, vector<1x128x128xbf16>
    %92 = vector.shape_cast %91 : vector<1x128x128xbf16> to vector<128x128xbf16>
    %cst_42 = arith.constant dense<0.000000e+00> : vector<200x128xf32>
    %93 = tpu.matmul %90, %92, %cst_42 {dimension_numbers = #tpu.dot_dimension_numbers<[1], [0], [0], [1], [0, 0, 1, 1], [], []>} : vector<200x128xbf16>, vector<128x128xbf16>, vector<200x128xf32> -> vector<200x128xf32>
    %c3 = arith.constant 3 : index
    %c0_43 = arith.constant 0 : index
    %c0_44 = arith.constant 0 : index
    %94 = vector.load %arg5[%c3, %c0_43, %c0_44] : memref<4x1x128xf32, #tpu.memory_space<vmem>>, vector<1x1x128xf32>
    %95 = vector.shape_cast %94 : vector<1x1x128xf32> to vector<1x128xf32>
    %96 = vector.broadcast %95 : vector<1x128xf32> to vector<200x128xf32>
    %97 = arith.addf %93, %96 : vector<200x128xf32>
    %cst_45 = arith.constant dense<0.000000e+00> : vector<200xf32>
    %98 = vector.multi_reduction <add>, %97, %cst_45 [1] : vector<200x128xf32> to vector<200xf32>
    %99 = vector.shape_cast %98 : vector<200xf32> to vector<200x1xf32>
    %100 = arith.mulf %97, %97 : vector<200x128xf32>
    %cst_46 = arith.constant dense<0.000000e+00> : vector<200xf32>
    %101 = vector.multi_reduction <add>, %100, %cst_46 [1] : vector<200x128xf32> to vector<200xf32>
    %102 = vector.shape_cast %101 : vector<200xf32> to vector<200x1xf32>
    %cst_47 = arith.constant 7.812500e-03 : f32
    %103 = vector.broadcast %cst_47 : f32 to vector<200x1xf32>
    %104 = arith.mulf %99, %103 : vector<200x1xf32>
    %cst_48 = arith.constant 7.812500e-03 : f32
    %105 = vector.broadcast %cst_48 : f32 to vector<200x1xf32>
    %106 = arith.mulf %102, %105 : vector<200x1xf32>
    %107 = arith.mulf %104, %104 : vector<200x1xf32>
    %108 = arith.subf %106, %107 : vector<200x1xf32>
    %cst_49 = arith.constant 0.000000e+00 : f32
    %109 = vector.broadcast %cst_49 : f32 to vector<200x1xf32>
    %110 = arith.maximumf %108, %109 : vector<200x1xf32>
    %111 = vector.broadcast %104 : vector<200x1xf32> to vector<200x128xf32>
    %112 = arith.subf %97, %111 : vector<200x128xf32>
    %cst_50 = arith.constant 9.99999974E-6 : f32
    %113 = vector.broadcast %cst_50 : f32 to vector<200x1xf32>
    %114 = arith.addf %110, %113 : vector<200x1xf32>
    %115 = math.rsqrt %114 : vector<200x1xf32>
    %116 = vector.broadcast %115 : vector<200x1xf32> to vector<200x128xf32>
    %117 = arith.mulf %112, %116 : vector<200x128xf32>
    %cst_51 = arith.constant 0.000000e+00 : f32
    %118 = vector.broadcast %cst_51 : f32 to vector<200x128xf32>
    %119 = arith.maximumf %117, %118 : vector<200x128xf32>
    %120 = arith.truncf %119 : vector<200x128xf32> to vector<200x128xbf16>
    %c0_52 = arith.constant 0 : index
    %c0_53 = arith.constant 0 : index
    %121 = vector.load %arg4[%c0_52, %c0_53] : memref<128x128xbf16, #tpu.memory_space<vmem>>, vector<128x128xbf16>
    %cst_54 = arith.constant dense<0.000000e+00> : vector<200x128xf32>
    %122 = tpu.matmul %120, %121, %cst_54 {dimension_numbers = #tpu.dot_dimension_numbers<[1], [0], [0], [1], [0, 0, 1, 1], [], []>} : vector<200x128xbf16>, vector<128x128xbf16>, vector<200x128xf32> -> vector<200x128xf32>
    %c0_55 = arith.constant 0 : index
    %c0_56 = arith.constant 0 : index
    %123 = vector.load %arg6[%c0_55, %c0_56] : memref<1x128xf32, #tpu.memory_space<vmem>>, vector<1x128xf32>
    %124 = vector.broadcast %123 : vector<1x128xf32> to vector<200x128xf32>
    %125 = arith.addf %122, %124 : vector<200x128xf32>
    %126 = arith.truncf %125 : vector<200x128xf32> to vector<200x128xbf16>
    %c0_57 = arith.constant 0 : index
    %c0_58 = arith.constant 0 : index
    %127 = vector.load %arg7[%c0_57, %c0_58] : memref<200x128xbf16, #tpu.memory_space<vmem>>, vector<200x128xbf16>
    tpu.vector_store %arg7[%c0_57, %c0_58], %126 {strides = array<i32>} : memref<200x128xbf16, #tpu.memory_space<vmem>>, vector<200x128xbf16>,
    return
  }
  func.func @transform_0(%arg0: i32) -> (i32, i32) {
    %c0_i32 = arith.constant 0 : i32
    %c0_i32_0 = arith.constant 0 : i32
    return %arg0, %c0_i32 : i32, i32
  }
  func.func @transform_1(%arg0: i32) -> (i32, i32) {
    %c0_i32 = arith.constant 0 : i32
    %c0_i32_0 = arith.constant 0 : i32
    %c0_i32_1 = arith.constant 0 : i32
    return %c0_i32, %c0_i32_0 : i32, i32
  }
  func.func @transform_2(%arg0: i32) -> (i32, i32, i32) {
    %c0_i32 = arith.constant 0 : i32
    %c0_i32_0 = arith.constant 0 : i32
    %c0_i32_1 = arith.constant 0 : i32
    %c0_i32_2 = arith.constant 0 : i32
    return %c0_i32, %c0_i32_0, %c0_i32_1 : i32, i32, i32
  }
  func.func @transform_3(%arg0: i32) -> (i32, i32) {
    %c0_i32 = arith.constant 0 : i32
    %c0_i32_0 = arith.constant 0 : i32
    %c0_i32_1 = arith.constant 0 : i32
    return %c0_i32, %c0_i32_0 : i32, i32
  }
  func.func @transform_4(%arg0: i32) -> (i32, i32, i32) {
    %c0_i32 = arith.constant 0 : i32
    %c0_i32_0 = arith.constant 0 : i32
    %c0_i32_1 = arith.constant 0 : i32
    %c0_i32_2 = arith.constant 0 : i32
    return %c0_i32, %c0_i32_0, %c0_i32_1 : i32, i32, i32
  }
  func.func @transform_5(%arg0: i32) -> (i32, i32) {
    %c0_i32 = arith.constant 0 : i32
    %c0_i32_0 = arith.constant 0 : i32
    %c0_i32_1 = arith.constant 0 : i32
    return %c0_i32, %c0_i32_0 : i32, i32
  }
  func.func @transform_6(%arg0: i32) -> (i32, i32) {
    %c0_i32 = arith.constant 0 : i32
    %c0_i32_0 = arith.constant 0 : i32
    return %arg0, %c0_i32 : i32, i32
  }
}

</mosaic_0001>

<llo_original>
// kernel: tpu_custom_call.1
$region0: #{tpu_custom_call.1}
  #allocation0 [shape = 'u32[]', space=smem, size = 0x4, offset = 0x4, fixed_abs, tag = 'smem constant byte address 0x4 - core index']
  #allocation1 [shape = 'u32[72,128]{1,0:T(1,128)}', space=vmem, size = 0x9000, scoped, tag = 'internal scratch']
  %s0 = inlined_call_operand.vmem [shape: f32[400,64], index: 0, kind: input, shape index: {}]
  %s1 = inlined_call_operand.vmem [shape: bf16[64,128], index: 1, kind: input, shape index: {}]
  %s2 = inlined_call_operand.vmem [shape: bf16[3,128,128], index: 2, kind: input, shape index: {}]
  %s3 = inlined_call_operand.vmem [shape: bf16[128,128], index: 3, kind: input, shape index: {}]
  %s4 = inlined_call_operand.vmem [shape: f32[4,1,128], index: 4, kind: input, shape index: {}]
  %s5 = inlined_call_operand.vmem [shape: f32[1,128], index: 5, kind: input, shape index: {}]
  %s6 = inlined_call_operand.hbm [shape: bf16[400,128], index: 6, kind: output, shape index: {}]
  %s7 = sld [smem:[#allocation0]]
  $region57: #{tpu_custom_call.1} parent=0
    _
  %s9 = ssub.s32 1, %s7
  %s10 = scalar_select 0, %s9, %s7
  $region1: #{tpu_custom_call.1} parent=0
    #allocation2 [shape = 'u8[102400]{0}', space=vmem, size = 0x19000, scoped, tag = 'output window, operand 0']
    #allocation3 [shape = 's32[2]{0}', space=sflag, size = 0x8, scoped, tag = 'scoped memory for tpu_custom_call.1']
    %11 = vsyncpa [#allocation3], 0
    %s12 = scalar_lea.sflag [#allocation3], 1
    %13 = vsyncpa %s12, 0
    loop: start=0, step=1, limit=4
    $region2: #{tpu_custom_call.1} parent=1 // loop_pre_header
      _
    $region3: #{tpu_custom_call.1} parent=1 // loop_header
      %s15 = sphi 0, %s19
      %p16 = scmp.ge.s32.totalorder %s15, 4
      %s25 = sphi 0, %s27
      %s28 = sphi 0, %s25
      %s29 = sphi 0, %s28
      %s45 = sphi 0, %s29
      %s49 = sphi 0, %s49
      %s51 = sphi 0, %s49
      %s52 = sphi 0, %s51
      %s66 = sphi 0, %s52
      %s70 = sphi 0, %s70
      %s72 = sphi 0, %s70
      %s73 = sphi 0, %s72
      %s87 = sphi 0, %s73
      %s91 = sphi 0, %s91
      %s93 = sphi 0, %s91
      %s94 = sphi 0, %s93
      %s108 = sphi 0, %s94
      %s112 = sphi 0, %s112
      %s114 = sphi 0, %s112
      %s115 = sphi 0, %s114
      %s129 = sphi 0, %s115
      %s133 = sphi 0, %s133
      %s135 = sphi 0, %s133
      %s136 = sphi 0, %s135
      %s150 = sphi 0, %s136
      %s156 = sphi 0, %s158
      %s159 = sphi 0, %s156
      %s160 = sphi 0, %s159
      %s176 = sphi 0, %s160
    $region4: #{tpu_custom_call.1} parent=1 // loop_header_branch
      %18 = sbr.rel (%p16) target = $region8
    $region5: #{tpu_custom_call.1} parent=1 // loop_body
      %s20 = ssub.s32 %s15, 1
      %s21 = ssub.s32 %s15, 2
      %s22 = sadd.s32 %s15, 1
      %s23 = ssub.s32 %s15, %s22
      %p24 = scmp.eq.s32.totalorder %s23, 0
      %s26 = sadd.s32 %s25, 1
      %s27 = scalar_select %p24, %s25, %s26
      %p30 = pneg %p24
      %p31 = scmp.eq.s32.totalorder %s15, 1
      %p32 = por %p30, %p31
      %p33 = scmp.ne.s32.totalorder %s25, %s28
      %p34 = scmp.eq.s32.totalorder %s15, 0
      %p35 = por %p33, %p34
      %p36 = scmp.ne.s32.totalorder %s25, %s28
      %p37 = scmp.eq.s32.totalorder %s20, 1
      %p38 = por %p36, %p37
      %p39 = scmp.ne.s32.totalorder %s28, %s29
      %p40 = scmp.eq.s32.totalorder %s20, 0
      %p41 = por %p39, %p40
      %p42 = scmp.ne.s32.totalorder %s28, %s29
      %p43 = scmp.eq.s32.totalorder %s21, 1
      %p44 = por %p42, %p43
      %p46 = scmp.ne.s32.totalorder %s29, %s45
      %p47 = scmp.eq.s32.totalorder %s21, 0
      %p48 = por %p46, %p47
      %s50 = sadd.s32 %s49, 1
      %p53 = scmp.eq.s32.totalorder %s15, 1
      %p54 = scmp.ne.s32.totalorder %s49, %s51
      %p55 = scmp.eq.s32.totalorder %s15, 0
      %p56 = por %p54, %p55
      %p57 = scmp.ne.s32.totalorder %s49, %s51
      %p58 = scmp.eq.s32.totalorder %s20, 1
      %p59 = por %p57, %p58
      %p60 = scmp.ne.s32.totalorder %s51, %s52
      %p61 = scmp.eq.s32.totalorder %s20, 0
      %p62 = por %p60, %p61
      %p63 = scmp.ne.s32.totalorder %s51, %s52
      %p64 = scmp.eq.s32.totalorder %s21, 1
      %p65 = por %p63, %p64
      %p67 = scmp.ne.s32.totalorder %s52, %s66
      %p68 = scmp.eq.s32.totalorder %s21, 0
      %p69 = por %p67, %p68
      %s71 = sadd.s32 %s70, 1
      %p74 = scmp.eq.s32.totalorder %s15, 1
      %p75 = scmp.ne.s32.totalorder %s70, %s72
      %p76 = scmp.eq.s32.totalorder %s15, 0
      %p77 = por %p75, %p76
      %p78 = scmp.ne.s32.totalorder %s70, %s72
      %p79 = scmp.eq.s32.totalorder %s20, 1
      %p80 = por %p78, %p79
      %p81 = scmp.ne.s32.totalorder %s72, %s73
      %p82 = scmp.eq.s32.totalorder %s20, 0
      %p83 = por %p81, %p82
      %p84 = scmp.ne.s32.totalorder %s72, %s73
      %p85 = scmp.eq.s32.totalorder %s21, 1
      %p86 = por %p84, %p85
      %p88 = scmp.ne.s32.totalorder %s73, %s87
      %p89 = scmp.eq.s32.totalorder %s21, 0
      %p90 = por %p88, %p89
      %s92 = sadd.s32 %s91, 1
      %p95 = scmp.eq.s32.totalorder %s15, 1
      %p96 = scmp.ne.s32.totalorder %s91, %s93
      %p97 = scmp.eq.s32.totalorder %s15, 0
      %p98 = por %p96, %p97
      %p99 = scmp.ne.s32.totalorder %s91, %s93
      %p100 = scmp.eq.s32.totalorder %s20, 1
      %p101 = por %p99, %p100
      %p102 = scmp.ne.s32.totalorder %s93, %s94
      %p103 = scmp.eq.s32.totalorder %s20, 0
      %p104 = por %p102, %p103
      %p105 = scmp.ne.s32.totalorder %s93, %s94
      %p106 = scmp.eq.s32.totalorder %s21, 1
      %p107 = por %p105, %p106
      %p109 = scmp.ne.s32.totalorder %s94, %s108
      %p110 = scmp.eq.s32.totalorder %s21, 0
      %p111 = por %p109, %p110
      %s113 = sadd.s32 %s112, 1
      %p116 = scmp.eq.s32.totalorder %s15, 1
      %p117 = scmp.ne.s32.totalorder %s112, %s114
      %p118 = scmp.eq.s32.totalorder %s15, 0
      %p119 = por %p117, %p118
      %p120 = scmp.ne.s32.totalorder %s112, %s114
      %p121 = scmp.eq.s32.totalorder %s20, 1
      %p122 = por %p120, %p121
      %p123 = scmp.ne.s32.totalorder %s114, %s115
      %p124 = scmp.eq.s32.totalorder %s20, 0
      %p125 = por %p123, %p124
      %p126 = scmp.ne.s32.totalorder %s114, %s115
      %p127 = scmp.eq.s32.totalorder %s21, 1
      %p128 = por %p126, %p127
      %p130 = scmp.ne.s32.totalorder %s115, %s129
      %p131 = scmp.eq.s32.totalorder %s21, 0
      %p132 = por %p130, %p131
      %s134 = sadd.s32 %s133, 1
      %p137 = scmp.eq.s32.totalorder %s15, 1
      %p138 = scmp.ne.s32.totalorder %s133, %s135
      %p139 = scmp.eq.s32.totalorder %s15, 0
      %p140 = por %p138, %p139
      %p141 = scmp.ne.s32.totalorder %s133, %s135
      %p142 = scmp.eq.s32.totalorder %s20, 1
      %p143 = por %p141, %p142
      %p144 = scmp.ne.s32.totalorder %s135, %s136
      %p145 = scmp.eq.s32.totalorder %s20, 0
      %p146 = por %p144, %p145
      %p147 = scmp.ne.s32.totalorder %s135, %s136
      %p148 = scmp.eq.s32.totalorder %s21, 1
      %p149 = por %p147, %p148
      %p151 = scmp.ne.s32.totalorder %s136, %s150
      %p152 = scmp.eq.s32.totalorder %s21, 0
      %p153 = por %p151, %p152
      %s154 = ssub.s32 %s15, %s22
      %p155 = scmp.eq.s32.totalorder %s154, 0
      %s157 = sadd.s32 %s156, 1
      %s158 = scalar_select %p155, %s156, %s157
      %p161 = pneg %p155
      %p162 = scmp.eq.s32.totalorder %s15, 1
      %p163 = por %p161, %p162
      %p164 = scmp.ne.s32.totalorder %s156, %s159
      %p165 = scmp.eq.s32.totalorder %s15, 0
      %p166 = por %p164, %p165
      %p167 = scmp.ne.s32.totalorder %s156, %s159
      %p168 = scmp.eq.s32.totalorder %s20, 1
      %p169 = por %p167, %p168
      %p170 = scmp.ne.s32.totalorder %s159, %s160
      %p171 = scmp.eq.s32.totalorder %s20, 0
      %p172 = por %p170, %p171
      %p173 = scmp.ne.s32.totalorder %s159, %s160
      %p174 = scmp.eq.s32.totalorder %s21, 1
      %p175 = por %p173, %p174
      %p177 = scmp.ne.s32.totalorder %s160, %s176
      %p178 = scmp.eq.s32.totalorder %s21, 0
      %p179 = por %p177, %p178
      %p180 = scmp.le.s32.totalorder 1, %s15
      %p181 = scmp.lt.s32.totalorder %s15, 3
      %p182 = pnand %p180, %p181
      %p183 = pneg %p182
      // Predicated region
      $region9: #{tpu_custom_call.1} parent=5 // pred_check
        _
      $region10: #{tpu_custom_call.1} parent=5 // pred_check_branch
        %185 = sbr.rel (%p182) target = $region12
      $region11: #{tpu_custom_call.1} parent=5 // pred_region
        %s186 = ssub.s32 %s15, 1
        // Predicated region
        $region13: #{tpu_custom_call.1} parent=11 // pred_check
          %p187 = pneg %p62
        $region14: #{tpu_custom_call.1} parent=11 // pred_check_branch
          %189 = sbr.rel (%p187) target = $region16
        $region15: #{tpu_custom_call.1} parent=11 // pred_region
          _
        $region16: #{tpu_custom_call.1} parent=11 // pred_fallthru
          _
        // Predicated region
        $region17: #{tpu_custom_call.1} parent=11 // pred_check
          %p190 = pneg %p83
        $region18: #{tpu_custom_call.1} parent=11 // pred_check_branch
          %192 = sbr.rel (%p190) target = $region20
        $region19: #{tpu_custom_call.1} parent=11 // pred_region
          _
        $region20: #{tpu_custom_call.1} parent=11 // pred_fallthru
          _
        // Predicated region
        $region21: #{tpu_custom_call.1} parent=11 // pred_check
          %p193 = pneg %p104
        $region22: #{tpu_custom_call.1} parent=11 // pred_check_branch
          %195 = sbr.rel (%p193) target = $region24
        $region23: #{tpu_custom_call.1} parent=11 // pred_region
          _
        $region24: #{tpu_custom_call.1} parent=11 // pred_fallthru
          _
        // Predicated region
        $region25: #{tpu_custom_call.1} parent=11 // pred_check
          %p196 = pneg %p125
        $region26: #{tpu_custom_call.1} parent=11 // pred_check_branch
          %198 = sbr.rel (%p196) target = $region28
        $region27: #{tpu_custom_call.1} parent=11 // pred_region
          _
        $region28: #{tpu_custom_call.1} parent=11 // pred_fallthru
          _
        // Predicated region
        $region29: #{tpu_custom_call.1} parent=11 // pred_check
          %p199 = pneg %p146
        $region30: #{tpu_custom_call.1} parent=11 // pred_check_branch
          %201 = sbr.rel (%p199) target = $region32
        $region31: #{tpu_custom_call.1} parent=11 // pred_region
          _
        $region32: #{tpu_custom_call.1} parent=11 // pred_fallthru
          _
      $region12: #{tpu_custom_call.1} parent=5 // pred_fallthru
        _
      %p202 = scmp.lt.s32.totalorder %s15, 2
      // Predicated region
      $region33: #{tpu_custom_call.1} parent=5 // pred_check
        %p203 = pneg %p202
      $region34: #{tpu_custom_call.1} parent=5 // pred_check_branch
        %205 = sbr.rel (%p203) target = $region36
      $region35: #{tpu_custom_call.1} parent=5 // pred_region
        // Predicated region
        $region37: #{tpu_custom_call.1} parent=35 // pred_check
          %p206 = pneg %p35
        $region38: #{tpu_custom_call.1} parent=35 // pred_check_branch
          %208 = sbr.rel (%p206) target = $region40
        $region39: #{tpu_custom_call.1} parent=35 // pred_region
          %s209 = smul.u32 25, %s15
          %p210 = scmp.lt.s32.totalorder %s209, 49
          %s211 = scalar_select %p210, %s209, 49
          %s212 = smul.addr %s211, 8
          %s213 = scalar_lea.vmem %s0, %s212
          %s214 = smul.u32 25, %s15
        $region40: #{tpu_custom_call.1} parent=35 // pred_fallthru
          _
      $region36: #{tpu_custom_call.1} parent=5 // pred_fallthru
        _
      %p215 = scmp.le.s32.totalorder 1, %s15
      %p216 = scmp.lt.s32.totalorder %s15, 3
      %p217 = pnand %p215, %p216
      %p218 = pneg %p217
      // Predicated region
      $region41: #{tpu_custom_call.1} parent=5 // pred_check
        _
      $region42: #{tpu_custom_call.1} parent=5 // pred_check_branch
        %220 = sbr.rel (%p217) target = $region44
      $region43: #{tpu_custom_call.1} parent=5 // pred_region
        %s221 = ssub.s32 %s15, 1
        %s222 = smul.u32 25, %s20
        %p223 = scmp.lt.s32.totalorder %s222, 49
        %s224 = scalar_select %p223, %s222, 49
        %s225 = smul.addr %s224, 8
        %s226 = scalar_lea.vmem %s0, %s225
        %p227 = pneg %p41
        %p228 = pneg %p38
        %p229 = pneg %p62
        %p230 = pneg %p59
        %p231 = pneg %p83
        %p232 = pneg %p80
        %p233 = pneg %p104
        %p234 = pneg %p101
        %p235 = pneg %p125
        %p236 = pneg %p122
        %p237 = pneg %p146
        %p238 = pneg %p143
        %p239 = pneg %p172
        %p240 = pneg %p169
        %s241 = sand.u32 %s159, 1
        %s242 = scalar_lea.sflag [#allocation3], %s241
        %s243 = sand.u32 %s159, 1
        %s244 = smul.addr %s243, 100
        %s245 = scalar_lea.vmem [#allocation2], %s244
        %s246 = smul.u32 25, %s20
        %p247 = scmp.lt.s32.totalorder %s246, 49
        %s248 = scalar_select %p247, %s246, 49
        %s249 = smul.addr %s248, 8
        %s250 = scalar_lea.vmem %s0, %s249
        %s251 = smul.u32 25, %s20
        %s252 = smul.u32 25, %s20
        %v254 = vld [vmem:[%s250] sm:$0xff]
        %v255 = vld [vmem:[%s250 + $0x8] sm:$0xff]
        %v256 = vld [vmem:[%s250 + $0x10] sm:$0xff]
        %v257 = vld [vmem:[%s250 + $0x18] sm:$0xff]
        %v258 = vld [vmem:[%s250 + $0x20] sm:$0xff]
        %v259 = vld [vmem:[%s250 + $0x28] sm:$0xff]
        %v260 = vld [vmem:[%s250 + $0x30] sm:$0xff]
        %v261 = vld [vmem:[%s250 + $0x38] sm:$0xff]
        %v262 = vld [vmem:[%s250 + $0x40] sm:$0xff]
        %v263 = vld [vmem:[%s250 + $0x48] sm:$0xff]
        %v264 = vld [vmem:[%s250 + $0x50] sm:$0xff]
        %v265 = vld [vmem:[%s250 + $0x58] sm:$0xff]
        %v266 = vld [vmem:[%s250 + $0x60] sm:$0xff]
        %v267 = vld [vmem:[%s250 + $0x68] sm:$0xff]
        %v268 = vld [vmem:[%s250 + $0x70] sm:$0xff]
        %v269 = vld [vmem:[%s250 + $0x78] sm:$0xff]
        %v270 = vld [vmem:[%s250 + $0x80] sm:$0xff]
        %v271 = vld [vmem:[%s250 + $0x88] sm:$0xff]
        %v272 = vld [vmem:[%s250 + $0x90] sm:$0xff]
        %v273 = vld [vmem:[%s250 + $0x98] sm:$0xff]
        %v274 = vld [vmem:[%s250 + $0xa0] sm:$0xff]
        %v275 = vld [vmem:[%s250 + $0xa8] sm:$0xff]
        %v276 = vld [vmem:[%s250 + $0xb0] sm:$0xff]
        %v277 = vld [vmem:[%s250 + $0xb8] sm:$0xff]
        %v278 = vld [vmem:[%s250 + $0xc0] sm:$0xff]
        %v279 = vpack.c.bf16 %v255, %v254
        %v280 = vpack.c.bf16 %v257, %v256
        %v281 = vpack.c.bf16 %v259, %v258
        %v282 = vpack.c.bf16 %v261, %v260
        %v283 = vpack.c.bf16 %v263, %v262
        %v284 = vpack.c.bf16 %v265, %v264
        %v285 = vpack.c.bf16 %v267, %v266
        %v286 = vpack.c.bf16 %v269, %v268
        %v287 = vpack.c.bf16 %v271, %v270
        %v288 = vpack.c.bf16 %v273, %v272
        %v289 = vpack.c.bf16 %v275, %v274
        %v290 = vpack.c.bf16 %v277, %v276
        %v291 = vpack.c.bf16 %v278, %v278
        %v292 = vld [vmem:[%s1] sm:$0xf]
        %v293 = vld [vmem:[%s1 + $0x4] sm:$0xf]
        %v294 = vld [vmem:[%s1 + $0x8] sm:$0xf]
        %v295 = vld [vmem:[%s1 + $0xc] sm:$0xf]
        %v296 = vld [vmem:[%s1 + $0x10] sm:$0xf]
        %v297 = vld [vmem:[%s1 + $0x14] sm:$0xf]
        %v298 = vld [vmem:[%s1 + $0x18] sm:$0xf]
        %v299 = vld [vmem:[%s1 + $0x1c] sm:$0xf]
        %v300 = vld [vmem:[%s4] sm:$0x1]
        %v302 = vperm.slane %v300, 0
        %v312 = vunpack.c.l.b16 %v292
        %v313 = vunpack.c.l.b16 %v293
        %v314 = vunpack.c.l.b16 %v294
        %v315 = vunpack.c.l.b16 %v295
        %v316 = vunpack.c.l.b16 %v296
        %v317 = vunpack.c.l.b16 %v297
        %v318 = vunpack.c.l.b16 %v298
        %v319 = vunpack.c.l.b16 %v299
        %v320 = vpack.c.b16 %v313, %v312
        %v321 = vpack.c.b16 %v315, %v314
        %v322 = vpack.c.b16 %v317, %v316
        %v323 = vpack.c.b16 %v319, %v318
        %vm328 = vcmask 523264
        %v330 = vsel %vm328, %v279, 0
        %v333 = vsel %vm328, %v280, 0
        %v336 = vsel %vm328, %v281, 0
        %v339 = vsel %vm328, %v282, 0
        %v342 = vsel %vm328, %v283, 0
        %v345 = vsel %vm328, %v284, 0
        %v348 = vsel %vm328, %v285, 0
        %v351 = vsel %vm328, %v286, 0
        %v354 = vsel %vm328, %v287, 0
        %v357 = vsel %vm328, %v288, 0
        %v360 = vsel %vm328, %v289, 0
        %v363 = vsel %vm328, %v290, 0
        %v366 = vsel %vm328, %v291, 0
        %368 = vmatpush.bf16.msra.mxu0 0
        %369 = vmatpush.bf16.msra.mxu0 0
        %370 = vmatpush.bf16.msra.mxu0 0
        %371 = vmatpush.bf16.msra.mxu0 0
        %372 = vmatpush.bf16.msra.mxu0 %v323
        %373 = vmatpush.bf16.msra.mxu0 %v322
        %374 = vmatpush.bf16.msra.mxu0 %v321
        %375 = vmatpush.bf16.msra.mxu0 %v320
        %376 = vmatmul.bf16.gmra.mxu0 %v330
        %v377 = vpop.f32.mrf.mxu0
        %v378 = vadd.f32 %v302, %v377
        %v379 = vpop.f32.mrf.mxu0
        %v380 = vadd.f32 %v302, %v379
        %381 = vmatmul.bf16.gmra.mxu0 %v333
        %v382 = vpop.f32.mrf.mxu0
        %v383 = vadd.f32 %v302, %v382
        %v384 = vpop.f32.mrf.mxu0
        %v385 = vadd.f32 %v302, %v384
        %386 = vmatmul.bf16.gmra.mxu0 %v336
        %v387 = vpop.f32.mrf.mxu0
        %v388 = vadd.f32 %v302, %v387
        %v389 = vpop.f32.mrf.mxu0
        %v390 = vadd.f32 %v302, %v389
        %391 = vmatmul.bf16.gmra.mxu0 %v339
        %v392 = vpop.f32.mrf.mxu0
        %v393 = vadd.f32 %v302, %v392
        %v394 = vpop.f32.mrf.mxu0
        %v395 = vadd.f32 %v302, %v394
        %396 = vmatmul.bf16.gmra.mxu0 %v342
        %v397 = vpop.f32.mrf.mxu0
        %v398 = vadd.f32 %v302, %v397
        %v399 = vpop.f32.mrf.mxu0
        %v400 = vadd.f32 %v302, %v399
        %401 = vmatmul.bf16.gmra.mxu0 %v345
        %v402 = vpop.f32.mrf.mxu0
        %v403 = vadd.f32 %v302, %v402
        %v404 = vpop.f32.mrf.mxu0
        %v405 = vadd.f32 %v302, %v404
        %406 = vmatmul.bf16.gmra.mxu0 %v348
        %v407 = vpop.f32.mrf.mxu0
        %v408 = vadd.f32 %v302, %v407
        %v409 = vpop.f32.mrf.mxu0
        %v410 = vadd.f32 %v302, %v409
        %411 = vmatmul.bf16.gmra.mxu0 %v351
        %v412 = vpop.f32.mrf.mxu0
        %v413 = vadd.f32 %v302, %v412
        %v414 = vpop.f32.mrf.mxu0
        %v415 = vadd.f32 %v302, %v414
        %416 = vmatmul.bf16.gmra.mxu0 %v354
        %v417 = vpop.f32.mrf.mxu0
        %v418 = vadd.f32 %v302, %v417
        %v419 = vpop.f32.mrf.mxu0
        %v420 = vadd.f32 %v302, %v419
        %421 = vmatmul.bf16.gmra.mxu0 %v357
        %v422 = vpop.f32.mrf.mxu0
        %v423 = vadd.f32 %v302, %v422
        %v424 = vpop.f32.mrf.mxu0
        %v425 = vadd.f32 %v302, %v424
        %426 = vmatmul.bf16.gmra.mxu0 %v360
        %v427 = vpop.f32.mrf.mxu0
        %v428 = vadd.f32 %v302, %v427
        %v429 = vpop.f32.mrf.mxu0
        %v430 = vadd.f32 %v302, %v429
        %431 = vmatmul.bf16.gmra.mxu0 %v363
        %v432 = vpop.f32.mrf.mxu0
        %v433 = vadd.f32 %v302, %v432
        %v434 = vpop.f32.mrf.mxu0
        %v435 = vadd.f32 %v302, %v434
        %436 = vmatmul.bf16.gmra.mxu0 %v366
        %v437 = vpop.f32.mrf.mxu0
        %v438 = vadd.f32 %v302, %v437
        %v439 = vpop.f32.mrf.mxu0
        %440 = vdwg.mxu0
        %v441 = vmax.f32 %v378, 0.0
        %v442 = vmax.f32 %v380, 0.0
        %v443 = vmax.f32 %v383, 0.0
        %v444 = vmax.f32 %v385, 0.0
        %v445 = vmax.f32 %v388, 0.0
        %v446 = vmax.f32 %v390, 0.0
        %v447 = vmax.f32 %v393, 0.0
        %v448 = vmax.f32 %v395, 0.0
        %v449 = vmax.f32 %v398, 0.0
        %v450 = vmax.f32 %v400, 0.0
        %v451 = vmax.f32 %v403, 0.0
        %v452 = vmax.f32 %v405, 0.0
        %v453 = vmax.f32 %v408, 0.0
        %v454 = vmax.f32 %v410, 0.0
        %v455 = vmax.f32 %v413, 0.0
        %v456 = vmax.f32 %v415, 0.0
        %v457 = vmax.f32 %v418, 0.0
        %v458 = vmax.f32 %v420, 0.0
        %v459 = vmax.f32 %v423, 0.0
        %v460 = vmax.f32 %v425, 0.0
        %v461 = vmax.f32 %v428, 0.0
        %v462 = vmax.f32 %v430, 0.0
        %v463 = vmax.f32 %v433, 0.0
        %v464 = vmax.f32 %v435, 0.0
        %v465 = vmax.f32 %v438, 0.0
        %466 = vadd.xlane.f32.xlu0 %v441
        %v467 = vpop.xlane.xlu0 %466
        %468 = vadd.xlane.f32.xlu0 %v442
        %v469 = vpop.xlane.xlu0 %468
        %470 = vadd.xlane.f32.xlu0 %v443
        %v471 = vpop.xlane.xlu0 %470
        %472 = vadd.xlane.f32.xlu0 %v444
        %v473 = vpop.xlane.xlu0 %472
        %474 = vadd.xlane.f32.xlu0 %v445
        %v475 = vpop.xlane.xlu0 %474
        %476 = vadd.xlane.f32.xlu0 %v446
        %v477 = vpop.xlane.xlu0 %476
        %478 = vadd.xlane.f32.xlu0 %v447
        %v479 = vpop.xlane.xlu0 %478
        %480 = vadd.xlane.f32.xlu0 %v448
        %v481 = vpop.xlane.xlu0 %480
        %482 = vadd.xlane.f32.xlu0 %v449
        %v483 = vpop.xlane.xlu0 %482
        %484 = vadd.xlane.f32.xlu0 %v450
        %v485 = vpop.xlane.xlu0 %484
        %486 = vadd.xlane.f32.xlu0 %v451
        %v487 = vpop.xlane.xlu0 %486
        %488 = vadd.xlane.f32.xlu0 %v452
        %v489 = vpop.xlane.xlu0 %488
        %490 = vadd.xlane.f32.xlu0 %v453
        %v491 = vpop.xlane.xlu0 %490
        %492 = vadd.xlane.f32.xlu0 %v454
        %v493 = vpop.xlane.xlu0 %492
        %494 = vadd.xlane.f32.xlu0 %v455
        %v495 = vpop.xlane.xlu0 %494
        %496 = vadd.xlane.f32.xlu0 %v456
        %v497 = vpop.xlane.xlu0 %496
        %498 = vadd.xlane.f32.xlu0 %v457
        %v499 = vpop.xlane.xlu0 %498
        %500 = vadd.xlane.f32.xlu0 %v458
        %v501 = vpop.xlane.xlu0 %500
        %502 = vadd.xlane.f32.xlu0 %v459
        %v503 = vpop.xlane.xlu0 %502
        %504 = vadd.xlane.f32.xlu0 %v460
        %v505 = vpop.xlane.xlu0 %504
        %506 = vadd.xlane.f32.xlu0 %v461
        %v507 = vpop.xlane.xlu0 %506
        %508 = vadd.xlane.f32.xlu0 %v462
        %v509 = vpop.xlane.xlu0 %508
        %510 = vadd.xlane.f32.xlu0 %v463
        %v511 = vpop.xlane.xlu0 %510
        %512 = vadd.xlane.f32.xlu0 %v464
        %v513 = vpop.xlane.xlu0 %512
        %514 = vadd.xlane.f32.xlu0 %v465
        %v515 = vpop.xlane.xlu0 %514
        %v516 = vmul.f32 %v441, %v441
        %v517 = vmul.f32 %v442, %v442
        %v518 = vmul.f32 %v443, %v443
        %v519 = vmul.f32 %v444, %v444
        %v520 = vmul.f32 %v445, %v445
        %v521 = vmul.f32 %v446, %v446
        %v522 = vmul.f32 %v447, %v447
        %v523 = vmul.f32 %v448, %v448
        %v524 = vmul.f32 %v449, %v449
        %v525 = vmul.f32 %v450, %v450
        %v526 = vmul.f32 %v451, %v451
        %v527 = vmul.f32 %v452, %v452
        %v528 = vmul.f32 %v453, %v453
        %v529 = vmul.f32 %v454, %v454
        %v530 = vmul.f32 %v455, %v455
        %v531 = vmul.f32 %v456, %v456
        %v532 = vmul.f32 %v457, %v457
        %v533 = vmul.f32 %v458, %v458
        %v534 = vmul.f32 %v459, %v459
        %v535 = vmul.f32 %v460, %v460
        %v536 = vmul.f32 %v461, %v461
        %v537 = vmul.f32 %v462, %v462
        %v538 = vmul.f32 %v463, %v463
        %v539 = vmul.f32 %v464, %v464
        %v540 = vmul.f32 %v465, %v465
        %541 = vadd.xlane.f32.xlu0 %v516
        %v542 = vpop.xlane.xlu0 %541
        %543 = vadd.xlane.f32.xlu0 %v517
        %v544 = vpop.xlane.xlu0 %543
        %545 = vadd.xlane.f32.xlu0 %v518
        %v546 = vpop.xlane.xlu0 %545
        %547 = vadd.xlane.f32.xlu0 %v519
        %v548 = vpop.xlane.xlu0 %547
        %549 = vadd.xlane.f32.xlu0 %v520
        %v550 = vpop.xlane.xlu0 %549
        %551 = vadd.xlane.f32.xlu0 %v521
        %v552 = vpop.xlane.xlu0 %551
        %553 = vadd.xlane.f32.xlu0 %v522
        %v554 = vpop.xlane.xlu0 %553
        %555 = vadd.xlane.f32.xlu0 %v523
        %v556 = vpop.xlane.xlu0 %555
        %557 = vadd.xlane.f32.xlu0 %v524
        %v558 = vpop.xlane.xlu0 %557
        %559 = vadd.xlane.f32.xlu0 %v525
        %v560 = vpop.xlane.xlu0 %559
        %561 = vadd.xlane.f32.xlu0 %v526
        %v562 = vpop.xlane.xlu0 %561
        %563 = vadd.xlane.f32.xlu0 %v527
        %v564 = vpop.xlane.xlu0 %563
        %565 = vadd.xlane.f32.xlu0 %v528
        %v566 = vpop.xlane.xlu0 %565
        %567 = vadd.xlane.f32.xlu0 %v529
        %v568 = vpop.xlane.xlu0 %567
        %569 = vadd.xlane.f32.xlu0 %v530
        %v570 = vpop.xlane.xlu0 %569
        %571 = vadd.xlane.f32.xlu0 %v531
        %v572 = vpop.xlane.xlu0 %571
        %573 = vadd.xlane.f32.xlu0 %v532
        %v574 = vpop.xlane.xlu0 %573
        %575 = vadd.xlane.f32.xlu0 %v533
        %v576 = vpop.xlane.xlu0 %575
        %577 = vadd.xlane.f32.xlu0 %v534
        %v578 = vpop.xlane.xlu0 %577
        %579 = vadd.xlane.f32.xlu0 %v535
        %v580 = vpop.xlane.xlu0 %579
        %581 = vadd.xlane.f32.xlu0 %v536
        %v582 = vpop.xlane.xlu0 %581
        %583 = vadd.xlane.f32.xlu0 %v537
        %v584 = vpop.xlane.xlu0 %583
        %585 = vadd.xlane.f32.xlu0 %v538
        %v586 = vpop.xlane.xlu0 %585
        %587 = vadd.xlane.f32.xlu0 %v539
        %v588 = vpop.xlane.xlu0 %587
        %589 = vadd.xlane.f32.xlu0 %v540
        %v590 = vpop.xlane.xlu0 %589
        %v591 = vmul.f32 %v467, 0.0078125
        %v592 = vmul.f32 %v469, 0.0078125
        %v593 = vmul.f32 %v471, 0.0078125
        %v594 = vmul.f32 %v473, 0.0078125
        %v595 = vmul.f32 %v475, 0.0078125
        %v596 = vmul.f32 %v477, 0.0078125
        %v597 = vmul.f32 %v479, 0.0078125
        %v598 = vmul.f32 %v481, 0.0078125
        %v599 = vmul.f32 %v483, 0.0078125
        %v600 = vmul.f32 %v485, 0.0078125
        %v601 = vmul.f32 %v487, 0.0078125
        %v602 = vmul.f32 %v489, 0.0078125
        %v603 = vmul.f32 %v491, 0.0078125
        %v604 = vmul.f32 %v493, 0.0078125
        %v605 = vmul.f32 %v495, 0.0078125
        %v606 = vmul.f32 %v497, 0.0078125
        %v607 = vmul.f32 %v499, 0.0078125
        %v608 = vmul.f32 %v501, 0.0078125
        %v609 = vmul.f32 %v503, 0.0078125
        %v610 = vmul.f32 %v505, 0.0078125
        %v611 = vmul.f32 %v507, 0.0078125
        %v612 = vmul.f32 %v509, 0.0078125
        %v613 = vmul.f32 %v511, 0.0078125
        %v614 = vmul.f32 %v513, 0.0078125
        %v615 = vmul.f32 %v515, 0.0078125
        %v616 = vmul.f32 %v542, 0.0078125
        %v617 = vmul.f32 %v544, 0.0078125
        %v618 = vmul.f32 %v546, 0.0078125
        %v619 = vmul.f32 %v548, 0.0078125
        %v620 = vmul.f32 %v550, 0.0078125
        %v621 = vmul.f32 %v552, 0.0078125
        %v622 = vmul.f32 %v554, 0.0078125
        %v623 = vmul.f32 %v556, 0.0078125
        %v624 = vmul.f32 %v558, 0.0078125
        %v625 = vmul.f32 %v560, 0.0078125
        %v626 = vmul.f32 %v562, 0.0078125
        %v627 = vmul.f32 %v564, 0.0078125
        %v628 = vmul.f32 %v566, 0.0078125
        %v629 = vmul.f32 %v568, 0.0078125
        %v630 = vmul.f32 %v570, 0.0078125
        %v631 = vmul.f32 %v572, 0.0078125
        %v632 = vmul.f32 %v574, 0.0078125
        %v633 = vmul.f32 %v576, 0.0078125
        %v634 = vmul.f32 %v578, 0.0078125
        %v635 = vmul.f32 %v580, 0.0078125
        %v636 = vmul.f32 %v582, 0.0078125
        %v637 = vmul.f32 %v584, 0.0078125
        %v638 = vmul.f32 %v586, 0.0078125
        %v639 = vmul.f32 %v588, 0.0078125
        %v640 = vmul.f32 %v590, 0.0078125
        %v641 = vmul.f32 %v591, %v591
        %v642 = vmul.f32 %v592, %v592
        %v643 = vmul.f32 %v593, %v593
        %v644 = vmul.f32 %v594, %v594
        %v645 = vmul.f32 %v595, %v595
        %v646 = vmul.f32 %v596, %v596
        %v647 = vmul.f32 %v597, %v597
        %v648 = vmul.f32 %v598, %v598
        %v649 = vmul.f32 %v599, %v599
        %v650 = vmul.f32 %v600, %v600
        %v651 = vmul.f32 %v601, %v601
        %v652 = vmul.f32 %v602, %v602
        %v653 = vmul.f32 %v603, %v603
        %v654 = vmul.f32 %v604, %v604
        %v655 = vmul.f32 %v605, %v605
        %v656 = vmul.f32 %v606, %v606
        %v657 = vmul.f32 %v607, %v607
        %v658 = vmul.f32 %v608, %v608
        %v659 = vmul.f32 %v609, %v609
        %v660 = vmul.f32 %v610, %v610
        %v661 = vmul.f32 %v611, %v611
        %v662 = vmul.f32 %v612, %v612
        %v663 = vmul.f32 %v613, %v613
        %v664 = vmul.f32 %v614, %v614
        %v665 = vmul.f32 %v615, %v615
        %v666 = vsub.f32 %v616, %v641
        %v667 = vsub.f32 %v617, %v642
        %v668 = vsub.f32 %v618, %v643
        %v669 = vsub.f32 %v619, %v644
        %v670 = vsub.f32 %v620, %v645
        %v671 = vsub.f32 %v621, %v646
        %v672 = vsub.f32 %v622, %v647
        %v673 = vsub.f32 %v623, %v648
        %v674 = vsub.f32 %v624, %v649
        %v675 = vsub.f32 %v625, %v650
        %v676 = vsub.f32 %v626, %v651
        %v677 = vsub.f32 %v627, %v652
        %v678 = vsub.f32 %v628, %v653
        %v679 = vsub.f32 %v629, %v654
        %v680 = vsub.f32 %v630, %v655
        %v681 = vsub.f32 %v631, %v656
        %v682 = vsub.f32 %v632, %v657
        %v683 = vsub.f32 %v633, %v658
        %v684 = vsub.f32 %v634, %v659
        %v685 = vsub.f32 %v635, %v660
        %v686 = vsub.f32 %v636, %v661
        %v687 = vsub.f32 %v637, %v662
        %v688 = vsub.f32 %v638, %v663
        %v689 = vsub.f32 %v639, %v664
        %v690 = vsub.f32 %v640, %v665
        %v691 = vmax.f32 %v666, 0.0
        %v692 = vmax.f32 %v667, 0.0
        %v693 = vmax.f32 %v668, 0.0
        %v694 = vmax.f32 %v669, 0.0
        %v695 = vmax.f32 %v670, 0.0
        %v696 = vmax.f32 %v671, 0.0
        %v697 = vmax.f32 %v672, 0.0
        %v698 = vmax.f32 %v673, 0.0
        %v699 = vmax.f32 %v674, 0.0
        %v700 = vmax.f32 %v675, 0.0
        %v701 = vmax.f32 %v676, 0.0
        %v702 = vmax.f32 %v677, 0.0
        %v703 = vmax.f32 %v678, 0.0
        %v704 = vmax.f32 %v679, 0.0
        %v705 = vmax.f32 %v680, 0.0
        %v706 = vmax.f32 %v681, 0.0
        %v707 = vmax.f32 %v682, 0.0
        %v708 = vmax.f32 %v683, 0.0
        %v709 = vmax.f32 %v684, 0.0
        %v710 = vmax.f32 %v685, 0.0
        %v711 = vmax.f32 %v686, 0.0
        %v712 = vmax.f32 %v687, 0.0
        %v713 = vmax.f32 %v688, 0.0
        %v714 = vmax.f32 %v689, 0.0
        %v715 = vmax.f32 %v690, 0.0
        %v716 = vsub.f32 %v441, %v591
        %v717 = vsub.f32 %v442, %v592
        %v718 = vsub.f32 %v443, %v593
        %v719 = vsub.f32 %v444, %v594
        %v720 = vsub.f32 %v445, %v595
        %v721 = vsub.f32 %v446, %v596
        %v722 = vsub.f32 %v447, %v597
        %v723 = vsub.f32 %v448, %v598
        %v724 = vsub.f32 %v449, %v599
        %v725 = vsub.f32 %v450, %v600
        %v726 = vsub.f32 %v451, %v601
        %v727 = vsub.f32 %v452, %v602
        %v728 = vsub.f32 %v453, %v603
        %v729 = vsub.f32 %v454, %v604
        %v730 = vsub.f32 %v455, %v605
        %v731 = vsub.f32 %v456, %v606
        %v732 = vsub.f32 %v457, %v607
        %v733 = vsub.f32 %v458, %v608
        %v734 = vsub.f32 %v459, %v609
        %v735 = vsub.f32 %v460, %v610
        %v736 = vsub.f32 %v461, %v611
        %v737 = vsub.f32 %v462, %v612
        %v738 = vsub.f32 %v463, %v613
        %v739 = vsub.f32 %v464, %v614
        %v740 = vsub.f32 %v465, %v615
        %v741 = vadd.f32 %v691, 1e-05
        %v742 = vadd.f32 %v692, 1e-05
        %v743 = vadd.f32 %v693, 1e-05
        %v744 = vadd.f32 %v694, 1e-05
        %v745 = vadd.f32 %v695, 1e-05
        %v746 = vadd.f32 %v696, 1e-05
        %v747 = vadd.f32 %v697, 1e-05
        %v748 = vadd.f32 %v698, 1e-05
        %v749 = vadd.f32 %v699, 1e-05
        %v750 = vadd.f32 %v700, 1e-05
        %v751 = vadd.f32 %v701, 1e-05
        %v752 = vadd.f32 %v702, 1e-05
        %v753 = vadd.f32 %v703, 1e-05
        %v754 = vadd.f32 %v704, 1e-05
        %v755 = vadd.f32 %v705, 1e-05
        %v756 = vadd.f32 %v706, 1e-05
        %v757 = vadd.f32 %v707, 1e-05
        %v758 = vadd.f32 %v708, 1e-05
        %v759 = vadd.f32 %v709, 1e-05
        %v760 = vadd.f32 %v710, 1e-05
        %v761 = vadd.f32 %v711, 1e-05
        %v762 = vadd.f32 %v712, 1e-05
        %v763 = vadd.f32 %v713, 1e-05
        %v764 = vadd.f32 %v714, 1e-05
        %v765 = vadd.f32 %v715, 1e-05
        %v766 = vrsqrt.pop %v741
        %v767 = vmul.f32 %v766, %v741
        %v768 = vmul.f32 %v767, %v766
        %v769 = vmul.f32 0.5, %v768
        %v770 = vsub.f32 1.5, %v769
        %v771 = vmul.f32 %v766, %v770
        %vm772 = vweird.f32 %v741
        %vm773 = vweird.f32 %v766
        %vm774 = vmor %vm772, %vm773
        %v775 = vsel %vm774, %v766, %v771
        %v776 = vrsqrt.pop %v742
        %v777 = vmul.f32 %v776, %v742
        %v778 = vmul.f32 %v777, %v776
        %v779 = vmul.f32 0.5, %v778
        %v780 = vsub.f32 1.5, %v779
        %v781 = vmul.f32 %v776, %v780
        %vm782 = vweird.f32 %v742
        %vm783 = vweird.f32 %v776
        %vm784 = vmor %vm782, %vm783
        %v785 = vsel %vm784, %v776, %v781
        %v786 = vrsqrt.pop %v743
        %v787 = vmul.f32 %v786, %v743
        %v788 = vmul.f32 %v787, %v786
        %v789 = vmul.f32 0.5, %v788
        %v790 = vsub.f32 1.5, %v789
        %v791 = vmul.f32 %v786, %v790
        %vm792 = vweird.f32 %v743
        %vm793 = vweird.f32 %v786
        %vm794 = vmor %vm792, %vm793
        %v795 = vsel %vm794, %v786, %v791
        %v796 = vrsqrt.pop %v744
        %v797 = vmul.f32 %v796, %v744
        %v798 = vmul.f32 %v797, %v796
        %v799 = vmul.f32 0.5, %v798
        %v800 = vsub.f32 1.5, %v799
        %v801 = vmul.f32 %v796, %v800
        %vm802 = vweird.f32 %v744
        %vm803 = vweird.f32 %v796
        %vm804 = vmor %vm802, %vm803
        %v805 = vsel %vm804, %v796, %v801
        %v806 = vrsqrt.pop %v745
        %v807 = vmul.f32 %v806, %v745
        %v808 = vmul.f32 %v807, %v806
        %v809 = vmul.f32 0.5, %v808
        %v810 = vsub.f32 1.5, %v809
        %v811 = vmul.f32 %v806, %v810
        %vm812 = vweird.f32 %v745
        %vm813 = vweird.f32 %v806
        %vm814 = vmor %vm812, %vm813
        %v815 = vsel %vm814, %v806, %v811
        %v816 = vrsqrt.pop %v746
        %v817 = vmul.f32 %v816, %v746
        %v818 = vmul.f32 %v817, %v816
        %v819 = vmul.f32 0.5, %v818
        %v820 = vsub.f32 1.5, %v819
        %v821 = vmul.f32 %v816, %v820
        %vm822 = vweird.f32 %v746
        %vm823 = vweird.f32 %v816
        %vm824 = vmor %vm822, %vm823
        %v825 = vsel %vm824, %v816, %v821
        %v826 = vrsqrt.pop %v747
        %v827 = vmul.f32 %v826, %v747
        %v828 = vmul.f32 %v827, %v826
        %v829 = vmul.f32 0.5, %v828
        %v830 = vsub.f32 1.5, %v829
        %v831 = vmul.f32 %v826, %v830
        %vm832 = vweird.f32 %v747
        %vm833 = vweird.f32 %v826
        %vm834 = vmor %vm832, %vm833
        %v835 = vsel %vm834, %v826, %v831
        %v836 = vrsqrt.pop %v748
        %v837 = vmul.f32 %v836, %v748
        %v838 = vmul.f32 %v837, %v836
        %v839 = vmul.f32 0.5, %v838
        %v840 = vsub.f32 1.5, %v839
        %v841 = vmul.f32 %v836, %v840
        %vm842 = vweird.f32 %v748
        %vm843 = vweird.f32 %v836
        %vm844 = vmor %vm842, %vm843
        %v845 = vsel %vm844, %v836, %v841
        %v846 = vrsqrt.pop %v749
        %v847 = vmul.f32 %v846, %v749
        %v848 = vmul.f32 %v847, %v846
        %v849 = vmul.f32 0.5, %v848
        %v850 = vsub.f32 1.5, %v849
        %v851 = vmul.f32 %v846, %v850
        %vm852 = vweird.f32 %v749
        %vm853 = vweird.f32 %v846
        %vm854 = vmor %vm852, %vm853
        %v855 = vsel %vm854, %v846, %v851
        %v856 = vrsqrt.pop %v750
        %v857 = vmul.f32 %v856, %v750
        %v858 = vmul.f32 %v857, %v856
        %v859 = vmul.f32 0.5, %v858
        %v860 = vsub.f32 1.5, %v859
        %v861 = vmul.f32 %v856, %v860
        %vm862 = vweird.f32 %v750
        %vm863 = vweird.f32 %v856
        %vm864 = vmor %vm862, %vm863
        %v865 = vsel %vm864, %v856, %v861
        %v866 = vrsqrt.pop %v751
        %v867 = vmul.f32 %v866, %v751
        %v868 = vmul.f32 %v867, %v866
        %v869 = vmul.f32 0.5, %v868
        %v870 = vsub.f32 1.5, %v869
        %v871 = vmul.f32 %v866, %v870
        %vm872 = vweird.f32 %v751
        %vm873 = vweird.f32 %v866
        %vm874 = vmor %vm872, %vm873
        %v875 = vsel %vm874, %v866, %v871
        %v876 = vrsqrt.pop %v752
        %v877 = vmul.f32 %v876, %v752
        %v878 = vmul.f32 %v877, %v876
        %v879 = vmul.f32 0.5, %v878
        %v880 = vsub.f32 1.5, %v879
        %v881 = vmul.f32 %v876, %v880
        %vm882 = vweird.f32 %v752
        %vm883 = vweird.f32 %v876
        %vm884 = vmor %vm882, %vm883
        %v885 = vsel %vm884, %v876, %v881
        %v886 = vrsqrt.pop %v753
        %v887 = vmul.f32 %v886, %v753
        %v888 = vmul.f32 %v887, %v886
        %v889 = vmul.f32 0.5, %v888
        %v890 = vsub.f32 1.5, %v889
        %v891 = vmul.f32 %v886, %v890
        %vm892 = vweird.f32 %v753
        %vm893 = vweird.f32 %v886
        %vm894 = vmor %vm892, %vm893
        %v895 = vsel %vm894, %v886, %v891
        %v896 = vrsqrt.pop %v754
        %v897 = vmul.f32 %v896, %v754
        %v898 = vmul.f32 %v897, %v896
        %v899 = vmul.f32 0.5, %v898
        %v900 = vsub.f32 1.5, %v899
        %v901 = vmul.f32 %v896, %v900
        %vm902 = vweird.f32 %v754
        %vm903 = vweird.f32 %v896
        %vm904 = vmor %vm902, %vm903
        %v905 = vsel %vm904, %v896, %v901
        %v906 = vrsqrt.pop %v755
        %v907 = vmul.f32 %v906, %v755
        %v908 = vmul.f32 %v907, %v906
        %v909 = vmul.f32 0.5, %v908
        %v910 = vsub.f32 1.5, %v909
        %v911 = vmul.f32 %v906, %v910
        %vm912 = vweird.f32 %v755
        %vm913 = vweird.f32 %v906
        %vm914 = vmor %vm912, %vm913
        %v915 = vsel %vm914, %v906, %v911
        %v916 = vrsqrt.pop %v756
        %v917 = vmul.f32 %v916, %v756
        %v918 = vmul.f32 %v917, %v916
        %v919 = vmul.f32 0.5, %v918
        %v920 = vsub.f32 1.5, %v919
        %v921 = vmul.f32 %v916, %v920
        %vm922 = vweird.f32 %v756
        %vm923 = vweird.f32 %v916
        %vm924 = vmor %vm922, %vm923
        %v925 = vsel %vm924, %v916, %v921
        %v926 = vrsqrt.pop %v757
        %v927 = vmul.f32 %v926, %v757
        %v928 = vmul.f32 %v927, %v926
        %v929 = vmul.f32 0.5, %v928
        %v930 = vsub.f32 1.5, %v929
        %v931 = vmul.f32 %v926, %v930
        %vm932 = vweird.f32 %v757
        %vm933 = vweird.f32 %v926
        %vm934 = vmor %vm932, %vm933
        %v935 = vsel %vm934, %v926, %v931
        %v936 = vrsqrt.pop %v758
        %v937 = vmul.f32 %v936, %v758
        %v938 = vmul.f32 %v937, %v936
        %v939 = vmul.f32 0.5, %v938
        %v940 = vsub.f32 1.5, %v939
        %v941 = vmul.f32 %v936, %v940
        %vm942 = vweird.f32 %v758
        %vm943 = vweird.f32 %v936
        %vm944 = vmor %vm942, %vm943
        %v945 = vsel %vm944, %v936, %v941
        %v946 = vrsqrt.pop %v759
        %v947 = vmul.f32 %v946, %v759
        %v948 = vmul.f32 %v947, %v946
        %v949 = vmul.f32 0.5, %v948
        %v950 = vsub.f32 1.5, %v949
        %v951 = vmul.f32 %v946, %v950
        %vm952 = vweird.f32 %v759
        %vm953 = vweird.f32 %v946
        %vm954 = vmor %vm952, %vm953
        %v955 = vsel %vm954, %v946, %v951
        %v956 = vrsqrt.pop %v760
        %v957 = vmul.f32 %v956, %v760
        %v958 = vmul.f32 %v957, %v956
        %v959 = vmul.f32 0.5, %v958
        %v960 = vsub.f32 1.5, %v959
        %v961 = vmul.f32 %v956, %v960
        %vm962 = vweird.f32 %v760
        %vm963 = vweird.f32 %v956
        %vm964 = vmor %vm962, %vm963
        %v965 = vsel %vm964, %v956, %v961
        %v966 = vrsqrt.pop %v761
        %v967 = vmul.f32 %v966, %v761
        %v968 = vmul.f32 %v967, %v966
        %v969 = vmul.f32 0.5, %v968
        %v970 = vsub.f32 1.5, %v969
        %v971 = vmul.f32 %v966, %v970
        %vm972 = vweird.f32 %v761
        %vm973 = vweird.f32 %v966
        %vm974 = vmor %vm972, %vm973
        %v975 = vsel %vm974, %v966, %v971
        %v976 = vrsqrt.pop %v762
        %v977 = vmul.f32 %v976, %v762
        %v978 = vmul.f32 %v977, %v976
        %v979 = vmul.f32 0.5, %v978
        %v980 = vsub.f32 1.5, %v979
        %v981 = vmul.f32 %v976, %v980
        %vm982 = vweird.f32 %v762
        %vm983 = vweird.f32 %v976
        %vm984 = vmor %vm982, %vm983
        %v985 = vsel %vm984, %v976, %v981
        %v986 = vrsqrt.pop %v763
        %v987 = vmul.f32 %v986, %v763
        %v988 = vmul.f32 %v987, %v986
        %v989 = vmul.f32 0.5, %v988
        %v990 = vsub.f32 1.5, %v989
        %v991 = vmul.f32 %v986, %v990
        %vm992 = vweird.f32 %v763
        %vm993 = vweird.f32 %v986
        %vm994 = vmor %vm992, %vm993
        %v995 = vsel %vm994, %v986, %v991
        %v996 = vrsqrt.pop %v764
        %v997 = vmul.f32 %v996, %v764
        %v998 = vmul.f32 %v997, %v996
        %v999 = vmul.f32 0.5, %v998
        %v1000 = vsub.f32 1.5, %v999
        %v1001 = vmul.f32 %v996, %v1000
        %vm1002 = vweird.f32 %v764
        %vm1003 = vweird.f32 %v996
        %vm1004 = vmor %vm1002, %vm1003
        %v1005 = vsel %vm1004, %v996, %v1001
        %v1006 = vrsqrt.pop %v765
        %v1007 = vmul.f32 %v1006, %v765
        %v1008 = vmul.f32 %v1007, %v1006
        %v1009 = vmul.f32 0.5, %v1008
        %v1010 = vsub.f32 1.5, %v1009
        %v1011 = vmul.f32 %v1006, %v1010
        %vm1012 = vweird.f32 %v765
        %vm1013 = vweird.f32 %v1006
        %vm1014 = vmor %vm1012, %vm1013
        %v1015 = vsel %vm1014, %v1006, %v1011
        %v1016 = vmul.f32 %v716, %v775
        %v1017 = vmul.f32 %v717, %v785
        %v1018 = vmul.f32 %v718, %v795
        %v1019 = vmul.f32 %v719, %v805
        %v1020 = vmul.f32 %v720, %v815
        %v1021 = vmul.f32 %v721, %v825
        %v1022 = vmul.f32 %v722, %v835
        %v1023 = vmul.f32 %v723, %v845
        %v1024 = vmul.f32 %v724, %v855
        %v1025 = vmul.f32 %v725, %v865
        %v1026 = vmul.f32 %v726, %v875
        %v1027 = vmul.f32 %v727, %v885
        %v1028 = vmul.f32 %v728, %v895
        %v1029 = vmul.f32 %v729, %v905
        %v1030 = vmul.f32 %v730, %v915
        %v1031 = vmul.f32 %v731, %v925
        %v1032 = vmul.f32 %v732, %v935
        %v1033 = vmul.f32 %v733, %v945
        %v1034 = vmul.f32 %v734, %v955
        %v1035 = vmul.f32 %v735, %v965
        %v1036 = vmul.f32 %v736, %v975
        %v1037 = vmul.f32 %v737, %v985
        %v1038 = vmul.f32 %v738, %v995
        %v1039 = vmul.f32 %v739, %v1005
        %v1040 = vmul.f32 %v740, %v1015
        %v1041 = vpack.c.bf16 %v1017, %v1016
        %v1042 = vpack.c.bf16 %v1019, %v1018
        %v1043 = vpack.c.bf16 %v1021, %v1020
        %v1044 = vpack.c.bf16 %v1023, %v1022
        %v1045 = vpack.c.bf16 %v1025, %v1024
        %v1046 = vpack.c.bf16 %v1027, %v1026
        %v1047 = vpack.c.bf16 %v1029, %v1028
        %v1048 = vpack.c.bf16 %v1031, %v1030
        %v1049 = vpack.c.bf16 %v1033, %v1032
        %v1050 = vpack.c.bf16 %v1035, %v1034
        %v1051 = vpack.c.bf16 %v1037, %v1036
        %v1052 = vpack.c.bf16 %v1039, %v1038
        %v1053 = vpack.c.bf16 %v1040, %v1040
        %v1054 = vld [vmem:[%s2] sm:$0xf]
        %v1055 = vld [vmem:[%s2 + $0x4] sm:$0xf]
        %v1056 = vld [vmem:[%s2 + $0x8] sm:$0xf]
        %v1057 = vld [vmem:[%s2 + $0xc] sm:$0xf]
        %v1058 = vld [vmem:[%s2 + $0x10] sm:$0xf]
        %v1059 = vld [vmem:[%s2 + $0x14] sm:$0xf]
        %v1060 = vld [vmem:[%s2 + $0x18] sm:$0xf]
        %v1061 = vld [vmem:[%s2 + $0x1c] sm:$0xf]
        %v1062 = vld [vmem:[%s2 + $0x20] sm:$0xf]
        %v1063 = vld [vmem:[%s2 + $0x24] sm:$0xf]
        %v1064 = vld [vmem:[%s2 + $0x28] sm:$0xf]
        %v1065 = vld [vmem:[%s2 + $0x2c] sm:$0xf]
        %v1066 = vld [vmem:[%s2 + $0x30] sm:$0xf]
        %v1067 = vld [vmem:[%s2 + $0x34] sm:$0xf]
        %v1068 = vld [vmem:[%s2 + $0x38] sm:$0xf]
        %v1069 = vld [vmem:[%s2 + $0x3c] sm:$0xf]
        %s1070 = scalar_lea.vmem %s4, 1
        %v1071 = vld [vmem:[%s1070] sm:$0x1]
        %v1073 = vperm.slane %v1071, 0
        %v1091 = vunpack.c.l.b16 %v1054
        %v1092 = vunpack.c.l.b16 %v1055
        %v1093 = vunpack.c.l.b16 %v1056
        %v1094 = vunpack.c.l.b16 %v1057
        %v1095 = vunpack.c.l.b16 %v1058
        %v1096 = vunpack.c.l.b16 %v1059
        %v1097 = vunpack.c.l.b16 %v1060
        %v1098 = vunpack.c.l.b16 %v1061
        %v1099 = vunpack.c.l.b16 %v1062
        %v1100 = vunpack.c.l.b16 %v1063
        %v1101 = vunpack.c.l.b16 %v1064
        %v1102 = vunpack.c.l.b16 %v1065
        %v1103 = vunpack.c.l.b16 %v1066
        %v1104 = vunpack.c.l.b16 %v1067
        %v1105 = vunpack.c.l.b16 %v1068
        %v1106 = vunpack.c.l.b16 %v1069
        %v1107 = vpack.c.b16 %v1092, %v1091
        %v1108 = vpack.c.b16 %v1094, %v1093
        %v1109 = vpack.c.b16 %v1096, %v1095
        %v1110 = vpack.c.b16 %v1098, %v1097
        %v1111 = vpack.c.b16 %v1100, %v1099
        %v1112 = vpack.c.b16 %v1102, %v1101
        %v1113 = vpack.c.b16 %v1104, %v1103
        %v1114 = vpack.c.b16 %v1106, %v1105
        %1123 = vmatpush.bf16.msra.mxu0 %v1114
        %1124 = vmatpush.bf16.msra.mxu0 %v1113
        %1125 = vmatpush.bf16.msra.mxu0 %v1112
        %1126 = vmatpush.bf16.msra.mxu0 %v1111
        %1127 = vmatpush.bf16.msra.mxu0 %v1110
        %1128 = vmatpush.bf16.msra.mxu0 %v1109
        %1129 = vmatpush.bf16.msra.mxu0 %v1108
        %1130 = vmatpush.bf16.msra.mxu0 %v1107
        %1131 = vmatmul.bf16.gmra.mxu0 %v1041
        %v1132 = vpop.f32.mrf.mxu0
        %v1133 = vadd.f32 %v1073, %v1132
        %v1134 = vpop.f32.mrf.mxu0
        %v1135 = vadd.f32 %v1073, %v1134
        %1136 = vmatmul.bf16.gmra.mxu0 %v1042
        %v1137 = vpop.f32.mrf.mxu0
        %v1138 = vadd.f32 %v1073, %v1137
        %v1139 = vpop.f32.mrf.mxu0
        %v1140 = vadd.f32 %v1073, %v1139
        %1141 = vmatmul.bf16.gmra.mxu0 %v1043
        %v1142 = vpop.f32.mrf.mxu0
        %v1143 = vadd.f32 %v1073, %v1142
        %v1144 = vpop.f32.mrf.mxu0
        %v1145 = vadd.f32 %v1073, %v1144
        %1146 = vmatmul.bf16.gmra.mxu0 %v1044
        %v1147 = vpop.f32.mrf.mxu0
        %v1148 = vadd.f32 %v1073, %v1147
        %v1149 = vpop.f32.mrf.mxu0
        %v1150 = vadd.f32 %v1073, %v1149
        %1151 = vmatmul.bf16.gmra.mxu0 %v1045
        %v1152 = vpop.f32.mrf.mxu0
        %v1153 = vadd.f32 %v1073, %v1152
        %v1154 = vpop.f32.mrf.mxu0
        %v1155 = vadd.f32 %v1073, %v1154
        %1156 = vmatmul.bf16.gmra.mxu0 %v1046
        %v1157 = vpop.f32.mrf.mxu0
        %v1158 = vadd.f32 %v1073, %v1157
        %v1159 = vpop.f32.mrf.mxu0
        %v1160 = vadd.f32 %v1073, %v1159
        %1161 = vmatmul.bf16.gmra.mxu0 %v1047
        %v1162 = vpop.f32.mrf.mxu0
        %v1163 = vadd.f32 %v1073, %v1162
        %v1164 = vpop.f32.mrf.mxu0
        %v1165 = vadd.f32 %v1073, %v1164
        %1166 = vmatmul.bf16.gmra.mxu0 %v1048
        %v1167 = vpop.f32.mrf.mxu0
        %v1168 = vadd.f32 %v1073, %v1167
        %v1169 = vpop.f32.mrf.mxu0
        %v1170 = vadd.f32 %v1073, %v1169
        %1171 = vmatmul.bf16.gmra.mxu0 %v1049
        %v1172 = vpop.f32.mrf.mxu0
        %v1173 = vadd.f32 %v1073, %v1172
        %v1174 = vpop.f32.mrf.mxu0
        %v1175 = vadd.f32 %v1073, %v1174
        %1176 = vmatmul.bf16.gmra.mxu0 %v1050
        %v1177 = vpop.f32.mrf.mxu0
        %v1178 = vadd.f32 %v1073, %v1177
        %v1179 = vpop.f32.mrf.mxu0
        %v1180 = vadd.f32 %v1073, %v1179
        %1181 = vmatmul.bf16.gmra.mxu0 %v1051
        %v1182 = vpop.f32.mrf.mxu0
        %v1183 = vadd.f32 %v1073, %v1182
        %v1184 = vpop.f32.mrf.mxu0
        %v1185 = vadd.f32 %v1073, %v1184
        %1186 = vmatmul.bf16.gmra.mxu0 %v1052
        %v1187 = vpop.f32.mrf.mxu0
        %v1188 = vadd.f32 %v1073, %v1187
        %v1189 = vpop.f32.mrf.mxu0
        %v1190 = vadd.f32 %v1073, %v1189
        %1191 = vmatmul.bf16.gmra.mxu0 %v1053
        %v1192 = vpop.f32.mrf.mxu0
        %v1193 = vadd.f32 %v1073, %v1192
        %v1194 = vpop.f32.mrf.mxu0
        %1195 = vdwg.mxu0
        %1196 = vadd.xlane.f32.xlu0 %v1133
        %v1197 = vpop.xlane.xlu0 %1196
        %1198 = vadd.xlane.f32.xlu0 %v1135
        %v1199 = vpop.xlane.xlu0 %1198
        %1200 = vadd.xlane.f32.xlu0 %v1138
        %v1201 = vpop.xlane.xlu0 %1200
        %1202 = vadd.xlane.f32.xlu0 %v1140
        %v1203 = vpop.xlane.xlu0 %1202
        %1204 = vadd.xlane.f32.xlu0 %v1143
        %v1205 = vpop.xlane.xlu0 %1204
        %1206 = vadd.xlane.f32.xlu0 %v1145
        %v1207 = vpop.xlane.xlu0 %1206
        %1208 = vadd.xlane.f32.xlu0 %v1148
        %v1209 = vpop.xlane.xlu0 %1208
        %1210 = vadd.xlane.f32.xlu0 %v1150
        %v1211 = vpop.xlane.xlu0 %1210
        %1212 = vadd.xlane.f32.xlu0 %v1153
        %v1213 = vpop.xlane.xlu0 %1212
        %1214 = vadd.xlane.f32.xlu0 %v1155
        %v1215 = vpop.xlane.xlu0 %1214
        %1216 = vadd.xlane.f32.xlu0 %v1158
        %v1217 = vpop.xlane.xlu0 %1216
        %1218 = vadd.xlane.f32.xlu0 %v1160
        %v1219 = vpop.xlane.xlu0 %1218
        %1220 = vadd.xlane.f32.xlu0 %v1163
        %v1221 = vpop.xlane.xlu0 %1220
        %1222 = vadd.xlane.f32.xlu0 %v1165
        %v1223 = vpop.xlane.xlu0 %1222
        %1224 = vadd.xlane.f32.xlu0 %v1168
        %v1225 = vpop.xlane.xlu0 %1224
        %1226 = vadd.xlane.f32.xlu0 %v1170
        %v1227 = vpop.xlane.xlu0 %1226
        %1228 = vadd.xlane.f32.xlu0 %v1173
        %v1229 = vpop.xlane.xlu0 %1228
        %1230 = vadd.xlane.f32.xlu0 %v1175
        %v1231 = vpop.xlane.xlu0 %1230
        %1232 = vadd.xlane.f32.xlu0 %v1178
        %v1233 = vpop.xlane.xlu0 %1232
        %1234 = vadd.xlane.f32.xlu0 %v1180
        %v1235 = vpop.xlane.xlu0 %1234
        %1236 = vadd.xlane.f32.xlu0 %v1183
        %v1237 = vpop.xlane.xlu0 %1236
        %1238 = vadd.xlane.f32.xlu0 %v1185
        %v1239 = vpop.xlane.xlu0 %1238
        %1240 = vadd.xlane.f32.xlu0 %v1188
        %v1241 = vpop.xlane.xlu0 %1240
        %1242 = vadd.xlane.f32.xlu0 %v1190
        %v1243 = vpop.xlane.xlu0 %1242
        %1244 = vadd.xlane.f32.xlu0 %v1193
        %v1245 = vpop.xlane.xlu0 %1244
        %v1246 = vmul.f32 %v1133, %v1133
        %v1247 = vmul.f32 %v1135, %v1135
        %v1248 = vmul.f32 %v1138, %v1138
        %v1249 = vmul.f32 %v1140, %v1140
        %v1250 = vmul.f32 %v1143, %v1143
        %v1251 = vmul.f32 %v1145, %v1145
        %v1252 = vmul.f32 %v1148, %v1148
        %v1253 = vmul.f32 %v1150, %v1150
        %v1254 = vmul.f32 %v1153, %v1153
        %v1255 = vmul.f32 %v1155, %v1155
        %v1256 = vmul.f32 %v1158, %v1158
        %v1257 = vmul.f32 %v1160, %v1160
        %v1258 = vmul.f32 %v1163, %v1163
        %v1259 = vmul.f32 %v1165, %v1165
        %v1260 = vmul.f32 %v1168, %v1168
        %v1261 = vmul.f32 %v1170, %v1170
        %v1262 = vmul.f32 %v1173, %v1173
        %v1263 = vmul.f32 %v1175, %v1175
        %v1264 = vmul.f32 %v1178, %v1178
        %v1265 = vmul.f32 %v1180, %v1180
        %v1266 = vmul.f32 %v1183, %v1183
        %v1267 = vmul.f32 %v1185, %v1185
        %v1268 = vmul.f32 %v1188, %v1188
        %v1269 = vmul.f32 %v1190, %v1190
        %v1270 = vmul.f32 %v1193, %v1193
        %1271 = vadd.xlane.f32.xlu0 %v1246
        %v1272 = vpop.xlane.xlu0 %1271
        %1273 = vadd.xlane.f32.xlu0 %v1247
        %v1274 = vpop.xlane.xlu0 %1273
        %1275 = vadd.xlane.f32.xlu0 %v1248
        %v1276 = vpop.xlane.xlu0 %1275
        %1277 = vadd.xlane.f32.xlu0 %v1249
        %v1278 = vpop.xlane.xlu0 %1277
        %1279 = vadd.xlane.f32.xlu0 %v1250
        %v1280 = vpop.xlane.xlu0 %1279
        %1281 = vadd.xlane.f32.xlu0 %v1251
        %v1282 = vpop.xlane.xlu0 %1281
        %1283 = vadd.xlane.f32.xlu0 %v1252
        %v1284 = vpop.xlane.xlu0 %1283
        %1285 = vadd.xlane.f32.xlu0 %v1253
        %v1286 = vpop.xlane.xlu0 %1285
        %1287 = vadd.xlane.f32.xlu0 %v1254
        %v1288 = vpop.xlane.xlu0 %1287
        %1289 = vadd.xlane.f32.xlu0 %v1255
        %v1290 = vpop.xlane.xlu0 %1289
        %1291 = vadd.xlane.f32.xlu0 %v1256
        %v1292 = vpop.xlane.xlu0 %1291
        %1293 = vadd.xlane.f32.xlu0 %v1257
        %v1294 = vpop.xlane.xlu0 %1293
        %1295 = vadd.xlane.f32.xlu0 %v1258
        %v1296 = vpop.xlane.xlu0 %1295
        %1297 = vadd.xlane.f32.xlu0 %v1259
        %v1298 = vpop.xlane.xlu0 %1297
        %1299 = vadd.xlane.f32.xlu0 %v1260
        %v1300 = vpop.xlane.xlu0 %1299
        %1301 = vadd.xlane.f32.xlu0 %v1261
        %v1302 = vpop.xlane.xlu0 %1301
        %1303 = vadd.xlane.f32.xlu0 %v1262
        %v1304 = vpop.xlane.xlu0 %1303
        %1305 = vadd.xlane.f32.xlu0 %v1263
        %v1306 = vpop.xlane.xlu0 %1305
        %1307 = vadd.xlane.f32.xlu0 %v1264
        %v1308 = vpop.xlane.xlu0 %1307
        %1309 = vadd.xlane.f32.xlu0 %v1265
        %v1310 = vpop.xlane.xlu0 %1309
        %1311 = vadd.xlane.f32.xlu0 %v1266
        %v1312 = vpop.xlane.xlu0 %1311
        %1313 = vadd.xlane.f32.xlu0 %v1267
        %v1314 = vpop.xlane.xlu0 %1313
        %1315 = vadd.xlane.f32.xlu0 %v1268
        %v1316 = vpop.xlane.xlu0 %1315
        %1317 = vadd.xlane.f32.xlu0 %v1269
        %v1318 = vpop.xlane.xlu0 %1317
        %1319 = vadd.xlane.f32.xlu0 %v1270
        %v1320 = vpop.xlane.xlu0 %1319
        %v1321 = vmul.f32 %v1197, 0.0078125
        %v1322 = vmul.f32 %v1199, 0.0078125
        %v1323 = vmul.f32 %v1201, 0.0078125
        %v1324 = vmul.f32 %v1203, 0.0078125
        %v1325 = vmul.f32 %v1205, 0.0078125
        %v1326 = vmul.f32 %v1207, 0.0078125
        %v1327 = vmul.f32 %v1209, 0.0078125
        %v1328 = vmul.f32 %v1211, 0.0078125
        %v1329 = vmul.f32 %v1213, 0.0078125
        %v1330 = vmul.f32 %v1215, 0.0078125
        %v1331 = vmul.f32 %v1217, 0.0078125
        %v1332 = vmul.f32 %v1219, 0.0078125
        %v1333 = vmul.f32 %v1221, 0.0078125
        %v1334 = vmul.f32 %v1223, 0.0078125
        %v1335 = vmul.f32 %v1225, 0.0078125
        %v1336 = vmul.f32 %v1227, 0.0078125
        %v1337 = vmul.f32 %v1229, 0.0078125
        %v1338 = vmul.f32 %v1231, 0.0078125
        %v1339 = vmul.f32 %v1233, 0.0078125
        %v1340 = vmul.f32 %v1235, 0.0078125
        %v1341 = vmul.f32 %v1237, 0.0078125
        %v1342 = vmul.f32 %v1239, 0.0078125
        %v1343 = vmul.f32 %v1241, 0.0078125
        %v1344 = vmul.f32 %v1243, 0.0078125
        %v1345 = vmul.f32 %v1245, 0.0078125
        %v1346 = vmul.f32 %v1272, 0.0078125
        %v1347 = vmul.f32 %v1274, 0.0078125
        %v1348 = vmul.f32 %v1276, 0.0078125
        %v1349 = vmul.f32 %v1278, 0.0078125
        %v1350 = vmul.f32 %v1280, 0.0078125
        %v1351 = vmul.f32 %v1282, 0.0078125
        %v1352 = vmul.f32 %v1284, 0.0078125
        %v1353 = vmul.f32 %v1286, 0.0078125
        %v1354 = vmul.f32 %v1288, 0.0078125
        %v1355 = vmul.f32 %v1290, 0.0078125
        %v1356 = vmul.f32 %v1292, 0.0078125
        %v1357 = vmul.f32 %v1294, 0.0078125
        %v1358 = vmul.f32 %v1296, 0.0078125
        %v1359 = vmul.f32 %v1298, 0.0078125
        %v1360 = vmul.f32 %v1300, 0.0078125
        %v1361 = vmul.f32 %v1302, 0.0078125
        %v1362 = vmul.f32 %v1304, 0.0078125
        %v1363 = vmul.f32 %v1306, 0.0078125
        %v1364 = vmul.f32 %v1308, 0.0078125
        %v1365 = vmul.f32 %v1310, 0.0078125
        %v1366 = vmul.f32 %v1312, 0.0078125
        %v1367 = vmul.f32 %v1314, 0.0078125
        %v1368 = vmul.f32 %v1316, 0.0078125
        %v1369 = vmul.f32 %v1318, 0.0078125
        %v1370 = vmul.f32 %v1320, 0.0078125
        %v1371 = vmul.f32 %v1321, %v1321
        %v1372 = vmul.f32 %v1322, %v1322
        %v1373 = vmul.f32 %v1323, %v1323
        %v1374 = vmul.f32 %v1324, %v1324
        %v1375 = vmul.f32 %v1325, %v1325
        %v1376 = vmul.f32 %v1326, %v1326
        %v1377 = vmul.f32 %v1327, %v1327
        %v1378 = vmul.f32 %v1328, %v1328
        %v1379 = vmul.f32 %v1329, %v1329
        %v1380 = vmul.f32 %v1330, %v1330
        %v1381 = vmul.f32 %v1331, %v1331
        %v1382 = vmul.f32 %v1332, %v1332
        %v1383 = vmul.f32 %v1333, %v1333
        %v1384 = vmul.f32 %v1334, %v1334
        %v1385 = vmul.f32 %v1335, %v1335
        %v1386 = vmul.f32 %v1336, %v1336
        %v1387 = vmul.f32 %v1337, %v1337
        %v1388 = vmul.f32 %v1338, %v1338
        %v1389 = vmul.f32 %v1339, %v1339
        %v1390 = vmul.f32 %v1340, %v1340
        %v1391 = vmul.f32 %v1341, %v1341
        %v1392 = vmul.f32 %v1342, %v1342
        %v1393 = vmul.f32 %v1343, %v1343
        %v1394 = vmul.f32 %v1344, %v1344
        %v1395 = vmul.f32 %v1345, %v1345
        %v1396 = vsub.f32 %v1346, %v1371
        %v1397 = vsub.f32 %v1347, %v1372
        %v1398 = vsub.f32 %v1348, %v1373
        %v1399 = vsub.f32 %v1349, %v1374
        %v1400 = vsub.f32 %v1350, %v1375
        %v1401 = vsub.f32 %v1351, %v1376
        %v1402 = vsub.f32 %v1352, %v1377
        %v1403 = vsub.f32 %v1353, %v1378
        %v1404 = vsub.f32 %v1354, %v1379
        %v1405 = vsub.f32 %v1355, %v1380
        %v1406 = vsub.f32 %v1356, %v1381
        %v1407 = vsub.f32 %v1357, %v1382
        %v1408 = vsub.f32 %v1358, %v1383
        %v1409 = vsub.f32 %v1359, %v1384
        %v1410 = vsub.f32 %v1360, %v1385
        %v1411 = vsub.f32 %v1361, %v1386
        %v1412 = vsub.f32 %v1362, %v1387
        %v1413 = vsub.f32 %v1363, %v1388
        %v1414 = vsub.f32 %v1364, %v1389
        %v1415 = vsub.f32 %v1365, %v1390
        %v1416 = vsub.f32 %v1366, %v1391
        %v1417 = vsub.f32 %v1367, %v1392
        %v1418 = vsub.f32 %v1368, %v1393
        %v1419 = vsub.f32 %v1369, %v1394
        %v1420 = vsub.f32 %v1370, %v1395
        %v1421 = vmax.f32 %v1396, 0.0
        %v1422 = vmax.f32 %v1397, 0.0
        %v1423 = vmax.f32 %v1398, 0.0
        %v1424 = vmax.f32 %v1399, 0.0
        %v1425 = vmax.f32 %v1400, 0.0
        %v1426 = vmax.f32 %v1401, 0.0
        %v1427 = vmax.f32 %v1402, 0.0
        %v1428 = vmax.f32 %v1403, 0.0
        %v1429 = vmax.f32 %v1404, 0.0
        %v1430 = vmax.f32 %v1405, 0.0
        %v1431 = vmax.f32 %v1406, 0.0
        %v1432 = vmax.f32 %v1407, 0.0
        %v1433 = vmax.f32 %v1408, 0.0
        %v1434 = vmax.f32 %v1409, 0.0
        %v1435 = vmax.f32 %v1410, 0.0
        %v1436 = vmax.f32 %v1411, 0.0
        %v1437 = vmax.f32 %v1412, 0.0
        %v1438 = vmax.f32 %v1413, 0.0
        %v1439 = vmax.f32 %v1414, 0.0
        %v1440 = vmax.f32 %v1415, 0.0
        %v1441 = vmax.f32 %v1416, 0.0
        %v1442 = vmax.f32 %v1417, 0.0
        %v1443 = vmax.f32 %v1418, 0.0
        %v1444 = vmax.f32 %v1419, 0.0
        %v1445 = vmax.f32 %v1420, 0.0
        %v1446 = vsub.f32 %v1133, %v1321
        %v1447 = vsub.f32 %v1135, %v1322
        %v1448 = vsub.f32 %v1138, %v1323
        %v1449 = vsub.f32 %v1140, %v1324
        %v1450 = vsub.f32 %v1143, %v1325
        %v1451 = vsub.f32 %v1145, %v1326
        %v1452 = vsub.f32 %v1148, %v1327
        %v1453 = vsub.f32 %v1150, %v1328
        %v1454 = vsub.f32 %v1153, %v1329
        %v1455 = vsub.f32 %v1155, %v1330
        %v1456 = vsub.f32 %v1158, %v1331
        %v1457 = vsub.f32 %v1160, %v1332
        %v1458 = vsub.f32 %v1163, %v1333
        %v1459 = vsub.f32 %v1165, %v1334
        %v1460 = vsub.f32 %v1168, %v1335
        %v1461 = vsub.f32 %v1170, %v1336
        %v1462 = vsub.f32 %v1173, %v1337
        %v1463 = vsub.f32 %v1175, %v1338
        %v1464 = vsub.f32 %v1178, %v1339
        %v1465 = vsub.f32 %v1180, %v1340
        %v1466 = vsub.f32 %v1183, %v1341
        %v1467 = vsub.f32 %v1185, %v1342
        %v1468 = vsub.f32 %v1188, %v1343
        %v1469 = vsub.f32 %v1190, %v1344
        %v1470 = vsub.f32 %v1193, %v1345
        %v1471 = vadd.f32 %v1421, 1e-05
        %v1472 = vadd.f32 %v1422, 1e-05
        %v1473 = vadd.f32 %v1423, 1e-05
        %v1474 = vadd.f32 %v1424, 1e-05
        %v1475 = vadd.f32 %v1425, 1e-05
        %v1476 = vadd.f32 %v1426, 1e-05
        %v1477 = vadd.f32 %v1427, 1e-05
        %v1478 = vadd.f32 %v1428, 1e-05
        %v1479 = vadd.f32 %v1429, 1e-05
        %v1480 = vadd.f32 %v1430, 1e-05
        %v1481 = vadd.f32 %v1431, 1e-05
        %v1482 = vadd.f32 %v1432, 1e-05
        %v1483 = vadd.f32 %v1433, 1e-05
        %v1484 = vadd.f32 %v1434, 1e-05
        %v1485 = vadd.f32 %v1435, 1e-05
        %v1486 = vadd.f32 %v1436, 1e-05
        %v1487 = vadd.f32 %v1437, 1e-05
        %v1488 = vadd.f32 %v1438, 1e-05
        %v1489 = vadd.f32 %v1439, 1e-05
        %v1490 = vadd.f32 %v1440, 1e-05
        %v1491 = vadd.f32 %v1441, 1e-05
        %v1492 = vadd.f32 %v1442, 1e-05
        %v1493 = vadd.f32 %v1443, 1e-05
        %v1494 = vadd.f32 %v1444, 1e-05
        %v1495 = vadd.f32 %v1445, 1e-05
        %v1496 = vrsqrt.pop %v1471
        %v1497 = vmul.f32 %v1496, %v1471
        %v1498 = vmul.f32 %v1497, %v1496
        %v1499 = vmul.f32 0.5, %v1498
        %v1500 = vsub.f32 1.5, %v1499
        %v1501 = vmul.f32 %v1496, %v1500
        %vm1502 = vweird.f32 %v1471
        %vm1503 = vweird.f32 %v1496
        %vm1504 = vmor %vm1502, %vm1503
        %v1505 = vsel %vm1504, %v1496, %v1501
        %v1506 = vrsqrt.pop %v1472
        %v1507 = vmul.f32 %v1506, %v1472
        %v1508 = vmul.f32 %v1507, %v1506
        %v1509 = vmul.f32 0.5, %v1508
        %v1510 = vsub.f32 1.5, %v1509
        %v1511 = vmul.f32 %v1506, %v1510
        %vm1512 = vweird.f32 %v1472
        %vm1513 = vweird.f32 %v1506
        %vm1514 = vmor %vm1512, %vm1513
        %v1515 = vsel %vm1514, %v1506, %v1511
        %v1516 = vrsqrt.pop %v1473
        %v1517 = vmul.f32 %v1516, %v1473
        %v1518 = vmul.f32 %v1517, %v1516
        %v1519 = vmul.f32 0.5, %v1518
        %v1520 = vsub.f32 1.5, %v1519
        %v1521 = vmul.f32 %v1516, %v1520
        %vm1522 = vweird.f32 %v1473
        %vm1523 = vweird.f32 %v1516
        %vm1524 = vmor %vm1522, %vm1523
        %v1525 = vsel %vm1524, %v1516, %v1521
        %v1526 = vrsqrt.pop %v1474
        %v1527 = vmul.f32 %v1526, %v1474
        %v1528 = vmul.f32 %v1527, %v1526
        %v1529 = vmul.f32 0.5, %v1528
        %v1530 = vsub.f32 1.5, %v1529
        %v1531 = vmul.f32 %v1526, %v1530
        %vm1532 = vweird.f32 %v1474
        %vm1533 = vweird.f32 %v1526
        %vm1534 = vmor %vm1532, %vm1533
        %v1535 = vsel %vm1534, %v1526, %v1531
        %v1536 = vrsqrt.pop %v1475
        %v1537 = vmul.f32 %v1536, %v1475
        %v1538 = vmul.f32 %v1537, %v1536
        %v1539 = vmul.f32 0.5, %v1538
        %v1540 = vsub.f32 1.5, %v1539
        %v1541 = vmul.f32 %v1536, %v1540
        %vm1542 = vweird.f32 %v1475
        %vm1543 = vweird.f32 %v1536
        %vm1544 = vmor %vm1542, %vm1543
        %v1545 = vsel %vm1544, %v1536, %v1541
        %v1546 = vrsqrt.pop %v1476
        %v1547 = vmul.f32 %v1546, %v1476
        %v1548 = vmul.f32 %v1547, %v1546
        %v1549 = vmul.f32 0.5, %v1548
        %v1550 = vsub.f32 1.5, %v1549
        %v1551 = vmul.f32 %v1546, %v1550
        %vm1552 = vweird.f32 %v1476
        %vm1553 = vweird.f32 %v1546
        %vm1554 = vmor %vm1552, %vm1553
        %v1555 = vsel %vm1554, %v1546, %v1551
        %v1556 = vrsqrt.pop %v1477
        %v1557 = vmul.f32 %v1556, %v1477
        %v1558 = vmul.f32 %v1557, %v1556
        %v1559 = vmul.f32 0.5, %v1558
        %v1560 = vsub.f32 1.5, %v1559
        %v1561 = vmul.f32 %v1556, %v1560
        %vm1562 = vweird.f32 %v1477
        %vm1563 = vweird.f32 %v1556
        %vm1564 = vmor %vm1562, %vm1563
        %v1565 = vsel %vm1564, %v1556, %v1561
        %v1566 = vrsqrt.pop %v1478
        %v1567 = vmul.f32 %v1566, %v1478
        %v1568 = vmul.f32 %v1567, %v1566
        %v1569 = vmul.f32 0.5, %v1568
        %v1570 = vsub.f32 1.5, %v1569
        %v1571 = vmul.f32 %v1566, %v1570
        %vm1572 = vweird.f32 %v1478
        %vm1573 = vweird.f32 %v1566
        %vm1574 = vmor %vm1572, %vm1573
        %v1575 = vsel %vm1574, %v1566, %v1571
        %v1576 = vrsqrt.pop %v1479
        %v1577 = vmul.f32 %v1576, %v1479
        %v1578 = vmul.f32 %v1577, %v1576
        %v1579 = vmul.f32 0.5, %v1578
        %v1580 = vsub.f32 1.5, %v1579
        %v1581 = vmul.f32 %v1576, %v1580
        %vm1582 = vweird.f32 %v1479
        %vm1583 = vweird.f32 %v1576
        %vm1584 = vmor %vm1582, %vm1583
        %v1585 = vsel %vm1584, %v1576, %v1581
        %v1586 = vrsqrt.pop %v1480
        %v1587 = vmul.f32 %v1586, %v1480
        %v1588 = vmul.f32 %v1587, %v1586
        %v1589 = vmul.f32 0.5, %v1588
        %v1590 = vsub.f32 1.5, %v1589
        %v1591 = vmul.f32 %v1586, %v1590
        %vm1592 = vweird.f32 %v1480
        %vm1593 = vweird.f32 %v1586
        %vm1594 = vmor %vm1592, %vm1593
        %v1595 = vsel %vm1594, %v1586, %v1591
        %v1596 = vrsqrt.pop %v1481
        %v1597 = vmul.f32 %v1596, %v1481
        %v1598 = vmul.f32 %v1597, %v1596
        %v1599 = vmul.f32 0.5, %v1598
        %v1600 = vsub.f32 1.5, %v1599
        %v1601 = vmul.f32 %v1596, %v1600
        %vm1602 = vweird.f32 %v1481
        %vm1603 = vweird.f32 %v1596
        %vm1604 = vmor %vm1602, %vm1603
        %v1605 = vsel %vm1604, %v1596, %v1601
        %v1606 = vrsqrt.pop %v1482
        %v1607 = vmul.f32 %v1606, %v1482
        %v1608 = vmul.f32 %v1607, %v1606
        %v1609 = vmul.f32 0.5, %v1608
        %v1610 = vsub.f32 1.5, %v1609
        %v1611 = vmul.f32 %v1606, %v1610
        %vm1612 = vweird.f32 %v1482
        %vm1613 = vweird.f32 %v1606
        %vm1614 = vmor %vm1612, %vm1613
        %v1615 = vsel %vm1614, %v1606, %v1611
        %v1616 = vrsqrt.pop %v1483
        %v1617 = vmul.f32 %v1616, %v1483
        %v1618 = vmul.f32 %v1617, %v1616
        %v1619 = vmul.f32 0.5, %v1618
        %v1620 = vsub.f32 1.5, %v1619
        %v1621 = vmul.f32 %v1616, %v1620
        %vm1622 = vweird.f32 %v1483
        %vm1623 = vweird.f32 %v1616
        %vm1624 = vmor %vm1622, %vm1623
        %v1625 = vsel %vm1624, %v1616, %v1621
        %v1626 = vrsqrt.pop %v1484
        %v1627 = vmul.f32 %v1626, %v1484
        %v1628 = vmul.f32 %v1627, %v1626
        %v1629 = vmul.f32 0.5, %v1628
        %v1630 = vsub.f32 1.5, %v1629
        %v1631 = vmul.f32 %v1626, %v1630
        %vm1632 = vweird.f32 %v1484
        %vm1633 = vweird.f32 %v1626
        %vm1634 = vmor %vm1632, %vm1633
        %v1635 = vsel %vm1634, %v1626, %v1631
        %v1636 = vrsqrt.pop %v1485
        %v1637 = vmul.f32 %v1636, %v1485
        %v1638 = vmul.f32 %v1637, %v1636
        %v1639 = vmul.f32 0.5, %v1638
        %v1640 = vsub.f32 1.5, %v1639
        %v1641 = vmul.f32 %v1636, %v1640
        %vm1642 = vweird.f32 %v1485
        %vm1643 = vweird.f32 %v1636
        %vm1644 = vmor %vm1642, %vm1643
        %v1645 = vsel %vm1644, %v1636, %v1641
        %v1646 = vrsqrt.pop %v1486
        %v1647 = vmul.f32 %v1646, %v1486
        %v1648 = vmul.f32 %v1647, %v1646
        %v1649 = vmul.f32 0.5, %v1648
        %v1650 = vsub.f32 1.5, %v1649
        %v1651 = vmul.f32 %v1646, %v1650
        %vm1652 = vweird.f32 %v1486
        %vm1653 = vweird.f32 %v1646
        %vm1654 = vmor %vm1652, %vm1653
        %v1655 = vsel %vm1654, %v1646, %v1651
        %v1656 = vrsqrt.pop %v1487
        %v1657 = vmul.f32 %v1656, %v1487
        %v1658 = vmul.f32 %v1657, %v1656
        %v1659 = vmul.f32 0.5, %v1658
        %v1660 = vsub.f32 1.5, %v1659
        %v1661 = vmul.f32 %v1656, %v1660
        %vm1662 = vweird.f32 %v1487
        %vm1663 = vweird.f32 %v1656
        %vm1664 = vmor %vm1662, %vm1663
        %v1665 = vsel %vm1664, %v1656, %v1661
        %v1666 = vrsqrt.pop %v1488
        %v1667 = vmul.f32 %v1666, %v1488
        %v1668 = vmul.f32 %v1667, %v1666
        %v1669 = vmul.f32 0.5, %v1668
        %v1670 = vsub.f32 1.5, %v1669
        %v1671 = vmul.f32 %v1666, %v1670
        %vm1672 = vweird.f32 %v1488
        %vm1673 = vweird.f32 %v1666
        %vm1674 = vmor %vm1672, %vm1673
        %v1675 = vsel %vm1674, %v1666, %v1671
        %v1676 = vrsqrt.pop %v1489
        %v1677 = vmul.f32 %v1676, %v1489
        %v1678 = vmul.f32 %v1677, %v1676
        %v1679 = vmul.f32 0.5, %v1678
        %v1680 = vsub.f32 1.5, %v1679
        %v1681 = vmul.f32 %v1676, %v1680
        %vm1682 = vweird.f32 %v1489
        %vm1683 = vweird.f32 %v1676
        %vm1684 = vmor %vm1682, %vm1683
        %v1685 = vsel %vm1684, %v1676, %v1681
        %v1686 = vrsqrt.pop %v1490
        %v1687 = vmul.f32 %v1686, %v1490
        %v1688 = vmul.f32 %v1687, %v1686
        %v1689 = vmul.f32 0.5, %v1688
        %v1690 = vsub.f32 1.5, %v1689
        %v1691 = vmul.f32 %v1686, %v1690
        %vm1692 = vweird.f32 %v1490
        %vm1693 = vweird.f32 %v1686
        %vm1694 = vmor %vm1692, %vm1693
        %v1695 = vsel %vm1694, %v1686, %v1691
        %v1696 = vrsqrt.pop %v1491
        %v1697 = vmul.f32 %v1696, %v1491
        %v1698 = vmul.f32 %v1697, %v1696
        %v1699 = vmul.f32 0.5, %v1698
        %v1700 = vsub.f32 1.5, %v1699
        %v1701 = vmul.f32 %v1696, %v1700
        %vm1702 = vweird.f32 %v1491
        %vm1703 = vweird.f32 %v1696
        %vm1704 = vmor %vm1702, %vm1703
        %v1705 = vsel %vm1704, %v1696, %v1701
        %v1706 = vrsqrt.pop %v1492
        %v1707 = vmul.f32 %v1706, %v1492
        %v1708 = vmul.f32 %v1707, %v1706
        %v1709 = vmul.f32 0.5, %v1708
        %v1710 = vsub.f32 1.5, %v1709
        %v1711 = vmul.f32 %v1706, %v1710
        %vm1712 = vweird.f32 %v1492
        %vm1713 = vweird.f32 %v1706
        %vm1714 = vmor %vm1712, %vm1713
        %v1715 = vsel %vm1714, %v1706, %v1711
        %v1716 = vrsqrt.pop %v1493
        %v1717 = vmul.f32 %v1716, %v1493
        %v1718 = vmul.f32 %v1717, %v1716
        %v1719 = vmul.f32 0.5, %v1718
        %v1720 = vsub.f32 1.5, %v1719
        %v1721 = vmul.f32 %v1716, %v1720
        %vm1722 = vweird.f32 %v1493
        %vm1723 = vweird.f32 %v1716
        %vm1724 = vmor %vm1722, %vm1723
        %v1725 = vsel %vm1724, %v1716, %v1721
        %v1726 = vrsqrt.pop %v1494
        %v1727 = vmul.f32 %v1726, %v1494
        %v1728 = vmul.f32 %v1727, %v1726
        %v1729 = vmul.f32 0.5, %v1728
        %v1730 = vsub.f32 1.5, %v1729
        %v1731 = vmul.f32 %v1726, %v1730
        %vm1732 = vweird.f32 %v1494
        %vm1733 = vweird.f32 %v1726
        %vm1734 = vmor %vm1732, %vm1733
        %v1735 = vsel %vm1734, %v1726, %v1731
        %v1736 = vrsqrt.pop %v1495
        %v1737 = vmul.f32 %v1736, %v1495
        %v1738 = vmul.f32 %v1737, %v1736
        %v1739 = vmul.f32 0.5, %v1738
        %v1740 = vsub.f32 1.5, %v1739
        %v1741 = vmul.f32 %v1736, %v1740
        %vm1742 = vweird.f32 %v1495
        %vm1743 = vweird.f32 %v1736
        %vm1744 = vmor %vm1742, %vm1743
        %v1745 = vsel %vm1744, %v1736, %v1741
        %v1746 = vmul.f32 %v1446, %v1505
        %v1747 = vmul.f32 %v1447, %v1515
        %v1748 = vmul.f32 %v1448, %v1525
        %v1749 = vmul.f32 %v1449, %v1535
        %v1750 = vmul.f32 %v1450, %v1545
        %v1751 = vmul.f32 %v1451, %v1555
        %v1752 = vmul.f32 %v1452, %v1565
        %v1753 = vmul.f32 %v1453, %v1575
        %v1754 = vmul.f32 %v1454, %v1585
        %v1755 = vmul.f32 %v1455, %v1595
        %v1756 = vmul.f32 %v1456, %v1605
        %v1757 = vmul.f32 %v1457, %v1615
        %v1758 = vmul.f32 %v1458, %v1625
        %v1759 = vmul.f32 %v1459, %v1635
        %v1760 = vmul.f32 %v1460, %v1645
        %v1761 = vmul.f32 %v1461, %v1655
        %v1762 = vmul.f32 %v1462, %v1665
        %v1763 = vmul.f32 %v1463, %v1675
        %v1764 = vmul.f32 %v1464, %v1685
        %v1765 = vmul.f32 %v1465, %v1695
        %v1766 = vmul.f32 %v1466, %v1705
        %v1767 = vmul.f32 %v1467, %v1715
        %v1768 = vmul.f32 %v1468, %v1725
        %v1769 = vmul.f32 %v1469, %v1735
        %v1770 = vmul.f32 %v1470, %v1745
        %v1771 = vmax.f32 %v1746, 0.0
        %v1772 = vmax.f32 %v1747, 0.0
        %v1773 = vmax.f32 %v1748, 0.0
        %v1774 = vmax.f32 %v1749, 0.0
        %v1775 = vmax.f32 %v1750, 0.0
        %v1776 = vmax.f32 %v1751, 0.0
        %v1777 = vmax.f32 %v1752, 0.0
        %v1778 = vmax.f32 %v1753, 0.0
        %v1779 = vmax.f32 %v1754, 0.0
        %v1780 = vmax.f32 %v1755, 0.0
        %v1781 = vmax.f32 %v1756, 0.0
        %v1782 = vmax.f32 %v1757, 0.0
        %v1783 = vmax.f32 %v1758, 0.0
        %v1784 = vmax.f32 %v1759, 0.0
        %v1785 = vmax.f32 %v1760, 0.0
        %v1786 = vmax.f32 %v1761, 0.0
        %v1787 = vmax.f32 %v1762, 0.0
        %v1788 = vmax.f32 %v1763, 0.0
        %v1789 = vmax.f32 %v1764, 0.0
        %v1790 = vmax.f32 %v1765, 0.0
        %v1791 = vmax.f32 %v1766, 0.0
        %v1792 = vmax.f32 %v1767, 0.0
        %v1793 = vmax.f32 %v1768, 0.0
        %v1794 = vmax.f32 %v1769, 0.0
        %v1795 = vmax.f32 %v1770, 0.0
        %v1796 = vpack.c.bf16 %v1772, %v1771
        %v1797 = vpack.c.bf16 %v1774, %v1773
        %v1798 = vpack.c.bf16 %v1776, %v1775
        %v1799 = vpack.c.bf16 %v1778, %v1777
        %v1800 = vpack.c.bf16 %v1780, %v1779
        %v1801 = vpack.c.bf16 %v1782, %v1781
        %v1802 = vpack.c.bf16 %v1784, %v1783
        %v1803 = vpack.c.bf16 %v1786, %v1785
        %v1804 = vpack.c.bf16 %v1788, %v1787
        %v1805 = vpack.c.bf16 %v1790, %v1789
        %v1806 = vpack.c.bf16 %v1792, %v1791
        %v1807 = vpack.c.bf16 %v1794, %v1793
        %v1808 = vpack.c.bf16 %v1795, %v1795
        %s1809 = scalar_lea.vmem %s2, 64
        %v1810 = vld [vmem:[%s1809] sm:$0xf]
        %v1811 = vld [vmem:[%s1809 + $0x4] sm:$0xf]
        %v1812 = vld [vmem:[%s1809 + $0x8] sm:$0xf]
        %v1813 = vld [vmem:[%s1809 + $0xc] sm:$0xf]
        %v1814 = vld [vmem:[%s1809 + $0x10] sm:$0xf]
        %v1815 = vld [vmem:[%s1809 + $0x14] sm:$0xf]
        %v1816 = vld [vmem:[%s1809 + $0x18] sm:$0xf]
        %v1817 = vld [vmem:[%s1809 + $0x1c] sm:$0xf]
        %v1818 = vld [vmem:[%s1809 + $0x20] sm:$0xf]
        %v1819 = vld [vmem:[%s1809 + $0x24] sm:$0xf]
        %v1820 = vld [vmem:[%s1809 + $0x28] sm:$0xf]
        %v1821 = vld [vmem:[%s1809 + $0x2c] sm:$0xf]
        %v1822 = vld [vmem:[%s1809 + $0x30] sm:$0xf]
        %v1823 = vld [vmem:[%s1809 + $0x34] sm:$0xf]
        %v1824 = vld [vmem:[%s1809 + $0x38] sm:$0xf]
        %v1825 = vld [vmem:[%s1809 + $0x3c] sm:$0xf]
        %s1826 = scalar_lea.vmem %s4, 2
        %v1827 = vld [vmem:[%s1826] sm:$0x1]
        %v1829 = vperm.slane %v1827, 0
        %v1847 = vunpack.c.l.b16 %v1810
        %v1848 = vunpack.c.l.b16 %v1811
        %v1849 = vunpack.c.l.b16 %v1812
        %v1850 = vunpack.c.l.b16 %v1813
        %v1851 = vunpack.c.l.b16 %v1814
        %v1852 = vunpack.c.l.b16 %v1815
        %v1853 = vunpack.c.l.b16 %v1816
        %v1854 = vunpack.c.l.b16 %v1817
        %v1855 = vunpack.c.l.b16 %v1818
        %v1856 = vunpack.c.l.b16 %v1819
        %v1857 = vunpack.c.l.b16 %v1820
        %v1858 = vunpack.c.l.b16 %v1821
        %v1859 = vunpack.c.l.b16 %v1822
        %v1860 = vunpack.c.l.b16 %v1823
        %v1861 = vunpack.c.l.b16 %v1824
        %v1862 = vunpack.c.l.b16 %v1825
        %v1863 = vpack.c.b16 %v1848, %v1847
        %v1864 = vpack.c.b16 %v1850, %v1849
        %v1865 = vpack.c.b16 %v1852, %v1851
        %v1866 = vpack.c.b16 %v1854, %v1853
        %v1867 = vpack.c.b16 %v1856, %v1855
        %v1868 = vpack.c.b16 %v1858, %v1857
        %v1869 = vpack.c.b16 %v1860, %v1859
        %v1870 = vpack.c.b16 %v1862, %v1861
        %1879 = vmatpush.bf16.msra.mxu0 %v1870
        %1880 = vmatpush.bf16.msra.mxu0 %v1869
        %1881 = vmatpush.bf16.msra.mxu0 %v1868
        %1882 = vmatpush.bf16.msra.mxu0 %v1867
        %1883 = vmatpush.bf16.msra.mxu0 %v1866
        %1884 = vmatpush.bf16.msra.mxu0 %v1865
        %1885 = vmatpush.bf16.msra.mxu0 %v1864
        %1886 = vmatpush.bf16.msra.mxu0 %v1863
        %1887 = vmatmul.bf16.gmra.mxu0 %v1796
        %v1888 = vpop.f32.mrf.mxu0
        %v1889 = vadd.f32 %v1829, %v1888
        %v1890 = vpop.f32.mrf.mxu0
        %v1891 = vadd.f32 %v1829, %v1890
        %1892 = vmatmul.bf16.gmra.mxu0 %v1797
        %v1893 = vpop.f32.mrf.mxu0
        %v1894 = vadd.f32 %v1829, %v1893
        %v1895 = vpop.f32.mrf.mxu0
        %v1896 = vadd.f32 %v1829, %v1895
        %1897 = vmatmul.bf16.gmra.mxu0 %v1798
        %v1898 = vpop.f32.mrf.mxu0
        %v1899 = vadd.f32 %v1829, %v1898
        %v1900 = vpop.f32.mrf.mxu0
        %v1901 = vadd.f32 %v1829, %v1900
        %1902 = vmatmul.bf16.gmra.mxu0 %v1799
        %v1903 = vpop.f32.mrf.mxu0
        %v1904 = vadd.f32 %v1829, %v1903
        %v1905 = vpop.f32.mrf.mxu0
        %v1906 = vadd.f32 %v1829, %v1905
        %1907 = vmatmul.bf16.gmra.mxu0 %v1800
        %v1908 = vpop.f32.mrf.mxu0
        %v1909 = vadd.f32 %v1829, %v1908
        %v1910 = vpop.f32.mrf.mxu0
        %v1911 = vadd.f32 %v1829, %v1910
        %1912 = vmatmul.bf16.gmra.mxu0 %v1801
        %v1913 = vpop.f32.mrf.mxu0
        %v1914 = vadd.f32 %v1829, %v1913
        %v1915 = vpop.f32.mrf.mxu0
        %v1916 = vadd.f32 %v1829, %v1915
        %1917 = vmatmul.bf16.gmra.mxu0 %v1802
        %v1918 = vpop.f32.mrf.mxu0
        %v1919 = vadd.f32 %v1829, %v1918
        %v1920 = vpop.f32.mrf.mxu0
        %v1921 = vadd.f32 %v1829, %v1920
        %1922 = vmatmul.bf16.gmra.mxu0 %v1803
        %v1923 = vpop.f32.mrf.mxu0
        %v1924 = vadd.f32 %v1829, %v1923
        %v1925 = vpop.f32.mrf.mxu0
        %v1926 = vadd.f32 %v1829, %v1925
        %1927 = vmatmul.bf16.gmra.mxu0 %v1804
        %v1928 = vpop.f32.mrf.mxu0
        %v1929 = vadd.f32 %v1829, %v1928
        %v1930 = vpop.f32.mrf.mxu0
        %v1931 = vadd.f32 %v1829, %v1930
        %1932 = vmatmul.bf16.gmra.mxu0 %v1805
        %v1933 = vpop.f32.mrf.mxu0
        %v1934 = vadd.f32 %v1829, %v1933
        %v1935 = vpop.f32.mrf.mxu0
        %v1936 = vadd.f32 %v1829, %v1935
        %1937 = vmatmul.bf16.gmra.mxu0 %v1806
        %v1938 = vpop.f32.mrf.mxu0
        %v1939 = vadd.f32 %v1829, %v1938
        %v1940 = vpop.f32.mrf.mxu0
        %v1941 = vadd.f32 %v1829, %v1940
        %1942 = vmatmul.bf16.gmra.mxu0 %v1807
        %v1943 = vpop.f32.mrf.mxu0
        %v1944 = vadd.f32 %v1829, %v1943
        %v1945 = vpop.f32.mrf.mxu0
        %v1946 = vadd.f32 %v1829, %v1945
        %1947 = vmatmul.bf16.gmra.mxu0 %v1808
        %v1948 = vpop.f32.mrf.mxu0
        %v1949 = vadd.f32 %v1829, %v1948
        %v1950 = vpop.f32.mrf.mxu0
        %1951 = vdwg.mxu0
        %1952 = vadd.xlane.f32.xlu0 %v1889
        %v1953 = vpop.xlane.xlu0 %1952
        %1954 = vadd.xlane.f32.xlu0 %v1891
        %v1955 = vpop.xlane.xlu0 %1954
        %1956 = vadd.xlane.f32.xlu0 %v1894
        %v1957 = vpop.xlane.xlu0 %1956
        %1958 = vadd.xlane.f32.xlu0 %v1896
        %v1959 = vpop.xlane.xlu0 %1958
        %1960 = vadd.xlane.f32.xlu0 %v1899
        %v1961 = vpop.xlane.xlu0 %1960
        %1962 = vadd.xlane.f32.xlu0 %v1901
        %v1963 = vpop.xlane.xlu0 %1962
        %1964 = vadd.xlane.f32.xlu0 %v1904
        %v1965 = vpop.xlane.xlu0 %1964
        %1966 = vadd.xlane.f32.xlu0 %v1906
        %v1967 = vpop.xlane.xlu0 %1966
        %1968 = vadd.xlane.f32.xlu0 %v1909
        %v1969 = vpop.xlane.xlu0 %1968
        %1970 = vadd.xlane.f32.xlu0 %v1911
        %v1971 = vpop.xlane.xlu0 %1970
        %1972 = vadd.xlane.f32.xlu0 %v1914
        %v1973 = vpop.xlane.xlu0 %1972
        %1974 = vadd.xlane.f32.xlu0 %v1916
        %v1975 = vpop.xlane.xlu0 %1974
        %1976 = vadd.xlane.f32.xlu0 %v1919
        %v1977 = vpop.xlane.xlu0 %1976
        %1978 = vadd.xlane.f32.xlu0 %v1921
        %v1979 = vpop.xlane.xlu0 %1978
        %1980 = vadd.xlane.f32.xlu0 %v1924
        %v1981 = vpop.xlane.xlu0 %1980
        %1982 = vadd.xlane.f32.xlu0 %v1926
        %v1983 = vpop.xlane.xlu0 %1982
        %1984 = vadd.xlane.f32.xlu0 %v1929
        %v1985 = vpop.xlane.xlu0 %1984
        %1986 = vadd.xlane.f32.xlu0 %v1931
        %v1987 = vpop.xlane.xlu0 %1986
        %1988 = vadd.xlane.f32.xlu0 %v1934
        %v1989 = vpop.xlane.xlu0 %1988
        %1990 = vadd.xlane.f32.xlu0 %v1936
        %v1991 = vpop.xlane.xlu0 %1990
        %1992 = vadd.xlane.f32.xlu0 %v1939
        %v1993 = vpop.xlane.xlu0 %1992
        %1994 = vadd.xlane.f32.xlu0 %v1941
        %v1995 = vpop.xlane.xlu0 %1994
        %1996 = vadd.xlane.f32.xlu0 %v1944
        %v1997 = vpop.xlane.xlu0 %1996
        %1998 = vadd.xlane.f32.xlu0 %v1946
        %v1999 = vpop.xlane.xlu0 %1998
        %2000 = vadd.xlane.f32.xlu0 %v1949
        %v2001 = vpop.xlane.xlu0 %2000
        %v2002 = vmul.f32 %v1889, %v1889
        %v2003 = vmul.f32 %v1891, %v1891
        %v2004 = vmul.f32 %v1894, %v1894
        %v2005 = vmul.f32 %v1896, %v1896
        %v2006 = vmul.f32 %v1899, %v1899
        %v2007 = vmul.f32 %v1901, %v1901
        %v2008 = vmul.f32 %v1904, %v1904
        %v2009 = vmul.f32 %v1906, %v1906
        %v2010 = vmul.f32 %v1909, %v1909
        %v2011 = vmul.f32 %v1911, %v1911
        %v2012 = vmul.f32 %v1914, %v1914
        %v2013 = vmul.f32 %v1916, %v1916
        %v2014 = vmul.f32 %v1919, %v1919
        %v2015 = vmul.f32 %v1921, %v1921
        %v2016 = vmul.f32 %v1924, %v1924
        %v2017 = vmul.f32 %v1926, %v1926
        %v2018 = vmul.f32 %v1929, %v1929
        %v2019 = vmul.f32 %v1931, %v1931
        %v2020 = vmul.f32 %v1934, %v1934
        %v2021 = vmul.f32 %v1936, %v1936
        %v2022 = vmul.f32 %v1939, %v1939
        %v2023 = vmul.f32 %v1941, %v1941
        %v2024 = vmul.f32 %v1944, %v1944
        %v2025 = vmul.f32 %v1946, %v1946
        %v2026 = vmul.f32 %v1949, %v1949
        %2027 = vadd.xlane.f32.xlu0 %v2002
        %v2028 = vpop.xlane.xlu0 %2027
        %2029 = vadd.xlane.f32.xlu0 %v2003
        %v2030 = vpop.xlane.xlu0 %2029
        %2031 = vadd.xlane.f32.xlu0 %v2004
        %v2032 = vpop.xlane.xlu0 %2031
        %2033 = vadd.xlane.f32.xlu0 %v2005
        %v2034 = vpop.xlane.xlu0 %2033
        %2035 = vadd.xlane.f32.xlu0 %v2006
        %v2036 = vpop.xlane.xlu0 %2035
        %2037 = vadd.xlane.f32.xlu0 %v2007
        %v2038 = vpop.xlane.xlu0 %2037
        %2039 = vadd.xlane.f32.xlu0 %v2008
        %v2040 = vpop.xlane.xlu0 %2039
        %2041 = vadd.xlane.f32.xlu0 %v2009
        %v2042 = vpop.xlane.xlu0 %2041
        %2043 = vadd.xlane.f32.xlu0 %v2010
        %v2044 = vpop.xlane.xlu0 %2043
        %2045 = vadd.xlane.f32.xlu0 %v2011
        %v2046 = vpop.xlane.xlu0 %2045
        %2047 = vadd.xlane.f32.xlu0 %v2012
        %v2048 = vpop.xlane.xlu0 %2047
        %2049 = vadd.xlane.f32.xlu0 %v2013
        %v2050 = vpop.xlane.xlu0 %2049
        %2051 = vadd.xlane.f32.xlu0 %v2014
        %v2052 = vpop.xlane.xlu0 %2051
        %2053 = vadd.xlane.f32.xlu0 %v2015
        %v2054 = vpop.xlane.xlu0 %2053
        %2055 = vadd.xlane.f32.xlu0 %v2016
        %v2056 = vpop.xlane.xlu0 %2055
        %2057 = vadd.xlane.f32.xlu0 %v2017
        %v2058 = vpop.xlane.xlu0 %2057
        %2059 = vadd.xlane.f32.xlu0 %v2018
        %v2060 = vpop.xlane.xlu0 %2059
        %2061 = vadd.xlane.f32.xlu0 %v2019
        %v2062 = vpop.xlane.xlu0 %2061
        %2063 = vadd.xlane.f32.xlu0 %v2020
        %v2064 = vpop.xlane.xlu0 %2063
        %2065 = vadd.xlane.f32.xlu0 %v2021
        %v2066 = vpop.xlane.xlu0 %2065
        %2067 = vadd.xlane.f32.xlu0 %v2022
        %v2068 = vpop.xlane.xlu0 %2067
        %2069 = vadd.xlane.f32.xlu0 %v2023
        %v2070 = vpop.xlane.xlu0 %2069
        %2071 = vadd.xlane.f32.xlu0 %v2024
        %v2072 = vpop.xlane.xlu0 %2071
        %2073 = vadd.xlane.f32.xlu0 %v2025
        %v2074 = vpop.xlane.xlu0 %2073
        %2075 = vadd.xlane.f32.xlu0 %v2026
        %v2076 = vpop.xlane.xlu0 %2075
        %v2077 = vmul.f32 %v1953, 0.0078125
        %v2078 = vmul.f32 %v1955, 0.0078125
        %v2079 = vmul.f32 %v1957, 0.0078125
        %v2080 = vmul.f32 %v1959, 0.0078125
        %v2081 = vmul.f32 %v1961, 0.0078125
        %v2082 = vmul.f32 %v1963, 0.0078125
        %v2083 = vmul.f32 %v1965, 0.0078125
        %v2084 = vmul.f32 %v1967, 0.0078125
        %v2085 = vmul.f32 %v1969, 0.0078125
        %v2086 = vmul.f32 %v1971, 0.0078125
        %v2087 = vmul.f32 %v1973, 0.0078125
        %v2088 = vmul.f32 %v1975, 0.0078125
        %v2089 = vmul.f32 %v1977, 0.0078125
        %v2090 = vmul.f32 %v1979, 0.0078125
        %v2091 = vmul.f32 %v1981, 0.0078125
        %v2092 = vmul.f32 %v1983, 0.0078125
        %v2093 = vmul.f32 %v1985, 0.0078125
        %v2094 = vmul.f32 %v1987, 0.0078125
        %v2095 = vmul.f32 %v1989, 0.0078125
        %v2096 = vmul.f32 %v1991, 0.0078125
        %v2097 = vmul.f32 %v1993, 0.0078125
        %v2098 = vmul.f32 %v1995, 0.0078125
        %v2099 = vmul.f32 %v1997, 0.0078125
        %v2100 = vmul.f32 %v1999, 0.0078125
        %v2101 = vmul.f32 %v2001, 0.0078125
        %v2102 = vmul.f32 %v2028, 0.0078125
        %v2103 = vmul.f32 %v2030, 0.0078125
        %v2104 = vmul.f32 %v2032, 0.0078125
        %v2105 = vmul.f32 %v2034, 0.0078125
        %v2106 = vmul.f32 %v2036, 0.0078125
        %v2107 = vmul.f32 %v2038, 0.0078125
        %v2108 = vmul.f32 %v2040, 0.0078125
        %v2109 = vmul.f32 %v2042, 0.0078125
        %v2110 = vmul.f32 %v2044, 0.0078125
        %v2111 = vmul.f32 %v2046, 0.0078125
        %v2112 = vmul.f32 %v2048, 0.0078125
        %v2113 = vmul.f32 %v2050, 0.0078125
        %v2114 = vmul.f32 %v2052, 0.0078125
        %v2115 = vmul.f32 %v2054, 0.0078125
        %v2116 = vmul.f32 %v2056, 0.0078125
        %v2117 = vmul.f32 %v2058, 0.0078125
        %v2118 = vmul.f32 %v2060, 0.0078125
        %v2119 = vmul.f32 %v2062, 0.0078125
        %v2120 = vmul.f32 %v2064, 0.0078125
        %v2121 = vmul.f32 %v2066, 0.0078125
        %v2122 = vmul.f32 %v2068, 0.0078125
        %v2123 = vmul.f32 %v2070, 0.0078125
        %v2124 = vmul.f32 %v2072, 0.0078125
        %v2125 = vmul.f32 %v2074, 0.0078125
        %v2126 = vmul.f32 %v2076, 0.0078125
        %v2127 = vmul.f32 %v2077, %v2077
        %v2128 = vmul.f32 %v2078, %v2078
        %v2129 = vmul.f32 %v2079, %v2079
        %v2130 = vmul.f32 %v2080, %v2080
        %v2131 = vmul.f32 %v2081, %v2081
        %v2132 = vmul.f32 %v2082, %v2082
        %v2133 = vmul.f32 %v2083, %v2083
        %v2134 = vmul.f32 %v2084, %v2084
        %v2135 = vmul.f32 %v2085, %v2085
        %v2136 = vmul.f32 %v2086, %v2086
        %v2137 = vmul.f32 %v2087, %v2087
        %v2138 = vmul.f32 %v2088, %v2088
        %v2139 = vmul.f32 %v2089, %v2089
        %v2140 = vmul.f32 %v2090, %v2090
        %v2141 = vmul.f32 %v2091, %v2091
        %v2142 = vmul.f32 %v2092, %v2092
        %v2143 = vmul.f32 %v2093, %v2093
        %v2144 = vmul.f32 %v2094, %v2094
        %v2145 = vmul.f32 %v2095, %v2095
        %v2146 = vmul.f32 %v2096, %v2096
        %v2147 = vmul.f32 %v2097, %v2097
        %v2148 = vmul.f32 %v2098, %v2098
        %v2149 = vmul.f32 %v2099, %v2099
        %v2150 = vmul.f32 %v2100, %v2100
        %v2151 = vmul.f32 %v2101, %v2101
        %v2152 = vsub.f32 %v2102, %v2127
        %v2153 = vsub.f32 %v2103, %v2128
        %v2154 = vsub.f32 %v2104, %v2129
        %v2155 = vsub.f32 %v2105, %v2130
        %v2156 = vsub.f32 %v2106, %v2131
        %v2157 = vsub.f32 %v2107, %v2132
        %v2158 = vsub.f32 %v2108, %v2133
        %v2159 = vsub.f32 %v2109, %v2134
        %v2160 = vsub.f32 %v2110, %v2135
        %v2161 = vsub.f32 %v2111, %v2136
        %v2162 = vsub.f32 %v2112, %v2137
        %v2163 = vsub.f32 %v2113, %v2138
        %v2164 = vsub.f32 %v2114, %v2139
        %v2165 = vsub.f32 %v2115, %v2140
        %v2166 = vsub.f32 %v2116, %v2141
        %v2167 = vsub.f32 %v2117, %v2142
        %v2168 = vsub.f32 %v2118, %v2143
        %v2169 = vsub.f32 %v2119, %v2144
        %v2170 = vsub.f32 %v2120, %v2145
        %v2171 = vsub.f32 %v2121, %v2146
        %v2172 = vsub.f32 %v2122, %v2147
        %v2173 = vsub.f32 %v2123, %v2148
        %v2174 = vsub.f32 %v2124, %v2149
        %v2175 = vsub.f32 %v2125, %v2150
        %v2176 = vsub.f32 %v2126, %v2151
        %v2177 = vmax.f32 %v2152, 0.0
        %v2178 = vmax.f32 %v2153, 0.0
        %v2179 = vmax.f32 %v2154, 0.0
        %v2180 = vmax.f32 %v2155, 0.0
        %v2181 = vmax.f32 %v2156, 0.0
        %v2182 = vmax.f32 %v2157, 0.0
        %v2183 = vmax.f32 %v2158, 0.0
        %v2184 = vmax.f32 %v2159, 0.0
        %v2185 = vmax.f32 %v2160, 0.0
        %v2186 = vmax.f32 %v2161, 0.0
        %v2187 = vmax.f32 %v2162, 0.0
        %v2188 = vmax.f32 %v2163, 0.0
        %v2189 = vmax.f32 %v2164, 0.0
        %v2190 = vmax.f32 %v2165, 0.0
        %v2191 = vmax.f32 %v2166, 0.0
        %v2192 = vmax.f32 %v2167, 0.0
        %v2193 = vmax.f32 %v2168, 0.0
        %v2194 = vmax.f32 %v2169, 0.0
        %v2195 = vmax.f32 %v2170, 0.0
        %v2196 = vmax.f32 %v2171, 0.0
        %v2197 = vmax.f32 %v2172, 0.0
        %v2198 = vmax.f32 %v2173, 0.0
        %v2199 = vmax.f32 %v2174, 0.0
        %v2200 = vmax.f32 %v2175, 0.0
        %v2201 = vmax.f32 %v2176, 0.0
        %v2202 = vsub.f32 %v1889, %v2077
        %v2203 = vsub.f32 %v1891, %v2078
        %v2204 = vsub.f32 %v1894, %v2079
        %v2205 = vsub.f32 %v1896, %v2080
        %v2206 = vsub.f32 %v1899, %v2081
        %v2207 = vsub.f32 %v1901, %v2082
        %v2208 = vsub.f32 %v1904, %v2083
        %v2209 = vsub.f32 %v1906, %v2084
        %v2210 = vsub.f32 %v1909, %v2085
        %v2211 = vsub.f32 %v1911, %v2086
        %v2212 = vsub.f32 %v1914, %v2087
        %v2213 = vsub.f32 %v1916, %v2088
        %v2214 = vsub.f32 %v1919, %v2089
        %v2215 = vsub.f32 %v1921, %v2090
        %v2216 = vsub.f32 %v1924, %v2091
        %v2217 = vsub.f32 %v1926, %v2092
        %v2218 = vsub.f32 %v1929, %v2093
        %v2219 = vsub.f32 %v1931, %v2094
        %v2220 = vsub.f32 %v1934, %v2095
        %v2221 = vsub.f32 %v1936, %v2096
        %v2222 = vsub.f32 %v1939, %v2097
        %v2223 = vsub.f32 %v1941, %v2098
        %v2224 = vsub.f32 %v1944, %v2099
        %v2225 = vsub.f32 %v1946, %v2100
        %v2226 = vsub.f32 %v1949, %v2101
        %v2227 = vadd.f32 %v2177, 1e-05
        %v2228 = vadd.f32 %v2178, 1e-05
        %v2229 = vadd.f32 %v2179, 1e-05
        %v2230 = vadd.f32 %v2180, 1e-05
        %v2231 = vadd.f32 %v2181, 1e-05
        %v2232 = vadd.f32 %v2182, 1e-05
        %v2233 = vadd.f32 %v2183, 1e-05
        %v2234 = vadd.f32 %v2184, 1e-05
        %v2235 = vadd.f32 %v2185, 1e-05
        %v2236 = vadd.f32 %v2186, 1e-05
        %v2237 = vadd.f32 %v2187, 1e-05
        %v2238 = vadd.f32 %v2188, 1e-05
        %v2239 = vadd.f32 %v2189, 1e-05
        %v2240 = vadd.f32 %v2190, 1e-05
        %v2241 = vadd.f32 %v2191, 1e-05
        %v2242 = vadd.f32 %v2192, 1e-05
        %v2243 = vadd.f32 %v2193, 1e-05
        %v2244 = vadd.f32 %v2194, 1e-05
        %v2245 = vadd.f32 %v2195, 1e-05
        %v2246 = vadd.f32 %v2196, 1e-05
        %v2247 = vadd.f32 %v2197, 1e-05
        %v2248 = vadd.f32 %v2198, 1e-05
        %v2249 = vadd.f32 %v2199, 1e-05
        %v2250 = vadd.f32 %v2200, 1e-05
        %v2251 = vadd.f32 %v2201, 1e-05
        %v2252 = vrsqrt.pop %v2227
        %v2253 = vmul.f32 %v2252, %v2227
        %v2254 = vmul.f32 %v2253, %v2252
        %v2255 = vmul.f32 0.5, %v2254
        %v2256 = vsub.f32 1.5, %v2255
        %v2257 = vmul.f32 %v2252, %v2256
        %vm2258 = vweird.f32 %v2227
        %vm2259 = vweird.f32 %v2252
        %vm2260 = vmor %vm2258, %vm2259
        %v2261 = vsel %vm2260, %v2252, %v2257
        %v2262 = vrsqrt.pop %v2228
        %v2263 = vmul.f32 %v2262, %v2228
        %v2264 = vmul.f32 %v2263, %v2262
        %v2265 = vmul.f32 0.5, %v2264
        %v2266 = vsub.f32 1.5, %v2265
        %v2267 = vmul.f32 %v2262, %v2266
        %vm2268 = vweird.f32 %v2228
        %vm2269 = vweird.f32 %v2262
        %vm2270 = vmor %vm2268, %vm2269
        %v2271 = vsel %vm2270, %v2262, %v2267
        %v2272 = vrsqrt.pop %v2229
        %v2273 = vmul.f32 %v2272, %v2229
        %v2274 = vmul.f32 %v2273, %v2272
        %v2275 = vmul.f32 0.5, %v2274
        %v2276 = vsub.f32 1.5, %v2275
        %v2277 = vmul.f32 %v2272, %v2276
        %vm2278 = vweird.f32 %v2229
        %vm2279 = vweird.f32 %v2272
        %vm2280 = vmor %vm2278, %vm2279
        %v2281 = vsel %vm2280, %v2272, %v2277
        %v2282 = vrsqrt.pop %v2230
        %v2283 = vmul.f32 %v2282, %v2230
        %v2284 = vmul.f32 %v2283, %v2282
        %v2285 = vmul.f32 0.5, %v2284
        %v2286 = vsub.f32 1.5, %v2285
        %v2287 = vmul.f32 %v2282, %v2286
        %vm2288 = vweird.f32 %v2230
        %vm2289 = vweird.f32 %v2282
        %vm2290 = vmor %vm2288, %vm2289
        %v2291 = vsel %vm2290, %v2282, %v2287
        %v2292 = vrsqrt.pop %v2231
        %v2293 = vmul.f32 %v2292, %v2231
        %v2294 = vmul.f32 %v2293, %v2292
        %v2295 = vmul.f32 0.5, %v2294
        %v2296 = vsub.f32 1.5, %v2295
        %v2297 = vmul.f32 %v2292, %v2296
        %vm2298 = vweird.f32 %v2231
        %vm2299 = vweird.f32 %v2292
        %vm2300 = vmor %vm2298, %vm2299
        %v2301 = vsel %vm2300, %v2292, %v2297
        %v2302 = vrsqrt.pop %v2232
        %v2303 = vmul.f32 %v2302, %v2232
        %v2304 = vmul.f32 %v2303, %v2302
        %v2305 = vmul.f32 0.5, %v2304
        %v2306 = vsub.f32 1.5, %v2305
        %v2307 = vmul.f32 %v2302, %v2306
        %vm2308 = vweird.f32 %v2232
        %vm2309 = vweird.f32 %v2302
        %vm2310 = vmor %vm2308, %vm2309
        %v2311 = vsel %vm2310, %v2302, %v2307
        %v2312 = vrsqrt.pop %v2233
        %v2313 = vmul.f32 %v2312, %v2233
        %v2314 = vmul.f32 %v2313, %v2312
        %v2315 = vmul.f32 0.5, %v2314
        %v2316 = vsub.f32 1.5, %v2315
        %v2317 = vmul.f32 %v2312, %v2316
        %vm2318 = vweird.f32 %v2233
        %vm2319 = vweird.f32 %v2312
        %vm2320 = vmor %vm2318, %vm2319
        %v2321 = vsel %vm2320, %v2312, %v2317
        %v2322 = vrsqrt.pop %v2234
        %v2323 = vmul.f32 %v2322, %v2234
        %v2324 = vmul.f32 %v2323, %v2322
        %v2325 = vmul.f32 0.5, %v2324
        %v2326 = vsub.f32 1.5, %v2325
        %v2327 = vmul.f32 %v2322, %v2326
        %vm2328 = vweird.f32 %v2234
        %vm2329 = vweird.f32 %v2322
        %vm2330 = vmor %vm2328, %vm2329
        %v2331 = vsel %vm2330, %v2322, %v2327
        %v2332 = vrsqrt.pop %v2235
        %v2333 = vmul.f32 %v2332, %v2235
        %v2334 = vmul.f32 %v2333, %v2332
        %v2335 = vmul.f32 0.5, %v2334
        %v2336 = vsub.f32 1.5, %v2335
        %v2337 = vmul.f32 %v2332, %v2336
        %vm2338 = vweird.f32 %v2235
        %vm2339 = vweird.f32 %v2332
        %vm2340 = vmor %vm2338, %vm2339
        %v2341 = vsel %vm2340, %v2332, %v2337
        %v2342 = vrsqrt.pop %v2236
        %v2343 = vmul.f32 %v2342, %v2236
        %v2344 = vmul.f32 %v2343, %v2342
        %v2345 = vmul.f32 0.5, %v2344
        %v2346 = vsub.f32 1.5, %v2345
        %v2347 = vmul.f32 %v2342, %v2346
        %vm2348 = vweird.f32 %v2236
        %vm2349 = vweird.f32 %v2342
        %vm2350 = vmor %vm2348, %vm2349
        %v2351 = vsel %vm2350, %v2342, %v2347
        %v2352 = vrsqrt.pop %v2237
        %v2353 = vmul.f32 %v2352, %v2237
        %v2354 = vmul.f32 %v2353, %v2352
        %v2355 = vmul.f32 0.5, %v2354
        %v2356 = vsub.f32 1.5, %v2355
        %v2357 = vmul.f32 %v2352, %v2356
        %vm2358 = vweird.f32 %v2237
        %vm2359 = vweird.f32 %v2352
        %vm2360 = vmor %vm2358, %vm2359
        %v2361 = vsel %vm2360, %v2352, %v2357
        %v2362 = vrsqrt.pop %v2238
        %v2363 = vmul.f32 %v2362, %v2238
        %v2364 = vmul.f32 %v2363, %v2362
        %v2365 = vmul.f32 0.5, %v2364
        %v2366 = vsub.f32 1.5, %v2365
        %v2367 = vmul.f32 %v2362, %v2366
        %vm2368 = vweird.f32 %v2238
        %vm2369 = vweird.f32 %v2362
        %vm2370 = vmor %vm2368, %vm2369
        %v2371 = vsel %vm2370, %v2362, %v2367
        %v2372 = vrsqrt.pop %v2239
        %v2373 = vmul.f32 %v2372, %v2239
        %v2374 = vmul.f32 %v2373, %v2372
        %v2375 = vmul.f32 0.5, %v2374
        %v2376 = vsub.f32 1.5, %v2375
        %v2377 = vmul.f32 %v2372, %v2376
        %vm2378 = vweird.f32 %v2239
        %vm2379 = vweird.f32 %v2372
        %vm2380 = vmor %vm2378, %vm2379
        %v2381 = vsel %vm2380, %v2372, %v2377
        %v2382 = vrsqrt.pop %v2240
        %v2383 = vmul.f32 %v2382, %v2240
        %v2384 = vmul.f32 %v2383, %v2382
        %v2385 = vmul.f32 0.5, %v2384
        %v2386 = vsub.f32 1.5, %v2385
        %v2387 = vmul.f32 %v2382, %v2386
        %vm2388 = vweird.f32 %v2240
        %vm2389 = vweird.f32 %v2382
        %vm2390 = vmor %vm2388, %vm2389
        %v2391 = vsel %vm2390, %v2382, %v2387
        %v2392 = vrsqrt.pop %v2241
        %v2393 = vmul.f32 %v2392, %v2241
        %v2394 = vmul.f32 %v2393, %v2392
        %v2395 = vmul.f32 0.5, %v2394
        %v2396 = vsub.f32 1.5, %v2395
        %v2397 = vmul.f32 %v2392, %v2396
        %vm2398 = vweird.f32 %v2241
        %vm2399 = vweird.f32 %v2392
        %vm2400 = vmor %vm2398, %vm2399
        %v2401 = vsel %vm2400, %v2392, %v2397
        %v2402 = vrsqrt.pop %v2242
        %v2403 = vmul.f32 %v2402, %v2242
        %v2404 = vmul.f32 %v2403, %v2402
        %v2405 = vmul.f32 0.5, %v2404
        %v2406 = vsub.f32 1.5, %v2405
        %v2407 = vmul.f32 %v2402, %v2406
        %vm2408 = vweird.f32 %v2242
        %vm2409 = vweird.f32 %v2402
        %vm2410 = vmor %vm2408, %vm2409
        %v2411 = vsel %vm2410, %v2402, %v2407
        %v2412 = vrsqrt.pop %v2243
        %v2413 = vmul.f32 %v2412, %v2243
        %v2414 = vmul.f32 %v2413, %v2412
        %v2415 = vmul.f32 0.5, %v2414
        %v2416 = vsub.f32 1.5, %v2415
        %v2417 = vmul.f32 %v2412, %v2416
        %vm2418 = vweird.f32 %v2243
        %vm2419 = vweird.f32 %v2412
        %vm2420 = vmor %vm2418, %vm2419
        %v2421 = vsel %vm2420, %v2412, %v2417
        %v2422 = vrsqrt.pop %v2244
        %v2423 = vmul.f32 %v2422, %v2244
        %v2424 = vmul.f32 %v2423, %v2422
        %v2425 = vmul.f32 0.5, %v2424
        %v2426 = vsub.f32 1.5, %v2425
        %v2427 = vmul.f32 %v2422, %v2426
        %vm2428 = vweird.f32 %v2244
        %vm2429 = vweird.f32 %v2422
        %vm2430 = vmor %vm2428, %vm2429
        %v2431 = vsel %vm2430, %v2422, %v2427
        %v2432 = vrsqrt.pop %v2245
        %v2433 = vmul.f32 %v2432, %v2245
        %v2434 = vmul.f32 %v2433, %v2432
        %v2435 = vmul.f32 0.5, %v2434
        %v2436 = vsub.f32 1.5, %v2435
        %v2437 = vmul.f32 %v2432, %v2436
        %vm2438 = vweird.f32 %v2245
        %vm2439 = vweird.f32 %v2432
        %vm2440 = vmor %vm2438, %vm2439
        %v2441 = vsel %vm2440, %v2432, %v2437
        %v2442 = vrsqrt.pop %v2246
        %v2443 = vmul.f32 %v2442, %v2246
        %v2444 = vmul.f32 %v2443, %v2442
        %v2445 = vmul.f32 0.5, %v2444
        %v2446 = vsub.f32 1.5, %v2445
        %v2447 = vmul.f32 %v2442, %v2446
        %vm2448 = vweird.f32 %v2246
        %vm2449 = vweird.f32 %v2442
        %vm2450 = vmor %vm2448, %vm2449
        %v2451 = vsel %vm2450, %v2442, %v2447
        %v2452 = vrsqrt.pop %v2247
        %v2453 = vmul.f32 %v2452, %v2247
        %v2454 = vmul.f32 %v2453, %v2452
        %v2455 = vmul.f32 0.5, %v2454
        %v2456 = vsub.f32 1.5, %v2455
        %v2457 = vmul.f32 %v2452, %v2456
        %vm2458 = vweird.f32 %v2247
        %vm2459 = vweird.f32 %v2452
        %vm2460 = vmor %vm2458, %vm2459
        %v2461 = vsel %vm2460, %v2452, %v2457
        %v2462 = vrsqrt.pop %v2248
        %v2463 = vmul.f32 %v2462, %v2248
        %v2464 = vmul.f32 %v2463, %v2462
        %v2465 = vmul.f32 0.5, %v2464
        %v2466 = vsub.f32 1.5, %v2465
        %v2467 = vmul.f32 %v2462, %v2466
        %vm2468 = vweird.f32 %v2248
        %vm2469 = vweird.f32 %v2462
        %vm2470 = vmor %vm2468, %vm2469
        %v2471 = vsel %vm2470, %v2462, %v2467
        %v2472 = vrsqrt.pop %v2249
        %v2473 = vmul.f32 %v2472, %v2249
        %v2474 = vmul.f32 %v2473, %v2472
        %v2475 = vmul.f32 0.5, %v2474
        %v2476 = vsub.f32 1.5, %v2475
        %v2477 = vmul.f32 %v2472, %v2476
        %vm2478 = vweird.f32 %v2249
        %vm2479 = vweird.f32 %v2472
        %vm2480 = vmor %vm2478, %vm2479
        %v2481 = vsel %vm2480, %v2472, %v2477
        %v2482 = vrsqrt.pop %v2250
        %v2483 = vmul.f32 %v2482, %v2250
        %v2484 = vmul.f32 %v2483, %v2482
        %v2485 = vmul.f32 0.5, %v2484
        %v2486 = vsub.f32 1.5, %v2485
        %v2487 = vmul.f32 %v2482, %v2486
        %vm2488 = vweird.f32 %v2250
        %vm2489 = vweird.f32 %v2482
        %vm2490 = vmor %vm2488, %vm2489
        %v2491 = vsel %vm2490, %v2482, %v2487
        %v2492 = vrsqrt.pop %v2251
        %v2493 = vmul.f32 %v2492, %v2251
        %v2494 = vmul.f32 %v2493, %v2492
        %v2495 = vmul.f32 0.5, %v2494
        %v2496 = vsub.f32 1.5, %v2495
        %v2497 = vmul.f32 %v2492, %v2496
        %vm2498 = vweird.f32 %v2251
        %vm2499 = vweird.f32 %v2492
        %vm2500 = vmor %vm2498, %vm2499
        %v2501 = vsel %vm2500, %v2492, %v2497
        %v2502 = vmul.f32 %v2202, %v2261
        %v2503 = vmul.f32 %v2203, %v2271
        %v2504 = vmul.f32 %v2204, %v2281
        %v2505 = vmul.f32 %v2205, %v2291
        %v2506 = vmul.f32 %v2206, %v2301
        %v2507 = vmul.f32 %v2207, %v2311
        %v2508 = vmul.f32 %v2208, %v2321
        %v2509 = vmul.f32 %v2209, %v2331
        %v2510 = vmul.f32 %v2210, %v2341
        %v2511 = vmul.f32 %v2211, %v2351
        %v2512 = vmul.f32 %v2212, %v2361
        %v2513 = vmul.f32 %v2213, %v2371
        %v2514 = vmul.f32 %v2214, %v2381
        %v2515 = vmul.f32 %v2215, %v2391
        %v2516 = vmul.f32 %v2216, %v2401
        %v2517 = vmul.f32 %v2217, %v2411
        %v2518 = vmul.f32 %v2218, %v2421
        %v2519 = vmul.f32 %v2219, %v2431
        %v2520 = vmul.f32 %v2220, %v2441
        %v2521 = vmul.f32 %v2221, %v2451
        %v2522 = vmul.f32 %v2222, %v2461
        %v2523 = vmul.f32 %v2223, %v2471
        %v2524 = vmul.f32 %v2224, %v2481
        %v2525 = vmul.f32 %v2225, %v2491
        %v2526 = vmul.f32 %v2226, %v2501
        %v2527 = vmax.f32 %v2502, 0.0
        %v2528 = vmax.f32 %v2503, 0.0
        %v2529 = vmax.f32 %v2504, 0.0
        %v2530 = vmax.f32 %v2505, 0.0
        %v2531 = vmax.f32 %v2506, 0.0
        %v2532 = vmax.f32 %v2507, 0.0
        %v2533 = vmax.f32 %v2508, 0.0
        %v2534 = vmax.f32 %v2509, 0.0
        %v2535 = vmax.f32 %v2510, 0.0
        %v2536 = vmax.f32 %v2511, 0.0
        %v2537 = vmax.f32 %v2512, 0.0
        %v2538 = vmax.f32 %v2513, 0.0
        %v2539 = vmax.f32 %v2514, 0.0
        %v2540 = vmax.f32 %v2515, 0.0
        %v2541 = vmax.f32 %v2516, 0.0
        %v2542 = vmax.f32 %v2517, 0.0
        %v2543 = vmax.f32 %v2518, 0.0
        %v2544 = vmax.f32 %v2519, 0.0
        %v2545 = vmax.f32 %v2520, 0.0
        %v2546 = vmax.f32 %v2521, 0.0
        %v2547 = vmax.f32 %v2522, 0.0
        %v2548 = vmax.f32 %v2523, 0.0
        %v2549 = vmax.f32 %v2524, 0.0
        %v2550 = vmax.f32 %v2525, 0.0
        %v2551 = vmax.f32 %v2526, 0.0
        %v2552 = vpack.c.bf16 %v2528, %v2527
        %v2553 = vpack.c.bf16 %v2530, %v2529
        %v2554 = vpack.c.bf16 %v2532, %v2531
        %v2555 = vpack.c.bf16 %v2534, %v2533
        %v2556 = vpack.c.bf16 %v2536, %v2535
        %v2557 = vpack.c.bf16 %v2538, %v2537
        %v2558 = vpack.c.bf16 %v2540, %v2539
        %v2559 = vpack.c.bf16 %v2542, %v2541
        %v2560 = vpack.c.bf16 %v2544, %v2543
        %v2561 = vpack.c.bf16 %v2546, %v2545
        %v2562 = vpack.c.bf16 %v2548, %v2547
        %v2563 = vpack.c.bf16 %v2550, %v2549
        %v2564 = vpack.c.bf16 %v2551, %v2551
        %s2565 = scalar_lea.vmem %s2, 128
        %v2566 = vld [vmem:[%s2565] sm:$0xf]
        %v2567 = vld [vmem:[%s2565 + $0x4] sm:$0xf]
        %v2568 = vld [vmem:[%s2565 + $0x8] sm:$0xf]
        %v2569 = vld [vmem:[%s2565 + $0xc] sm:$0xf]
        %v2570 = vld [vmem:[%s2565 + $0x10] sm:$0xf]
        %v2571 = vld [vmem:[%s2565 + $0x14] sm:$0xf]
        %v2572 = vld [vmem:[%s2565 + $0x18] sm:$0xf]
        %v2573 = vld [vmem:[%s2565 + $0x1c] sm:$0xf]
        %v2574 = vld [vmem:[%s2565 + $0x20] sm:$0xf]
        %v2575 = vld [vmem:[%s2565 + $0x24] sm:$0xf]
        %v2576 = vld [vmem:[%s2565 + $0x28] sm:$0xf]
        %v2577 = vld [vmem:[%s2565 + $0x2c] sm:$0xf]
        %v2578 = vld [vmem:[%s2565 + $0x30] sm:$0xf]
        %v2579 = vld [vmem:[%s2565 + $0x34] sm:$0xf]
        %v2580 = vld [vmem:[%s2565 + $0x38] sm:$0xf]
        %v2581 = vld [vmem:[%s2565 + $0x3c] sm:$0xf]
        %s2582 = scalar_lea.vmem %s4, 3
        %v2583 = vld [vmem:[%s2582] sm:$0x1]
        %v2585 = vperm.slane %v2583, 0
        %v2603 = vunpack.c.l.b16 %v2566
        %v2604 = vunpack.c.l.b16 %v2567
        %v2605 = vunpack.c.l.b16 %v2568
        %v2606 = vunpack.c.l.b16 %v2569
        %v2607 = vunpack.c.l.b16 %v2570
        %v2608 = vunpack.c.l.b16 %v2571
        %v2609 = vunpack.c.l.b16 %v2572
        %v2610 = vunpack.c.l.b16 %v2573
        %v2611 = vunpack.c.l.b16 %v2574
        %v2612 = vunpack.c.l.b16 %v2575
        %v2613 = vunpack.c.l.b16 %v2576
        %v2614 = vunpack.c.l.b16 %v2577
        %v2615 = vunpack.c.l.b16 %v2578
        %v2616 = vunpack.c.l.b16 %v2579
        %v2617 = vunpack.c.l.b16 %v2580
        %v2618 = vunpack.c.l.b16 %v2581
        %v2619 = vpack.c.b16 %v2604, %v2603
        %v2620 = vpack.c.b16 %v2606, %v2605
        %v2621 = vpack.c.b16 %v2608, %v2607
        %v2622 = vpack.c.b16 %v2610, %v2609
        %v2623 = vpack.c.b16 %v2612, %v2611
        %v2624 = vpack.c.b16 %v2614, %v2613
        %v2625 = vpack.c.b16 %v2616, %v2615
        %v2626 = vpack.c.b16 %v2618, %v2617
        %2635 = vmatpush.bf16.msra.mxu0 %v2626
        %2636 = vmatpush.bf16.msra.mxu0 %v2625
        %2637 = vmatpush.bf16.msra.mxu0 %v2624
        %2638 = vmatpush.bf16.msra.mxu0 %v2623
        %2639 = vmatpush.bf16.msra.mxu0 %v2622
        %2640 = vmatpush.bf16.msra.mxu0 %v2621
        %2641 = vmatpush.bf16.msra.mxu0 %v2620
        %2642 = vmatpush.bf16.msra.mxu0 %v2619
        %2643 = vmatmul.bf16.gmra.mxu0 %v2552
        %v2644 = vpop.f32.mrf.mxu0
        %v2645 = vadd.f32 %v2585, %v2644
        %v2646 = vpop.f32.mrf.mxu0
        %v2647 = vadd.f32 %v2585, %v2646
        %2648 = vmatmul.bf16.gmra.mxu0 %v2553
        %v2649 = vpop.f32.mrf.mxu0
        %v2650 = vadd.f32 %v2585, %v2649
        %v2651 = vpop.f32.mrf.mxu0
        %v2652 = vadd.f32 %v2585, %v2651
        %2653 = vmatmul.bf16.gmra.mxu0 %v2554
        %v2654 = vpop.f32.mrf.mxu0
        %v2655 = vadd.f32 %v2585, %v2654
        %v2656 = vpop.f32.mrf.mxu0
        %v2657 = vadd.f32 %v2585, %v2656
        %2658 = vmatmul.bf16.gmra.mxu0 %v2555
        %v2659 = vpop.f32.mrf.mxu0
        %v2660 = vadd.f32 %v2585, %v2659
        %v2661 = vpop.f32.mrf.mxu0
        %v2662 = vadd.f32 %v2585, %v2661
        %2663 = vmatmul.bf16.gmra.mxu0 %v2556
        %v2664 = vpop.f32.mrf.mxu0
        %v2665 = vadd.f32 %v2585, %v2664
        %v2666 = vpop.f32.mrf.mxu0
        %v2667 = vadd.f32 %v2585, %v2666
        %2668 = vmatmul.bf16.gmra.mxu0 %v2557
        %v2669 = vpop.f32.mrf.mxu0
        %v2670 = vadd.f32 %v2585, %v2669
        %v2671 = vpop.f32.mrf.mxu0
        %v2672 = vadd.f32 %v2585, %v2671
        %2673 = vmatmul.bf16.gmra.mxu0 %v2558
        %v2674 = vpop.f32.mrf.mxu0
        %v2675 = vadd.f32 %v2585, %v2674
        %v2676 = vpop.f32.mrf.mxu0
        %v2677 = vadd.f32 %v2585, %v2676
        %2678 = vmatmul.bf16.gmra.mxu0 %v2559
        %v2679 = vpop.f32.mrf.mxu0
        %v2680 = vadd.f32 %v2585, %v2679
        %v2681 = vpop.f32.mrf.mxu0
        %v2682 = vadd.f32 %v2585, %v2681
        %2683 = vmatmul.bf16.gmra.mxu0 %v2560
        %v2684 = vpop.f32.mrf.mxu0
        %v2685 = vadd.f32 %v2585, %v2684
        %v2686 = vpop.f32.mrf.mxu0
        %v2687 = vadd.f32 %v2585, %v2686
        %2688 = vmatmul.bf16.gmra.mxu0 %v2561
        %v2689 = vpop.f32.mrf.mxu0
        %v2690 = vadd.f32 %v2585, %v2689
        %v2691 = vpop.f32.mrf.mxu0
        %v2692 = vadd.f32 %v2585, %v2691
        %2693 = vmatmul.bf16.gmra.mxu0 %v2562
        %v2694 = vpop.f32.mrf.mxu0
        %v2695 = vadd.f32 %v2585, %v2694
        %v2696 = vpop.f32.mrf.mxu0
        %v2697 = vadd.f32 %v2585, %v2696
        %2698 = vmatmul.bf16.gmra.mxu0 %v2563
        %v2699 = vpop.f32.mrf.mxu0
        %v2700 = vadd.f32 %v2585, %v2699
        %v2701 = vpop.f32.mrf.mxu0
        %v2702 = vadd.f32 %v2585, %v2701
        %2703 = vmatmul.bf16.gmra.mxu0 %v2564
        %v2704 = vpop.f32.mrf.mxu0
        %v2705 = vadd.f32 %v2585, %v2704
        %v2706 = vpop.f32.mrf.mxu0
        %2707 = vdwg.mxu0
        %2708 = vadd.xlane.f32.xlu0 %v2645
        %v2709 = vpop.xlane.xlu0 %2708
        %2710 = vadd.xlane.f32.xlu0 %v2647
        %v2711 = vpop.xlane.xlu0 %2710
        %2712 = vadd.xlane.f32.xlu0 %v2650
        %v2713 = vpop.xlane.xlu0 %2712
        %2714 = vadd.xlane.f32.xlu0 %v2652
        %v2715 = vpop.xlane.xlu0 %2714
        %2716 = vadd.xlane.f32.xlu0 %v2655
        %v2717 = vpop.xlane.xlu0 %2716
        %2718 = vadd.xlane.f32.xlu0 %v2657
        %v2719 = vpop.xlane.xlu0 %2718
        %2720 = vadd.xlane.f32.xlu0 %v2660
        %v2721 = vpop.xlane.xlu0 %2720
        %2722 = vadd.xlane.f32.xlu0 %v2662
        %v2723 = vpop.xlane.xlu0 %2722
        %2724 = vadd.xlane.f32.xlu0 %v2665
        %v2725 = vpop.xlane.xlu0 %2724
        %2726 = vadd.xlane.f32.xlu0 %v2667
        %v2727 = vpop.xlane.xlu0 %2726
        %2728 = vadd.xlane.f32.xlu0 %v2670
        %v2729 = vpop.xlane.xlu0 %2728
        %2730 = vadd.xlane.f32.xlu0 %v2672
        %v2731 = vpop.xlane.xlu0 %2730
        %2732 = vadd.xlane.f32.xlu0 %v2675
        %v2733 = vpop.xlane.xlu0 %2732
        %2734 = vadd.xlane.f32.xlu0 %v2677
        %v2735 = vpop.xlane.xlu0 %2734
        %2736 = vadd.xlane.f32.xlu0 %v2680
        %v2737 = vpop.xlane.xlu0 %2736
        %2738 = vadd.xlane.f32.xlu0 %v2682
        %v2739 = vpop.xlane.xlu0 %2738
        %2740 = vadd.xlane.f32.xlu0 %v2685
        %v2741 = vpop.xlane.xlu0 %2740
        %2742 = vadd.xlane.f32.xlu0 %v2687
        %v2743 = vpop.xlane.xlu0 %2742
        %2744 = vadd.xlane.f32.xlu0 %v2690
        %v2745 = vpop.xlane.xlu0 %2744
        %2746 = vadd.xlane.f32.xlu0 %v2692
        %v2747 = vpop.xlane.xlu0 %2746
        %2748 = vadd.xlane.f32.xlu0 %v2695
        %v2749 = vpop.xlane.xlu0 %2748
        %2750 = vadd.xlane.f32.xlu0 %v2697
        %v2751 = vpop.xlane.xlu0 %2750
        %2752 = vadd.xlane.f32.xlu0 %v2700
        %v2753 = vpop.xlane.xlu0 %2752
        %2754 = vadd.xlane.f32.xlu0 %v2702
        %v2755 = vpop.xlane.xlu0 %2754
        %2756 = vadd.xlane.f32.xlu0 %v2705
        %v2757 = vpop.xlane.xlu0 %2756
        %v2758 = vmul.f32 %v2645, %v2645
        %v2759 = vmul.f32 %v2647, %v2647
        %v2760 = vmul.f32 %v2650, %v2650
        %v2761 = vmul.f32 %v2652, %v2652
        %v2762 = vmul.f32 %v2655, %v2655
        %v2763 = vmul.f32 %v2657, %v2657
        %v2764 = vmul.f32 %v2660, %v2660
        %v2765 = vmul.f32 %v2662, %v2662
        %v2766 = vmul.f32 %v2665, %v2665
        %v2767 = vmul.f32 %v2667, %v2667
        %v2768 = vmul.f32 %v2670, %v2670
        %v2769 = vmul.f32 %v2672, %v2672
        %v2770 = vmul.f32 %v2675, %v2675
        %v2771 = vmul.f32 %v2677, %v2677
        %v2772 = vmul.f32 %v2680, %v2680
        %v2773 = vmul.f32 %v2682, %v2682
        %v2774 = vmul.f32 %v2685, %v2685
        %v2775 = vmul.f32 %v2687, %v2687
        %v2776 = vmul.f32 %v2690, %v2690
        %v2777 = vmul.f32 %v2692, %v2692
        %v2778 = vmul.f32 %v2695, %v2695
        %v2779 = vmul.f32 %v2697, %v2697
        %v2780 = vmul.f32 %v2700, %v2700
        %v2781 = vmul.f32 %v2702, %v2702
        %v2782 = vmul.f32 %v2705, %v2705
        %2783 = vadd.xlane.f32.xlu0 %v2758
        %v2784 = vpop.xlane.xlu0 %2783
        %2785 = vadd.xlane.f32.xlu0 %v2759
        %v2786 = vpop.xlane.xlu0 %2785
        %2787 = vadd.xlane.f32.xlu0 %v2760
        %v2788 = vpop.xlane.xlu0 %2787
        %2789 = vadd.xlane.f32.xlu0 %v2761
        %v2790 = vpop.xlane.xlu0 %2789
        %2791 = vadd.xlane.f32.xlu0 %v2762
        %v2792 = vpop.xlane.xlu0 %2791
        %2793 = vadd.xlane.f32.xlu0 %v2763
        %v2794 = vpop.xlane.xlu0 %2793
        %2795 = vadd.xlane.f32.xlu0 %v2764
        %v2796 = vpop.xlane.xlu0 %2795
        %2797 = vadd.xlane.f32.xlu0 %v2765
        %v2798 = vpop.xlane.xlu0 %2797
        %2799 = vadd.xlane.f32.xlu0 %v2766
        %v2800 = vpop.xlane.xlu0 %2799
        %2801 = vadd.xlane.f32.xlu0 %v2767
        %v2802 = vpop.xlane.xlu0 %2801
        %2803 = vadd.xlane.f32.xlu0 %v2768
        %v2804 = vpop.xlane.xlu0 %2803
        %2805 = vadd.xlane.f32.xlu0 %v2769
        %v2806 = vpop.xlane.xlu0 %2805
        %2807 = vadd.xlane.f32.xlu0 %v2770
        %v2808 = vpop.xlane.xlu0 %2807
        %2809 = vadd.xlane.f32.xlu0 %v2771
        %v2810 = vpop.xlane.xlu0 %2809
        %2811 = vadd.xlane.f32.xlu0 %v2772
        %v2812 = vpop.xlane.xlu0 %2811
        %2813 = vadd.xlane.f32.xlu0 %v2773
        %v2814 = vpop.xlane.xlu0 %2813
        %2815 = vadd.xlane.f32.xlu0 %v2774
        %v2816 = vpop.xlane.xlu0 %2815
        %2817 = vadd.xlane.f32.xlu0 %v2775
        %v2818 = vpop.xlane.xlu0 %2817
        %2819 = vadd.xlane.f32.xlu0 %v2776
        %v2820 = vpop.xlane.xlu0 %2819
        %2821 = vadd.xlane.f32.xlu0 %v2777
        %v2822 = vpop.xlane.xlu0 %2821
        %2823 = vadd.xlane.f32.xlu0 %v2778
        %v2824 = vpop.xlane.xlu0 %2823
        %2825 = vadd.xlane.f32.xlu0 %v2779
        %v2826 = vpop.xlane.xlu0 %2825
        %2827 = vadd.xlane.f32.xlu0 %v2780
        %v2828 = vpop.xlane.xlu0 %2827
        %2829 = vadd.xlane.f32.xlu0 %v2781
        %v2830 = vpop.xlane.xlu0 %2829
        %2831 = vadd.xlane.f32.xlu0 %v2782
        %v2832 = vpop.xlane.xlu0 %2831
        %v2833 = vmul.f32 %v2709, 0.0078125
        %v2834 = vmul.f32 %v2711, 0.0078125
        %v2835 = vmul.f32 %v2713, 0.0078125
        %v2836 = vmul.f32 %v2715, 0.0078125
        %v2837 = vmul.f32 %v2717, 0.0078125
        %v2838 = vmul.f32 %v2719, 0.0078125
        %v2839 = vmul.f32 %v2721, 0.0078125
        %v2840 = vmul.f32 %v2723, 0.0078125
        %v2841 = vmul.f32 %v2725, 0.0078125
        %v2842 = vmul.f32 %v2727, 0.0078125
        %v2843 = vmul.f32 %v2729, 0.0078125
        %v2844 = vmul.f32 %v2731, 0.0078125
        %v2845 = vmul.f32 %v2733, 0.0078125
        %v2846 = vmul.f32 %v2735, 0.0078125
        %v2847 = vmul.f32 %v2737, 0.0078125
        %v2848 = vmul.f32 %v2739, 0.0078125
        %v2849 = vmul.f32 %v2741, 0.0078125
        %v2850 = vmul.f32 %v2743, 0.0078125
        %v2851 = vmul.f32 %v2745, 0.0078125
        %v2852 = vmul.f32 %v2747, 0.0078125
        %v2853 = vmul.f32 %v2749, 0.0078125
        %v2854 = vmul.f32 %v2751, 0.0078125
        %v2855 = vmul.f32 %v2753, 0.0078125
        %v2856 = vmul.f32 %v2755, 0.0078125
        %v2857 = vmul.f32 %v2757, 0.0078125
        %v2858 = vmul.f32 %v2784, 0.0078125
        %v2859 = vmul.f32 %v2786, 0.0078125
        %v2860 = vmul.f32 %v2788, 0.0078125
        %v2861 = vmul.f32 %v2790, 0.0078125
        %v2862 = vmul.f32 %v2792, 0.0078125
        %v2863 = vmul.f32 %v2794, 0.0078125
        %v2864 = vmul.f32 %v2796, 0.0078125
        %v2865 = vmul.f32 %v2798, 0.0078125
        %v2866 = vmul.f32 %v2800, 0.0078125
        %v2867 = vmul.f32 %v2802, 0.0078125
        %v2868 = vmul.f32 %v2804, 0.0078125
        %v2869 = vmul.f32 %v2806, 0.0078125
        %v2870 = vmul.f32 %v2808, 0.0078125
        %v2871 = vmul.f32 %v2810, 0.0078125
        %v2872 = vmul.f32 %v2812, 0.0078125
        %v2873 = vmul.f32 %v2814, 0.0078125
        %v2874 = vmul.f32 %v2816, 0.0078125
        %v2875 = vmul.f32 %v2818, 0.0078125
        %v2876 = vmul.f32 %v2820, 0.0078125
        %v2877 = vmul.f32 %v2822, 0.0078125
        %v2878 = vmul.f32 %v2824, 0.0078125
        %v2879 = vmul.f32 %v2826, 0.0078125
        %v2880 = vmul.f32 %v2828, 0.0078125
        %v2881 = vmul.f32 %v2830, 0.0078125
        %v2882 = vmul.f32 %v2832, 0.0078125
        %v2883 = vmul.f32 %v2833, %v2833
        %v2884 = vmul.f32 %v2834, %v2834
        %v2885 = vmul.f32 %v2835, %v2835
        %v2886 = vmul.f32 %v2836, %v2836
        %v2887 = vmul.f32 %v2837, %v2837
        %v2888 = vmul.f32 %v2838, %v2838
        %v2889 = vmul.f32 %v2839, %v2839
        %v2890 = vmul.f32 %v2840, %v2840
        %v2891 = vmul.f32 %v2841, %v2841
        %v2892 = vmul.f32 %v2842, %v2842
        %v2893 = vmul.f32 %v2843, %v2843
        %v2894 = vmul.f32 %v2844, %v2844
        %v2895 = vmul.f32 %v2845, %v2845
        %v2896 = vmul.f32 %v2846, %v2846
        %v2897 = vmul.f32 %v2847, %v2847
        %v2898 = vmul.f32 %v2848, %v2848
        %v2899 = vmul.f32 %v2849, %v2849
        %v2900 = vmul.f32 %v2850, %v2850
        %v2901 = vmul.f32 %v2851, %v2851
        %v2902 = vmul.f32 %v2852, %v2852
        %v2903 = vmul.f32 %v2853, %v2853
        %v2904 = vmul.f32 %v2854, %v2854
        %v2905 = vmul.f32 %v2855, %v2855
        %v2906 = vmul.f32 %v2856, %v2856
        %v2907 = vmul.f32 %v2857, %v2857
        %v2908 = vsub.f32 %v2858, %v2883
        %v2909 = vsub.f32 %v2859, %v2884
        %v2910 = vsub.f32 %v2860, %v2885
        %v2911 = vsub.f32 %v2861, %v2886
        %v2912 = vsub.f32 %v2862, %v2887
        %v2913 = vsub.f32 %v2863, %v2888
        %v2914 = vsub.f32 %v2864, %v2889
        %v2915 = vsub.f32 %v2865, %v2890
        %v2916 = vsub.f32 %v2866, %v2891
        %v2917 = vsub.f32 %v2867, %v2892
        %v2918 = vsub.f32 %v2868, %v2893
        %v2919 = vsub.f32 %v2869, %v2894
        %v2920 = vsub.f32 %v2870, %v2895
        %v2921 = vsub.f32 %v2871, %v2896
        %v2922 = vsub.f32 %v2872, %v2897
        %v2923 = vsub.f32 %v2873, %v2898
        %v2924 = vsub.f32 %v2874, %v2899
        %v2925 = vsub.f32 %v2875, %v2900
        %v2926 = vsub.f32 %v2876, %v2901
        %v2927 = vsub.f32 %v2877, %v2902
        %v2928 = vsub.f32 %v2878, %v2903
        %v2929 = vsub.f32 %v2879, %v2904
        %v2930 = vsub.f32 %v2880, %v2905
        %v2931 = vsub.f32 %v2881, %v2906
        %v2932 = vsub.f32 %v2882, %v2907
        %v2933 = vmax.f32 %v2908, 0.0
        %v2934 = vmax.f32 %v2909, 0.0
        %v2935 = vmax.f32 %v2910, 0.0
        %v2936 = vmax.f32 %v2911, 0.0
        %v2937 = vmax.f32 %v2912, 0.0
        %v2938 = vmax.f32 %v2913, 0.0
        %v2939 = vmax.f32 %v2914, 0.0
        %v2940 = vmax.f32 %v2915, 0.0
        %v2941 = vmax.f32 %v2916, 0.0
        %v2942 = vmax.f32 %v2917, 0.0
        %v2943 = vmax.f32 %v2918, 0.0
        %v2944 = vmax.f32 %v2919, 0.0
        %v2945 = vmax.f32 %v2920, 0.0
        %v2946 = vmax.f32 %v2921, 0.0
        %v2947 = vmax.f32 %v2922, 0.0
        %v2948 = vmax.f32 %v2923, 0.0
        %v2949 = vmax.f32 %v2924, 0.0
        %v2950 = vmax.f32 %v2925, 0.0
        %v2951 = vmax.f32 %v2926, 0.0
        %v2952 = vmax.f32 %v2927, 0.0
        %v2953 = vmax.f32 %v2928, 0.0
        %v2954 = vmax.f32 %v2929, 0.0
        %v2955 = vmax.f32 %v2930, 0.0
        %v2956 = vmax.f32 %v2931, 0.0
        %v2957 = vmax.f32 %v2932, 0.0
        %v2958 = vsub.f32 %v2645, %v2833
        %v2959 = vsub.f32 %v2647, %v2834
        %v2960 = vsub.f32 %v2650, %v2835
        %v2961 = vsub.f32 %v2652, %v2836
        %v2962 = vsub.f32 %v2655, %v2837
        %v2963 = vsub.f32 %v2657, %v2838
        %v2964 = vsub.f32 %v2660, %v2839
        %v2965 = vsub.f32 %v2662, %v2840
        %v2966 = vsub.f32 %v2665, %v2841
        %v2967 = vsub.f32 %v2667, %v2842
        %v2968 = vsub.f32 %v2670, %v2843
        %v2969 = vsub.f32 %v2672, %v2844
        %v2970 = vsub.f32 %v2675, %v2845
        %v2971 = vsub.f32 %v2677, %v2846
        %v2972 = vsub.f32 %v2680, %v2847
        %v2973 = vsub.f32 %v2682, %v2848
        %v2974 = vsub.f32 %v2685, %v2849
        %v2975 = vsub.f32 %v2687, %v2850
        %v2976 = vsub.f32 %v2690, %v2851
        %v2977 = vsub.f32 %v2692, %v2852
        %v2978 = vsub.f32 %v2695, %v2853
        %v2979 = vsub.f32 %v2697, %v2854
        %v2980 = vsub.f32 %v2700, %v2855
        %v2981 = vsub.f32 %v2702, %v2856
        %v2982 = vsub.f32 %v2705, %v2857
        %v2983 = vadd.f32 %v2933, 1e-05
        %v2984 = vadd.f32 %v2934, 1e-05
        %v2985 = vadd.f32 %v2935, 1e-05
        %v2986 = vadd.f32 %v2936, 1e-05
        %v2987 = vadd.f32 %v2937, 1e-05
        %v2988 = vadd.f32 %v2938, 1e-05
        %v2989 = vadd.f32 %v2939, 1e-05
        %v2990 = vadd.f32 %v2940, 1e-05
        %v2991 = vadd.f32 %v2941, 1e-05
        %v2992 = vadd.f32 %v2942, 1e-05
        %v2993 = vadd.f32 %v2943, 1e-05
        %v2994 = vadd.f32 %v2944, 1e-05
        %v2995 = vadd.f32 %v2945, 1e-05
        %v2996 = vadd.f32 %v2946, 1e-05
        %v2997 = vadd.f32 %v2947, 1e-05
        %v2998 = vadd.f32 %v2948, 1e-05
        %v2999 = vadd.f32 %v2949, 1e-05
        %v3000 = vadd.f32 %v2950, 1e-05
        %v3001 = vadd.f32 %v2951, 1e-05
        %v3002 = vadd.f32 %v2952, 1e-05
        %v3003 = vadd.f32 %v2953, 1e-05
        %v3004 = vadd.f32 %v2954, 1e-05
        %v3005 = vadd.f32 %v2955, 1e-05
        %v3006 = vadd.f32 %v2956, 1e-05
        %v3007 = vadd.f32 %v2957, 1e-05
        %v3008 = vrsqrt.pop %v2983
        %v3009 = vmul.f32 %v3008, %v2983
        %v3010 = vmul.f32 %v3009, %v3008
        %v3011 = vmul.f32 0.5, %v3010
        %v3012 = vsub.f32 1.5, %v3011
        %v3013 = vmul.f32 %v3008, %v3012
        %vm3014 = vweird.f32 %v2983
        %vm3015 = vweird.f32 %v3008
        %vm3016 = vmor %vm3014, %vm3015
        %v3017 = vsel %vm3016, %v3008, %v3013
        %v3018 = vrsqrt.pop %v2984
        %v3019 = vmul.f32 %v3018, %v2984
        %v3020 = vmul.f32 %v3019, %v3018
        %v3021 = vmul.f32 0.5, %v3020
        %v3022 = vsub.f32 1.5, %v3021
        %v3023 = vmul.f32 %v3018, %v3022
        %vm3024 = vweird.f32 %v2984
        %vm3025 = vweird.f32 %v3018
        %vm3026 = vmor %vm3024, %vm3025
        %v3027 = vsel %vm3026, %v3018, %v3023
        %v3028 = vrsqrt.pop %v2985
        %v3029 = vmul.f32 %v3028, %v2985
        %v3030 = vmul.f32 %v3029, %v3028
        %v3031 = vmul.f32 0.5, %v3030
        %v3032 = vsub.f32 1.5, %v3031
        %v3033 = vmul.f32 %v3028, %v3032
        %vm3034 = vweird.f32 %v2985
        %vm3035 = vweird.f32 %v3028
        %vm3036 = vmor %vm3034, %vm3035
        %v3037 = vsel %vm3036, %v3028, %v3033
        %v3038 = vrsqrt.pop %v2986
        %v3039 = vmul.f32 %v3038, %v2986
        %v3040 = vmul.f32 %v3039, %v3038
        %v3041 = vmul.f32 0.5, %v3040
        %v3042 = vsub.f32 1.5, %v3041
        %v3043 = vmul.f32 %v3038, %v3042
        %vm3044 = vweird.f32 %v2986
        %vm3045 = vweird.f32 %v3038
        %vm3046 = vmor %vm3044, %vm3045
        %v3047 = vsel %vm3046, %v3038, %v3043
        %v3048 = vrsqrt.pop %v2987
        %v3049 = vmul.f32 %v3048, %v2987
        %v3050 = vmul.f32 %v3049, %v3048
        %v3051 = vmul.f32 0.5, %v3050
        %v3052 = vsub.f32 1.5, %v3051
        %v3053 = vmul.f32 %v3048, %v3052
        %vm3054 = vweird.f32 %v2987
        %vm3055 = vweird.f32 %v3048
        %vm3056 = vmor %vm3054, %vm3055
        %v3057 = vsel %vm3056, %v3048, %v3053
        %v3058 = vrsqrt.pop %v2988
        %v3059 = vmul.f32 %v3058, %v2988
        %v3060 = vmul.f32 %v3059, %v3058
        %v3061 = vmul.f32 0.5, %v3060
        %v3062 = vsub.f32 1.5, %v3061
        %v3063 = vmul.f32 %v3058, %v3062
        %vm3064 = vweird.f32 %v2988
        %vm3065 = vweird.f32 %v3058
        %vm3066 = vmor %vm3064, %vm3065
        %v3067 = vsel %vm3066, %v3058, %v3063
        %v3068 = vrsqrt.pop %v2989
        %v3069 = vmul.f32 %v3068, %v2989
        %v3070 = vmul.f32 %v3069, %v3068
        %v3071 = vmul.f32 0.5, %v3070
        %v3072 = vsub.f32 1.5, %v3071
        %v3073 = vmul.f32 %v3068, %v3072
        %vm3074 = vweird.f32 %v2989
        %vm3075 = vweird.f32 %v3068
        %vm3076 = vmor %vm3074, %vm3075
        %v3077 = vsel %vm3076, %v3068, %v3073
        %v3078 = vrsqrt.pop %v2990
        %v3079 = vmul.f32 %v3078, %v2990
        %v3080 = vmul.f32 %v3079, %v3078
        %v3081 = vmul.f32 0.5, %v3080
        %v3082 = vsub.f32 1.5, %v3081
        %v3083 = vmul.f32 %v3078, %v3082
        %vm3084 = vweird.f32 %v2990
        %vm3085 = vweird.f32 %v3078
        %vm3086 = vmor %vm3084, %vm3085
        %v3087 = vsel %vm3086, %v3078, %v3083
        %v3088 = vrsqrt.pop %v2991
        %v3089 = vmul.f32 %v3088, %v2991
        %v3090 = vmul.f32 %v3089, %v3088
        %v3091 = vmul.f32 0.5, %v3090
        %v3092 = vsub.f32 1.5, %v3091
        %v3093 = vmul.f32 %v3088, %v3092
        %vm3094 = vweird.f32 %v2991
        %vm3095 = vweird.f32 %v3088
        %vm3096 = vmor %vm3094, %vm3095
        %v3097 = vsel %vm3096, %v3088, %v3093
        %v3098 = vrsqrt.pop %v2992
        %v3099 = vmul.f32 %v3098, %v2992
        %v3100 = vmul.f32 %v3099, %v3098
        %v3101 = vmul.f32 0.5, %v3100
        %v3102 = vsub.f32 1.5, %v3101
        %v3103 = vmul.f32 %v3098, %v3102
        %vm3104 = vweird.f32 %v2992
        %vm3105 = vweird.f32 %v3098
        %vm3106 = vmor %vm3104, %vm3105
        %v3107 = vsel %vm3106, %v3098, %v3103
        %v3108 = vrsqrt.pop %v2993
        %v3109 = vmul.f32 %v3108, %v2993
        %v3110 = vmul.f32 %v3109, %v3108
        %v3111 = vmul.f32 0.5, %v3110
        %v3112 = vsub.f32 1.5, %v3111
        %v3113 = vmul.f32 %v3108, %v3112
        %vm3114 = vweird.f32 %v2993
        %vm3115 = vweird.f32 %v3108
        %vm3116 = vmor %vm3114, %vm3115
        %v3117 = vsel %vm3116, %v3108, %v3113
        %v3118 = vrsqrt.pop %v2994
        %v3119 = vmul.f32 %v3118, %v2994
        %v3120 = vmul.f32 %v3119, %v3118
        %v3121 = vmul.f32 0.5, %v3120
        %v3122 = vsub.f32 1.5, %v3121
        %v3123 = vmul.f32 %v3118, %v3122
        %vm3124 = vweird.f32 %v2994
        %vm3125 = vweird.f32 %v3118
        %vm3126 = vmor %vm3124, %vm3125
        %v3127 = vsel %vm3126, %v3118, %v3123
        %v3128 = vrsqrt.pop %v2995
        %v3129 = vmul.f32 %v3128, %v2995
        %v3130 = vmul.f32 %v3129, %v3128
        %v3131 = vmul.f32 0.5, %v3130
        %v3132 = vsub.f32 1.5, %v3131
        %v3133 = vmul.f32 %v3128, %v3132
        %vm3134 = vweird.f32 %v2995
        %vm3135 = vweird.f32 %v3128
        %vm3136 = vmor %vm3134, %vm3135
        %v3137 = vsel %vm3136, %v3128, %v3133
        %v3138 = vrsqrt.pop %v2996
        %v3139 = vmul.f32 %v3138, %v2996
        %v3140 = vmul.f32 %v3139, %v3138
        %v3141 = vmul.f32 0.5, %v3140
        %v3142 = vsub.f32 1.5, %v3141
        %v3143 = vmul.f32 %v3138, %v3142
        %vm3144 = vweird.f32 %v2996
        %vm3145 = vweird.f32 %v3138
        %vm3146 = vmor %vm3144, %vm3145
        %v3147 = vsel %vm3146, %v3138, %v3143
        %v3148 = vrsqrt.pop %v2997
        %v3149 = vmul.f32 %v3148, %v2997
        %v3150 = vmul.f32 %v3149, %v3148
        %v3151 = vmul.f32 0.5, %v3150
        %v3152 = vsub.f32 1.5, %v3151
        %v3153 = vmul.f32 %v3148, %v3152
        %vm3154 = vweird.f32 %v2997
        %vm3155 = vweird.f32 %v3148
        %vm3156 = vmor %vm3154, %vm3155
        %v3157 = vsel %vm3156, %v3148, %v3153
        %v3158 = vrsqrt.pop %v2998
        %v3159 = vmul.f32 %v3158, %v2998
        %v3160 = vmul.f32 %v3159, %v3158
        %v3161 = vmul.f32 0.5, %v3160
        %v3162 = vsub.f32 1.5, %v3161
        %v3163 = vmul.f32 %v3158, %v3162
        %vm3164 = vweird.f32 %v2998
        %vm3165 = vweird.f32 %v3158
        %vm3166 = vmor %vm3164, %vm3165
        %v3167 = vsel %vm3166, %v3158, %v3163
        %v3168 = vrsqrt.pop %v2999
        %v3169 = vmul.f32 %v3168, %v2999
        %v3170 = vmul.f32 %v3169, %v3168
        %v3171 = vmul.f32 0.5, %v3170
        %v3172 = vsub.f32 1.5, %v3171
        %v3173 = vmul.f32 %v3168, %v3172
        %vm3174 = vweird.f32 %v2999
        %vm3175 = vweird.f32 %v3168
        %vm3176 = vmor %vm3174, %vm3175
        %v3177 = vsel %vm3176, %v3168, %v3173
        %v3178 = vrsqrt.pop %v3000
        %v3179 = vmul.f32 %v3178, %v3000
        %v3180 = vmul.f32 %v3179, %v3178
        %v3181 = vmul.f32 0.5, %v3180
        %v3182 = vsub.f32 1.5, %v3181
        %v3183 = vmul.f32 %v3178, %v3182
        %vm3184 = vweird.f32 %v3000
        %vm3185 = vweird.f32 %v3178
        %vm3186 = vmor %vm3184, %vm3185
        %v3187 = vsel %vm3186, %v3178, %v3183
        %v3188 = vrsqrt.pop %v3001
        %v3189 = vmul.f32 %v3188, %v3001
        %v3190 = vmul.f32 %v3189, %v3188
        %v3191 = vmul.f32 0.5, %v3190
        %v3192 = vsub.f32 1.5, %v3191
        %v3193 = vmul.f32 %v3188, %v3192
        %vm3194 = vweird.f32 %v3001
        %vm3195 = vweird.f32 %v3188
        %vm3196 = vmor %vm3194, %vm3195
        %v3197 = vsel %vm3196, %v3188, %v3193
        %v3198 = vrsqrt.pop %v3002
        %v3199 = vmul.f32 %v3198, %v3002
        %v3200 = vmul.f32 %v3199, %v3198
        %v3201 = vmul.f32 0.5, %v3200
        %v3202 = vsub.f32 1.5, %v3201
        %v3203 = vmul.f32 %v3198, %v3202
        %vm3204 = vweird.f32 %v3002
        %vm3205 = vweird.f32 %v3198
        %vm3206 = vmor %vm3204, %vm3205
        %v3207 = vsel %vm3206, %v3198, %v3203
        %v3208 = vrsqrt.pop %v3003
        %v3209 = vmul.f32 %v3208, %v3003
        %v3210 = vmul.f32 %v3209, %v3208
        %v3211 = vmul.f32 0.5, %v3210
        %v3212 = vsub.f32 1.5, %v3211
        %v3213 = vmul.f32 %v3208, %v3212
        %vm3214 = vweird.f32 %v3003
        %vm3215 = vweird.f32 %v3208
        %vm3216 = vmor %vm3214, %vm3215
        %v3217 = vsel %vm3216, %v3208, %v3213
        %v3218 = vrsqrt.pop %v3004
        %v3219 = vmul.f32 %v3218, %v3004
        %v3220 = vmul.f32 %v3219, %v3218
        %v3221 = vmul.f32 0.5, %v3220
        %v3222 = vsub.f32 1.5, %v3221
        %v3223 = vmul.f32 %v3218, %v3222
        %vm3224 = vweird.f32 %v3004
        %vm3225 = vweird.f32 %v3218
        %vm3226 = vmor %vm3224, %vm3225
        %v3227 = vsel %vm3226, %v3218, %v3223
        %v3228 = vrsqrt.pop %v3005
        %v3229 = vmul.f32 %v3228, %v3005
        %v3230 = vmul.f32 %v3229, %v3228
        %v3231 = vmul.f32 0.5, %v3230
        %v3232 = vsub.f32 1.5, %v3231
        %v3233 = vmul.f32 %v3228, %v3232
        %vm3234 = vweird.f32 %v3005
        %vm3235 = vweird.f32 %v3228
        %vm3236 = vmor %vm3234, %vm3235
        %v3237 = vsel %vm3236, %v3228, %v3233
        %v3238 = vrsqrt.pop %v3006
        %v3239 = vmul.f32 %v3238, %v3006
        %v3240 = vmul.f32 %v3239, %v3238
        %v3241 = vmul.f32 0.5, %v3240
        %v3242 = vsub.f32 1.5, %v3241
        %v3243 = vmul.f32 %v3238, %v3242
        %vm3244 = vweird.f32 %v3006
        %vm3245 = vweird.f32 %v3238
        %vm3246 = vmor %vm3244, %vm3245
        %v3247 = vsel %vm3246, %v3238, %v3243
        %v3248 = vrsqrt.pop %v3007
        %v3249 = vmul.f32 %v3248, %v3007
        %v3250 = vmul.f32 %v3249, %v3248
        %v3251 = vmul.f32 0.5, %v3250
        %v3252 = vsub.f32 1.5, %v3251
        %v3253 = vmul.f32 %v3248, %v3252
        %vm3254 = vweird.f32 %v3007
        %vm3255 = vweird.f32 %v3248
        %vm3256 = vmor %vm3254, %vm3255
        %v3257 = vsel %vm3256, %v3248, %v3253
        %v3258 = vmul.f32 %v2958, %v3017
        %v3259 = vmul.f32 %v2959, %v3027
        %v3260 = vmul.f32 %v2960, %v3037
        %v3261 = vmul.f32 %v2961, %v3047
        %v3262 = vmul.f32 %v2962, %v3057
        %v3263 = vmul.f32 %v2963, %v3067
        %v3264 = vmul.f32 %v2964, %v3077
        %v3265 = vmul.f32 %v2965, %v3087
        %v3266 = vmul.f32 %v2966, %v3097
        %v3267 = vmul.f32 %v2967, %v3107
        %v3268 = vmul.f32 %v2968, %v3117
        %v3269 = vmul.f32 %v2969, %v3127
        %v3270 = vmul.f32 %v2970, %v3137
        %v3271 = vmul.f32 %v2971, %v3147
        %v3272 = vmul.f32 %v2972, %v3157
        %v3273 = vmul.f32 %v2973, %v3167
        %v3274 = vmul.f32 %v2974, %v3177
        %v3275 = vmul.f32 %v2975, %v3187
        %v3276 = vmul.f32 %v2976, %v3197
        %v3277 = vmul.f32 %v2977, %v3207
        %v3278 = vmul.f32 %v2978, %v3217
        %v3279 = vmul.f32 %v2979, %v3227
        %v3280 = vmul.f32 %v2980, %v3237
        %v3281 = vmul.f32 %v2981, %v3247
        %v3282 = vmul.f32 %v2982, %v3257
        %v3283 = vmax.f32 %v3258, 0.0
        %v3284 = vmax.f32 %v3259, 0.0
        %v3285 = vmax.f32 %v3260, 0.0
        %v3286 = vmax.f32 %v3261, 0.0
        %v3287 = vmax.f32 %v3262, 0.0
        %v3288 = vmax.f32 %v3263, 0.0
        %v3289 = vmax.f32 %v3264, 0.0
        %v3290 = vmax.f32 %v3265, 0.0
        %v3291 = vmax.f32 %v3266, 0.0
        %v3292 = vmax.f32 %v3267, 0.0
        %v3293 = vmax.f32 %v3268, 0.0
        %v3294 = vmax.f32 %v3269, 0.0
        %v3295 = vmax.f32 %v3270, 0.0
        %v3296 = vmax.f32 %v3271, 0.0
        %v3297 = vmax.f32 %v3272, 0.0
        %v3298 = vmax.f32 %v3273, 0.0
        %v3299 = vmax.f32 %v3274, 0.0
        %v3300 = vmax.f32 %v3275, 0.0
        %v3301 = vmax.f32 %v3276, 0.0
        %v3302 = vmax.f32 %v3277, 0.0
        %v3303 = vmax.f32 %v3278, 0.0
        %v3304 = vmax.f32 %v3279, 0.0
        %v3305 = vmax.f32 %v3280, 0.0
        %v3306 = vmax.f32 %v3281, 0.0
        %v3307 = vmax.f32 %v3282, 0.0
        %v3308 = vpack.c.bf16 %v3284, %v3283
        %v3309 = vpack.c.bf16 %v3286, %v3285
        %v3310 = vpack.c.bf16 %v3288, %v3287
        %v3311 = vpack.c.bf16 %v3290, %v3289
        %v3312 = vpack.c.bf16 %v3292, %v3291
        %v3313 = vpack.c.bf16 %v3294, %v3293
        %v3314 = vpack.c.bf16 %v3296, %v3295
        %v3315 = vpack.c.bf16 %v3298, %v3297
        %v3316 = vpack.c.bf16 %v3300, %v3299
        %v3317 = vpack.c.bf16 %v3302, %v3301
        %v3318 = vpack.c.bf16 %v3304, %v3303
        %v3319 = vpack.c.bf16 %v3306, %v3305
        %v3320 = vpack.c.bf16 %v3307, %v3307
        %v3321 = vld [vmem:[%s3] sm:$0xf]
        %v3322 = vld [vmem:[%s3 + $0x4] sm:$0xf]
        %v3323 = vld [vmem:[%s3 + $0x8] sm:$0xf]
        %v3324 = vld [vmem:[%s3 + $0xc] sm:$0xf]
        %v3325 = vld [vmem:[%s3 + $0x10] sm:$0xf]
        %v3326 = vld [vmem:[%s3 + $0x14] sm:$0xf]
        %v3327 = vld [vmem:[%s3 + $0x18] sm:$0xf]
        %v3328 = vld [vmem:[%s3 + $0x1c] sm:$0xf]
        %v3329 = vld [vmem:[%s3 + $0x20] sm:$0xf]
        %v3330 = vld [vmem:[%s3 + $0x24] sm:$0xf]
        %v3331 = vld [vmem:[%s3 + $0x28] sm:$0xf]
        %v3332 = vld [vmem:[%s3 + $0x2c] sm:$0xf]
        %v3333 = vld [vmem:[%s3 + $0x30] sm:$0xf]
        %v3334 = vld [vmem:[%s3 + $0x34] sm:$0xf]
        %v3335 = vld [vmem:[%s3 + $0x38] sm:$0xf]
        %v3336 = vld [vmem:[%s3 + $0x3c] sm:$0xf]
        %v3337 = vld [vmem:[%s5] sm:$0x1]
        %v3339 = vperm.slane %v3337, 0
        %v3357 = vunpack.c.l.b16 %v3321
        %v3358 = vunpack.c.l.b16 %v3322
        %v3359 = vunpack.c.l.b16 %v3323
        %v3360 = vunpack.c.l.b16 %v3324
        %v3361 = vunpack.c.l.b16 %v3325
        %v3362 = vunpack.c.l.b16 %v3326
        %v3363 = vunpack.c.l.b16 %v3327
        %v3364 = vunpack.c.l.b16 %v3328
        %v3365 = vunpack.c.l.b16 %v3329
        %v3366 = vunpack.c.l.b16 %v3330
        %v3367 = vunpack.c.l.b16 %v3331
        %v3368 = vunpack.c.l.b16 %v3332
        %v3369 = vunpack.c.l.b16 %v3333
        %v3370 = vunpack.c.l.b16 %v3334
        %v3371 = vunpack.c.l.b16 %v3335
        %v3372 = vunpack.c.l.b16 %v3336
        %v3373 = vpack.c.b16 %v3358, %v3357
        %v3374 = vpack.c.b16 %v3360, %v3359
        %v3375 = vpack.c.b16 %v3362, %v3361
        %v3376 = vpack.c.b16 %v3364, %v3363
        %v3377 = vpack.c.b16 %v3366, %v3365
        %v3378 = vpack.c.b16 %v3368, %v3367
        %v3379 = vpack.c.b16 %v3370, %v3369
        %v3380 = vpack.c.b16 %v3372, %v3371
        %3389 = vmatpush.bf16.msra.mxu0 %v3380
        %3390 = vmatpush.bf16.msra.mxu0 %v3379
        %3391 = vmatpush.bf16.msra.mxu0 %v3378
        %3392 = vmatpush.bf16.msra.mxu0 %v3377
        %3393 = vmatpush.bf16.msra.mxu0 %v3376
        %3394 = vmatpush.bf16.msra.mxu0 %v3375
        %3395 = vmatpush.bf16.msra.mxu0 %v3374
        %3396 = vmatpush.bf16.msra.mxu0 %v3373
        %3397 = vmatmul.bf16.gmra.mxu0 %v3308
        %v3398 = vpop.f32.mrf.mxu0
        %v3399 = vadd.f32 %v3339, %v3398
        %v3400 = vpop.f32.mrf.mxu0
        %v3401 = vadd.f32 %v3339, %v3400
        %3402 = vmatmul.bf16.gmra.mxu0 %v3309
        %v3403 = vpop.f32.mrf.mxu0
        %v3404 = vadd.f32 %v3339, %v3403
        %v3405 = vpop.f32.mrf.mxu0
        %v3406 = vadd.f32 %v3339, %v3405
        %3407 = vmatmul.bf16.gmra.mxu0 %v3310
        %v3408 = vpop.f32.mrf.mxu0
        %v3409 = vadd.f32 %v3339, %v3408
        %v3410 = vpop.f32.mrf.mxu0
        %v3411 = vadd.f32 %v3339, %v3410
        %3412 = vmatmul.bf16.gmra.mxu0 %v3311
        %v3413 = vpop.f32.mrf.mxu0
        %v3414 = vadd.f32 %v3339, %v3413
        %v3415 = vpop.f32.mrf.mxu0
        %v3416 = vadd.f32 %v3339, %v3415
        %3417 = vmatmul.bf16.gmra.mxu0 %v3312
        %v3418 = vpop.f32.mrf.mxu0
        %v3419 = vadd.f32 %v3339, %v3418
        %v3420 = vpop.f32.mrf.mxu0
        %v3421 = vadd.f32 %v3339, %v3420
        %3422 = vmatmul.bf16.gmra.mxu0 %v3313
        %v3423 = vpop.f32.mrf.mxu0
        %v3424 = vadd.f32 %v3339, %v3423
        %v3425 = vpop.f32.mrf.mxu0
        %v3426 = vadd.f32 %v3339, %v3425
        %3427 = vmatmul.bf16.gmra.mxu0 %v3314
        %v3428 = vpop.f32.mrf.mxu0
        %v3429 = vadd.f32 %v3339, %v3428
        %v3430 = vpop.f32.mrf.mxu0
        %v3431 = vadd.f32 %v3339, %v3430
        %3432 = vmatmul.bf16.gmra.mxu0 %v3315
        %v3433 = vpop.f32.mrf.mxu0
        %v3434 = vadd.f32 %v3339, %v3433
        %v3435 = vpop.f32.mrf.mxu0
        %v3436 = vadd.f32 %v3339, %v3435
        %3437 = vmatmul.bf16.gmra.mxu0 %v3316
        %v3438 = vpop.f32.mrf.mxu0
        %v3439 = vadd.f32 %v3339, %v3438
        %v3440 = vpop.f32.mrf.mxu0
        %v3441 = vadd.f32 %v3339, %v3440
        %3442 = vmatmul.bf16.gmra.mxu0 %v3317
        %v3443 = vpop.f32.mrf.mxu0
        %v3444 = vadd.f32 %v3339, %v3443
        %v3445 = vpop.f32.mrf.mxu0
        %v3446 = vadd.f32 %v3339, %v3445
        %3447 = vmatmul.bf16.gmra.mxu0 %v3318
        %v3448 = vpop.f32.mrf.mxu0
        %v3449 = vadd.f32 %v3339, %v3448
        %v3450 = vpop.f32.mrf.mxu0
        %v3451 = vadd.f32 %v3339, %v3450
        %3452 = vmatmul.bf16.gmra.mxu0 %v3319
        %v3453 = vpop.f32.mrf.mxu0
        %v3454 = vadd.f32 %v3339, %v3453
        %v3455 = vpop.f32.mrf.mxu0
        %v3456 = vadd.f32 %v3339, %v3455
        %3457 = vmatmul.bf16.gmra.mxu0 %v3320
        %v3458 = vpop.f32.mrf.mxu0
        %v3459 = vadd.f32 %v3339, %v3458
        %v3460 = vpop.f32.mrf.mxu0
        %3461 = vdwg.mxu0
        %v3462 = vpack.c.bf16 %v3399, %v3399
        %v3463 = vpack.c.bf16 %v3401, %v3401
        %v3464 = vpack.c.bf16 %v3404, %v3404
        %v3465 = vpack.c.bf16 %v3406, %v3406
        %v3466 = vpack.c.bf16 %v3409, %v3409
        %v3467 = vpack.c.bf16 %v3411, %v3411
        %v3468 = vpack.c.bf16 %v3414, %v3414
        %v3469 = vpack.c.bf16 %v3416, %v3416
        %v3470 = vpack.c.bf16 %v3419, %v3419
        %v3471 = vpack.c.bf16 %v3421, %v3421
        %v3472 = vpack.c.bf16 %v3424, %v3424
        %v3473 = vpack.c.bf16 %v3426, %v3426
        %v3474 = vpack.c.bf16 %v3429, %v3429
        %v3475 = vpack.c.bf16 %v3431, %v3431
        %v3476 = vpack.c.bf16 %v3434, %v3434
        %v3477 = vpack.c.bf16 %v3436, %v3436
        %v3478 = vpack.c.bf16 %v3439, %v3439
        %v3479 = vpack.c.bf16 %v3441, %v3441
        %v3480 = vpack.c.bf16 %v3444, %v3444
        %v3481 = vpack.c.bf16 %v3446, %v3446
        %v3482 = vpack.c.bf16 %v3449, %v3449
        %v3483 = vpack.c.bf16 %v3451, %v3451
        %v3484 = vpack.c.bf16 %v3454, %v3454
        %v3485 = vpack.c.bf16 %v3456, %v3456
        %v3486 = vpack.c.bf16 %v3459, %v3459
        %3487 = vst [vmem:[%s245] sm:$0xf] %v3462
        %3488 = vst [vmem:[%s245 + $0x4] sm:$0xf] %v3463
        %3489 = vst [vmem:[%s245 + $0x8] sm:$0xf] %v3464
        %3490 = vst [vmem:[%s245 + $0xc] sm:$0xf] %v3465
        %3491 = vst [vmem:[%s245 + $0x10] sm:$0xf] %v3466
        %3492 = vst [vmem:[%s245 + $0x14] sm:$0xf] %v3467
        %3493 = vst [vmem:[%s245 + $0x18] sm:$0xf] %v3468
        %3494 = vst [vmem:[%s245 + $0x1c] sm:$0xf] %v3469
        %3495 = vst [vmem:[%s245 + $0x20] sm:$0xf] %v3470
        %3496 = vst [vmem:[%s245 + $0x24] sm:$0xf] %v3471
        %3497 = vst [vmem:[%s245 + $0x28] sm:$0xf] %v3472
        %3498 = vst [vmem:[%s245 + $0x2c] sm:$0xf] %v3473
        %3499 = vst [vmem:[%s245 + $0x30] sm:$0xf] %v3474
        %3500 = vst [vmem:[%s245 + $0x34] sm:$0xf] %v3475
        %3501 = vst [vmem:[%s245 + $0x38] sm:$0xf] %v3476
        %3502 = vst [vmem:[%s245 + $0x3c] sm:$0xf] %v3477
        %3503 = vst [vmem:[%s245 + $0x40] sm:$0xf] %v3478
        %3504 = vst [vmem:[%s245 + $0x44] sm:$0xf] %v3479
        %3505 = vst [vmem:[%s245 + $0x48] sm:$0xf] %v3480
        %3506 = vst [vmem:[%s245 + $0x4c] sm:$0xf] %v3481
        %3507 = vst [vmem:[%s245 + $0x50] sm:$0xf] %v3482
        %3508 = vst [vmem:[%s245 + $0x54] sm:$0xf] %v3483
        %3509 = vst [vmem:[%s245 + $0x58] sm:$0xf] %v3484
        %3510 = vst [vmem:[%s245 + $0x5c] sm:$0xf] %v3485
        %3511 = vst [vmem:[%s245 + $0x60] sm:$0xf] %v3486
        %s3512 = sand.u32 %s159, 1
        %s3513 = scalar_lea.sflag [#allocation3], %s3512
        %s3514 = sand.u32 %s159, 1
        %s3515 = smul.addr %s3514, 100
        %s3516 = scalar_lea.vmem [#allocation2], %s3515
        // Predicated region
        $region45: #{tpu_custom_call.1} parent=43 // pred_check
          %p3517 = pneg %p169
        $region46: #{tpu_custom_call.1} parent=43 // pred_check_branch
          %3519 = sbr.rel (%p3517) target = $region48
        $region47: #{tpu_custom_call.1} parent=43 // pred_region
          %s3520 = smul.u32 25, %s20
          %3522 = vsyncadd %s3513, 0
          %s3523 = smul.addr %s3520, 4
          %s3524 = scalar_lea.hbm %s6, %s3523
          %s3525 = sshll.u32 %s3516, 4
          %s3526 = int_to_ptr.vmem [resolvable:$true] %s3525
          %s3527 = sshll.u32 %s3524, 4
          %s3528 = int_to_ptr.hbm [resolvable:$true] %s3527
          %3533 = dma.vmem_to_hbm [thread:$0]  %s3526, 1600, %s3528, %s3513, 64, 64, 4
        $region48: #{tpu_custom_call.1} parent=43 // pred_fallthru
          _
      $region44: #{tpu_custom_call.1} parent=5 // pred_fallthru
        _
      %p3534 = scmp.le.s32.totalorder 2, %s15
      // Predicated region
      $region49: #{tpu_custom_call.1} parent=5 // pred_check
        %p3535 = pneg %p3534
      $region50: #{tpu_custom_call.1} parent=5 // pred_check_branch
        %3537 = sbr.rel (%p3535) target = $region52
      $region51: #{tpu_custom_call.1} parent=5 // pred_region
        %s3538 = ssub.s32 %s15, 2
        // Predicated region
        $region53: #{tpu_custom_call.1} parent=51 // pred_check
          %p3539 = pneg %p175
        $region54: #{tpu_custom_call.1} parent=51 // pred_check_branch
          %3541 = sbr.rel (%p3539) target = $region56
        $region55: #{tpu_custom_call.1} parent=51 // pred_region
          %s3542 = sand.u32 %s160, 1
          %s3543 = scalar_lea.sflag [#allocation3], %s3542
          %s3544 = sand.u32 %s160, 1
          %s3545 = smul.addr %s3544, 100
          %s3546 = scalar_lea.vmem [#allocation2], %s3545
          %3548 = dma.done %s3543, 1600
        $region56: #{tpu_custom_call.1} parent=51 // pred_fallthru
          _
      $region52: #{tpu_custom_call.1} parent=5 // pred_fallthru
        _
    $region6: #{tpu_custom_call.1} parent=1 // loop_footer
      %s19 = sadd.s32 1, %s15
    $region7: #{tpu_custom_call.1} parent=1 // loop_footer_branch
      %14 = sbr.rel target = $region3
    $region8: #{tpu_custom_call.1} parent=1 // loop_exit
      _
    %3549 = vsyncpa [#allocation3], 1
    %s3550 = scalar_lea.sflag [#allocation3], 1
    %3551 = vsyncpa %s3550, 1

</llo_original>
